<compile_context>
chip_gen: v6e
topology: v6e:2x2x1
jax: 0.10.0
libtpu: 0.0.40
codegen_flags: <defaults>
</compile_context>

<pallas_src>
import functools

import jax
import jax.numpy as jnp
from jax.experimental import pallas as pl
from jax.experimental.pallas import tpu as pltpu


# ----------------------------------------------------------------------------
# Kernel: one grid step = one conv layer applied to one batch tile
# ----------------------------------------------------------------------------
def _subnet_layer_kernel(x_ref, w_ref, b_ref, o_ref, pad_ref, *, H, W, C, co_store):
    # x_ref  : (Nt, H, W, C)        bf16 input activations (used only at d == 0)
    # w_ref  : (1, 9, C, C)         bf16 weights of layer d, tap-major (dy*3+dx, Cin, Cout)
    # b_ref  : (1, 1, C)            f32 bias of layer d
    # o_ref  : (Nt, H, W, co_store) f32 output (written on the last layer only)
    # pad_ref: (Nt, H+2, Wp, C)     bf16 persistent padded activation scratch
    d = pl.program_id(1)
    last = pl.num_programs(1) - 1
    Nt = x_ref.shape[0]
    M = Nt * H * W

    # First layer of each batch tile: zero the padded plane once (the 1-pixel
    # border stays zero for every layer) and drop the input into its interior.
    @pl.when(d == 0)
    def _():
        pad_ref[...] = jnp.zeros_like(pad_ref)
        pad_ref[:, 1:H + 1, 1:W + 1, :] = x_ref[...]

    # 3x3 conv as 9 shifted MXU matmuls accumulated in f32 (no im2col buffer).
    # TODO(synk): at real FPN resolutions, do the dx shift with pltpu.roll on an
    # aligned row slab (XLU slot) instead of sublane-offset slices, and pick the
    # batch/row tile so M = Nt*rows*W >= 512 (multiple of 256) on v6e/v7x.
    acc = None
    for dy in range(3):
        for dx in range(3):
            lhs = pad_ref[:, dy:dy + H, dx:dx + W, :].reshape(M, C)
            part = jnp.dot(lhs, w_ref[0, dy * 3 + dx],
                           preferred_element_type=jnp.float32)
            acc = part if acc is None else acc + part
    acc = acc + b_ref[0]

    # Base layers: bias + ReLU, write back into the padded plane for layer d+1.
    @pl.when(d < last)
    def _():
        y = jnp.maximum(acc, 0.0).astype(pad_ref.dtype)
        pad_ref[:, 1:H + 1, 1:W + 1, :] = y.reshape(Nt, H, W, C)

    # Output layer: bias only (the PyTorch forward applies no output activation);
    # store the first co_store lanes lane-dense, wrapper slices to the real C_out.
    @pl.when(d == last)
    def _():
        o_ref[...] = acc[:, :co_store].reshape(Nt, H, W, co_store).astype(o_ref.dtype)


# ----------------------------------------------------------------------------
# Parameters (deterministic init matching the PyTorch module shapes)
# ----------------------------------------------------------------------------
def make_subnet_params(key, mode="boxes", anchors=9, classes=80, depth=4):
    if mode == "boxes":
        out_channels = 4 * anchors
    elif mode == "classes":
        out_channels = (1 + classes) * anchors
    else:
        raise ValueError(mode)

    keys = jax.random.split(key, depth + 1)
    base = []
    for dd in range(depth):
        # nn.init.normal_(std=0.01), bias = 0   (HWIO layout)
        w = 0.01 * jax.random.normal(keys[dd], (3, 3, 256, 256), jnp.float32)
        b = jnp.zeros((256,), jnp.float32)
        base.append((w, b))
    w_out = 0.01 * jax.random.normal(keys[depth], (3, 3, 256, out_channels), jnp.float32)
    b_out = jnp.full((out_channels,), 4.59, jnp.float32)   # _output_layer_init
    return {"base": base, "output": (w_out, b_out)}


# ----------------------------------------------------------------------------
# Forward: one fused Pallas call + layout glue at the boundary
# ----------------------------------------------------------------------------
def subnet_forward(params, x_nchw, *, anchors):
    depth = len(params["base"])

    # TODO(synk): require NHWC/bf16 activations upstream so this transpose+cast
    # does not cost an extra HBM round-trip at real FPN resolutions.
    x = jnp.transpose(x_nchw, (0, 2, 3, 1)).astype(jnp.bfloat16)
    N, H, W, C = x.shape

    w_out, b_out = params["output"]
    C_out = w_out.shape[-1]

    # Stack base + lane-padded output weights: (depth+1, 9, Cin, 256), bf16.
    w_stack = [w.reshape(9, C, C) for (w, _) in params["base"]]
    w_last = jnp.zeros((9, C, C), jnp.float32).at[:, :, :C_out].set(
        w_out.reshape(9, C, C_out))
    w_all = jnp.stack(w_stack + [w_last]).astype(jnp.bfloat16)

    # Stack biases: (depth+1, 1, 256), f32 (padded output lanes are zero).
    b_stack = [b.reshape(1, C) for (_, b) in params["base"]]
    b_last = jnp.zeros((1, C), jnp.float32).at[0, :C_out].set(b_out)
    b_all = jnp.stack(b_stack + [b_last])

    n_layers = depth + 1
    Nt = 1                               # per-sample tile -> "parallel" axis feeds both v7x cores
    co_store = 128                       # lane-dense output store; real C_out sliced below
    Wp = ((W + 2 + 7) // 8) * 8          # sublane-aligned padded plane width

    kernel = functools.partial(_subnet_layer_kernel, H=H, W=W, C=C, co_store=co_store)

    y = pl.pallas_call(
        kernel,
        out_shape=jax.ShapeDtypeStruct((N, H, W, co_store), jnp.float32),
        grid=(N // Nt, n_layers),
        in_specs=[
            pl.BlockSpec((Nt, H, W, C), lambda b, d: (b, 0, 0, 0)),     # activations (per batch tile)
            pl.BlockSpec((1, 9, C, C), lambda b, d: (d, 0, 0, 0)),      # one layer's weights per step
            pl.BlockSpec((1, 1, C), lambda b, d: (d, 0, 0)),            # one layer's bias per step
        ],
        out_specs=pl.BlockSpec((Nt, H, W, co_store), lambda b, d: (b, 0, 0, 0)),
        scratch_shapes=[
            pltpu.VMEM((Nt, H + 2, Wp, C), jnp.bfloat16),               # persistent padded activations
        ],
        compiler_params=pltpu.CompilerParams(
            dimension_semantics=("parallel", "arbitrary")),
    )(x, w_all, b_all)

    # permute(0,2,3,1).contiguous().view(N, H*W*anchors, -1): y is already NHWC,
    # so only the lane un-pad + reshape remain.
    y = y[..., :C_out]
    return y.reshape(N, H * W * anchors, C_out // anchors)


# ----------------------------------------------------------------------------
# Pure-JAX reference (same bf16-operand / f32-accumulate numerics)
# ----------------------------------------------------------------------------
def subnet_forward_ref(params, x_nchw, *, anchors):
    dn = ("NHWC", "HWIO", "NHWC")

    def conv(x, w, b):
        y = jax.lax.conv_general_dilated(
            x.astype(jnp.bfloat16), w.astype(jnp.bfloat16),
            window_strides=(1, 1), padding="SAME", dimension_numbers=dn,
            preferred_element_type=jnp.float32)
        return y + b.reshape(1, 1, 1, -1)

    x = jnp.transpose(x_nchw, (0, 2, 3, 1))
    for w, b in params["base"]:
        x = jax.nn.relu(conv(x, w, b)).astype(jnp.bfloat16)
    x = conv(x, *params["output"])
    N, H, W, C_out = x.shape
    return x.reshape(N, H * W * anchors, C_out // anchors)


if __name__ == "__main__":
    key = jax.random.PRNGKey(0)
    pkey, xkey = jax.random.split(key)

    anchors, depth = 9, 4
    params = make_subnet_params(pkey, mode="boxes", anchors=anchors, classes=80, depth=depth)

    # SubNet's input channel count is fixed at 256 by the module definition.
    N, C, H, W = 2, 256, 8, 8
    x = jax.random.normal(xkey, (N, C, H, W), jnp.float32)

    fwd = jax.jit(functools.partial(subnet_forward, anchors=anchors))
    out = jax.block_until_ready(fwd(params, x))
    ref = jax.block_until_ready(subnet_forward_ref(params, x, anchors=anchors))

    assert out.shape == (N, H * W * anchors, 4), out.shape
    max_err = float(jnp.max(jnp.abs(out - ref)))
    assert jnp.allclose(out, ref, atol=1e-2, rtol=1e-2), max_err

    print("KERNEL_OK")
</pallas_src>

<mosaic_0001>
module attributes {stable_mosaic.version = 11 : i64} {
  func.func @_subnet_layer_kernel(%arg0: i32, %arg1: i32, %arg2: memref<1x8x8x256xbf16, #tpu.memory_space<vmem>>, %arg3: memref<1x9x256x256xbf16, #tpu.memory_space<vmem>>, %arg4: memref<1x1x256xf32, #tpu.memory_space<vmem>>, %arg5: memref<1x8x8x128xf32, #tpu.memory_space<vmem>>, %arg6: memref<1x10x16x256xbf16, #tpu.memory_space<vmem>>) attributes {dimension_semantics = [#tpu.dimension_semantics<parallel>, #tpu.dimension_semantics<arbitrary>], iteration_bounds = array<i64: 2, 5>, scalar_prefetch = 0 : i64, scratch_operands = 1 : i64, tpu.core_type = #tpu.core_type<tc>, window_params = [{transform_indices = @transform_0, window_bounds = array<i64: 1, 8, 8, 256>}, {transform_indices = @transform_1, window_bounds = array<i64: 1, 9, 256, 256>}, {transform_indices = @transform_2, window_bounds = array<i64: 1, 1, 256>}, {transform_indices = @transform_3, window_bounds = array<i64: 1, 8, 8, 128>}]} {
    %c0_i32 = arith.constant 0 : i32
    %0 = arith.cmpi eq, %arg1, %c0_i32 : i32
    %1 = arith.extui %0 : i1 to i32
    %c0_i32_0 = arith.constant 0 : i32
    %2 = arith.cmpi ne, %1, %c0_i32_0 : i32
    scf.if %2 {
      %cst_78 = arith.constant 0.000000e+00 : bf16
      %66 = vector.broadcast %cst_78 : bf16 to vector<1x10x16x256xbf16>
      %c0_79 = arith.constant 0 : index
      %c0_80 = arith.constant 0 : index
      %c0_81 = arith.constant 0 : index
      %c0_82 = arith.constant 0 : index
      %67 = vector.load %arg6[%c0_79, %c0_80, %c0_81, %c0_82] : memref<1x10x16x256xbf16, #tpu.memory_space<vmem>>, vector<1x10x16x256xbf16>
      tpu.vector_store %arg6[%c0_79, %c0_80, %c0_81, %c0_82], %66 {strides = array<i32>} : memref<1x10x16x256xbf16, #tpu.memory_space<vmem>>, vector<1x10x16x256xbf16>,
      %c0_83 = arith.constant 0 : index
      %c0_84 = arith.constant 0 : index
      %c0_85 = arith.constant 0 : index
      %c0_86 = arith.constant 0 : index
      %68 = vector.load %arg2[%c0_83, %c0_84, %c0_85, %c0_86] : memref<1x8x8x256xbf16, #tpu.memory_space<vmem>>, vector<1x8x8x256xbf16>
      %c0_87 = arith.constant 0 : index
      %c1_88 = arith.constant 1 : index
      %c1_89 = arith.constant 1 : index
      %c0_90 = arith.constant 0 : index
      %69 = vector.load %arg6[%c0_87, %c1_88, %c1_89, %c0_90] : memref<1x10x16x256xbf16, #tpu.memory_space<vmem>>, vector<1x8x8x256xbf16>
      tpu.vector_store %arg6[%c0_87, %c1_88, %c1_89, %c0_90], %68 {strides = array<i32>} : memref<1x10x16x256xbf16, #tpu.memory_space<vmem>>, vector<1x8x8x256xbf16>,
    } else {
    }
    %c0 = arith.constant 0 : index
    %c0_1 = arith.constant 0 : index
    %c0_2 = arith.constant 0 : index
    %c0_3 = arith.constant 0 : index
    %3 = vector.load %arg6[%c0, %c0_1, %c0_2, %c0_3] : memref<1x10x16x256xbf16, #tpu.memory_space<vmem>>, vector<1x8x8x256xbf16>
    %4 = vector.shape_cast %3 : vector<1x8x8x256xbf16> to vector<64x256xbf16>
    %c0_4 = arith.constant 0 : index
    %c0_5 = arith.constant 0 : index
    %c0_6 = arith.constant 0 : index
    %c0_7 = arith.constant 0 : index
    %5 = vector.load %arg3[%c0_4, %c0_5, %c0_6, %c0_7] : memref<1x9x256x256xbf16, #tpu.memory_space<vmem>>, vector<1x1x256x256xbf16>
    %6 = vector.shape_cast %5 : vector<1x1x256x256xbf16> to vector<256x256xbf16>
    %cst = arith.constant dense<0.000000e+00> : vector<64x256xf32>
    %7 = tpu.matmul %4, %6, %cst {dimension_numbers = #tpu.dot_dimension_numbers<[1], [0], [0], [1], [0, 0, 1, 1], [], []>} : vector<64x256xbf16>, vector<256x256xbf16>, vector<64x256xf32> -> vector<64x256xf32>
    %c0_8 = arith.constant 0 : index
    %c0_9 = arith.constant 0 : index
    %c1 = arith.constant 1 : index
    %c0_10 = arith.constant 0 : index
    %8 = vector.load %arg6[%c0_8, %c0_9, %c1, %c0_10] : memref<1x10x16x256xbf16, #tpu.memory_space<vmem>>, vector<1x8x8x256xbf16>
    %9 = vector.shape_cast %8 : vector<1x8x8x256xbf16> to vector<64x256xbf16>
    %c0_11 = arith.constant 0 : index
    %c1_12 = arith.constant 1 : index
    %c0_13 = arith.constant 0 : index
    %c0_14 = arith.constant 0 : index
    %10 = vector.load %arg3[%c0_11, %c1_12, %c0_13, %c0_14] : memref<1x9x256x256xbf16, #tpu.memory_space<vmem>>, vector<1x1x256x256xbf16>
    %11 = vector.shape_cast %10 : vector<1x1x256x256xbf16> to vector<256x256xbf16>
    %cst_15 = arith.constant dense<0.000000e+00> : vector<64x256xf32>
    %12 = tpu.matmul %9, %11, %cst_15 {dimension_numbers = #tpu.dot_dimension_numbers<[1], [0], [0], [1], [0, 0, 1, 1], [], []>} : vector<64x256xbf16>, vector<256x256xbf16>, vector<64x256xf32> -> vector<64x256xf32>
    %13 = arith.addf %7, %12 : vector<64x256xf32>
    %c0_16 = arith.constant 0 : index
    %c0_17 = arith.constant 0 : index
    %c2 = arith.constant 2 : index
    %c0_18 = arith.constant 0 : index
    %14 = vector.load %arg6[%c0_16, %c0_17, %c2, %c0_18] : memref<1x10x16x256xbf16, #tpu.memory_space<vmem>>, vector<1x8x8x256xbf16>
    %15 = vector.shape_cast %14 : vector<1x8x8x256xbf16> to vector<64x256xbf16>
    %c0_19 = arith.constant 0 : index
    %c2_20 = arith.constant 2 : index
    %c0_21 = arith.constant 0 : index
    %c0_22 = arith.constant 0 : index
    %16 = vector.load %arg3[%c0_19, %c2_20, %c0_21, %c0_22] : memref<1x9x256x256xbf16, #tpu.memory_space<vmem>>, vector<1x1x256x256xbf16>
    %17 = vector.shape_cast %16 : vector<1x1x256x256xbf16> to vector<256x256xbf16>
    %cst_23 = arith.constant dense<0.000000e+00> : vector<64x256xf32>
    %18 = tpu.matmul %15, %17, %cst_23 {dimension_numbers = #tpu.dot_dimension_numbers<[1], [0], [0], [1], [0, 0, 1, 1], [], []>} : vector<64x256xbf16>, vector<256x256xbf16>, vector<64x256xf32> -> vector<64x256xf32>
    %19 = arith.addf %13, %18 : vector<64x256xf32>
    %c0_24 = arith.constant 0 : index
    %c1_25 = arith.constant 1 : index
    %c0_26 = arith.constant 0 : index
    %c0_27 = arith.constant 0 : index
    %20 = vector.load %arg6[%c0_24, %c1_25, %c0_26, %c0_27] : memref<1x10x16x256xbf16, #tpu.memory_space<vmem>>, vector<1x8x8x256xbf16>
    %21 = vector.shape_cast %20 : vector<1x8x8x256xbf16> to vector<64x256xbf16>
    %c0_28 = arith.constant 0 : index
    %c3 = arith.constant 3 : index
    %c0_29 = arith.constant 0 : index
    %c0_30 = arith.constant 0 : index
    %22 = vector.load %arg3[%c0_28, %c3, %c0_29, %c0_30] : memref<1x9x256x256xbf16, #tpu.memory_space<vmem>>, vector<1x1x256x256xbf16>
    %23 = vector.shape_cast %22 : vector<1x1x256x256xbf16> to vector<256x256xbf16>
    %cst_31 = arith.constant dense<0.000000e+00> : vector<64x256xf32>
    %24 = tpu.matmul %21, %23, %cst_31 {dimension_numbers = #tpu.dot_dimension_numbers<[1], [0], [0], [1], [0, 0, 1, 1], [], []>} : vector<64x256xbf16>, vector<256x256xbf16>, vector<64x256xf32> -> vector<64x256xf32>
    %25 = arith.addf %19, %24 : vector<64x256xf32>
    %c0_32 = arith.constant 0 : index
    %c1_33 = arith.constant 1 : index
    %c1_34 = arith.constant 1 : index
    %c0_35 = arith.constant 0 : index
    %26 = vector.load %arg6[%c0_32, %c1_33, %c1_34, %c0_35] : memref<1x10x16x256xbf16, #tpu.memory_space<vmem>>, vector<1x8x8x256xbf16>
    %27 = vector.shape_cast %26 : vector<1x8x8x256xbf16> to vector<64x256xbf16>
    %c0_36 = arith.constant 0 : index
    %c4 = arith.constant 4 : index
    %c0_37 = arith.constant 0 : index
    %c0_38 = arith.constant 0 : index
    %28 = vector.load %arg3[%c0_36, %c4, %c0_37, %c0_38] : memref<1x9x256x256xbf16, #tpu.memory_space<vmem>>, vector<1x1x256x256xbf16>
    %29 = vector.shape_cast %28 : vector<1x1x256x256xbf16> to vector<256x256xbf16>
    %cst_39 = arith.constant dense<0.000000e+00> : vector<64x256xf32>
    %30 = tpu.matmul %27, %29, %cst_39 {dimension_numbers = #tpu.dot_dimension_numbers<[1], [0], [0], [1], [0, 0, 1, 1], [], []>} : vector<64x256xbf16>, vector<256x256xbf16>, vector<64x256xf32> -> vector<64x256xf32>
    %31 = arith.addf %25, %30 : vector<64x256xf32>
    %c0_40 = arith.constant 0 : index
    %c1_41 = arith.constant 1 : index
    %c2_42 = arith.constant 2 : index
    %c0_43 = arith.constant 0 : index
    %32 = vector.load %arg6[%c0_40, %c1_41, %c2_42, %c0_43] : memref<1x10x16x256xbf16, #tpu.memory_space<vmem>>, vector<1x8x8x256xbf16>
    %33 = vector.shape_cast %32 : vector<1x8x8x256xbf16> to vector<64x256xbf16>
    %c0_44 = arith.constant 0 : index
    %c5 = arith.constant 5 : index
    %c0_45 = arith.constant 0 : index
    %c0_46 = arith.constant 0 : index
    %34 = vector.load %arg3[%c0_44, %c5, %c0_45, %c0_46] : memref<1x9x256x256xbf16, #tpu.memory_space<vmem>>, vector<1x1x256x256xbf16>
    %35 = vector.shape_cast %34 : vector<1x1x256x256xbf16> to vector<256x256xbf16>
    %cst_47 = arith.constant dense<0.000000e+00> : vector<64x256xf32>
    %36 = tpu.matmul %33, %35, %cst_47 {dimension_numbers = #tpu.dot_dimension_numbers<[1], [0], [0], [1], [0, 0, 1, 1], [], []>} : vector<64x256xbf16>, vector<256x256xbf16>, vector<64x256xf32> -> vector<64x256xf32>
    %37 = arith.addf %31, %36 : vector<64x256xf32>
    %c0_48 = arith.constant 0 : index
    %c2_49 = arith.constant 2 : index
    %c0_50 = arith.constant 0 : index
    %c0_51 = arith.constant 0 : index
    %38 = vector.load %arg6[%c0_48, %c2_49, %c0_50, %c0_51] : memref<1x10x16x256xbf16, #tpu.memory_space<vmem>>, vector<1x8x8x256xbf16>
    %39 = vector.shape_cast %38 : vector<1x8x8x256xbf16> to vector<64x256xbf16>
    %c0_52 = arith.constant 0 : index
    %c6 = arith.constant 6 : index
    %c0_53 = arith.constant 0 : index
    %c0_54 = arith.constant 0 : index
    %40 = vector.load %arg3[%c0_52, %c6, %c0_53, %c0_54] : memref<1x9x256x256xbf16, #tpu.memory_space<vmem>>, vector<1x1x256x256xbf16>
    %41 = vector.shape_cast %40 : vector<1x1x256x256xbf16> to vector<256x256xbf16>
    %cst_55 = arith.constant dense<0.000000e+00> : vector<64x256xf32>
    %42 = tpu.matmul %39, %41, %cst_55 {dimension_numbers = #tpu.dot_dimension_numbers<[1], [0], [0], [1], [0, 0, 1, 1], [], []>} : vector<64x256xbf16>, vector<256x256xbf16>, vector<64x256xf32> -> vector<64x256xf32>
    %43 = arith.addf %37, %42 : vector<64x256xf32>
    %c0_56 = arith.constant 0 : index
    %c2_57 = arith.constant 2 : index
    %c1_58 = arith.constant 1 : index
    %c0_59 = arith.constant 0 : index
    %44 = vector.load %arg6[%c0_56, %c2_57, %c1_58, %c0_59] : memref<1x10x16x256xbf16, #tpu.memory_space<vmem>>, vector<1x8x8x256xbf16>
    %45 = vector.shape_cast %44 : vector<1x8x8x256xbf16> to vector<64x256xbf16>
    %c0_60 = arith.constant 0 : index
    %c7 = arith.constant 7 : index
    %c0_61 = arith.constant 0 : index
    %c0_62 = arith.constant 0 : index
    %46 = vector.load %arg3[%c0_60, %c7, %c0_61, %c0_62] : memref<1x9x256x256xbf16, #tpu.memory_space<vmem>>, vector<1x1x256x256xbf16>
    %47 = vector.shape_cast %46 : vector<1x1x256x256xbf16> to vector<256x256xbf16>
    %cst_63 = arith.constant dense<0.000000e+00> : vector<64x256xf32>
    %48 = tpu.matmul %45, %47, %cst_63 {dimension_numbers = #tpu.dot_dimension_numbers<[1], [0], [0], [1], [0, 0, 1, 1], [], []>} : vector<64x256xbf16>, vector<256x256xbf16>, vector<64x256xf32> -> vector<64x256xf32>
    %49 = arith.addf %43, %48 : vector<64x256xf32>
    %c0_64 = arith.constant 0 : index
    %c2_65 = arith.constant 2 : index
    %c2_66 = arith.constant 2 : index
    %c0_67 = arith.constant 0 : index
    %50 = vector.load %arg6[%c0_64, %c2_65, %c2_66, %c0_67] : memref<1x10x16x256xbf16, #tpu.memory_space<vmem>>, vector<1x8x8x256xbf16>
    %51 = vector.shape_cast %50 : vector<1x8x8x256xbf16> to vector<64x256xbf16>
    %c0_68 = arith.constant 0 : index
    %c8 = arith.constant 8 : index
    %c0_69 = arith.constant 0 : index
    %c0_70 = arith.constant 0 : index
    %52 = vector.load %arg3[%c0_68, %c8, %c0_69, %c0_70] : memref<1x9x256x256xbf16, #tpu.memory_space<vmem>>, vector<1x1x256x256xbf16>
    %53 = vector.shape_cast %52 : vector<1x1x256x256xbf16> to vector<256x256xbf16>
    %cst_71 = arith.constant dense<0.000000e+00> : vector<64x256xf32>
    %54 = tpu.matmul %51, %53, %cst_71 {dimension_numbers = #tpu.dot_dimension_numbers<[1], [0], [0], [1], [0, 0, 1, 1], [], []>} : vector<64x256xbf16>, vector<256x256xbf16>, vector<64x256xf32> -> vector<64x256xf32>
    %55 = arith.addf %49, %54 : vector<64x256xf32>
    %c0_72 = arith.constant 0 : index
    %c0_73 = arith.constant 0 : index
    %c0_74 = arith.constant 0 : index
    %56 = vector.load %arg4[%c0_72, %c0_73, %c0_74] : memref<1x1x256xf32, #tpu.memory_space<vmem>>, vector<1x1x256xf32>
    %57 = vector.shape_cast %56 : vector<1x1x256xf32> to vector<1x256xf32>
    %58 = vector.broadcast %57 : vector<1x256xf32> to vector<64x256xf32>
    %59 = arith.addf %55, %58 : vector<64x256xf32>
    %c4_i32 = arith.constant 4 : i32
    %60 = arith.cmpi slt, %arg1, %c4_i32 : i32
    %61 = arith.extui %60 : i1 to i32
    %c0_i32_75 = arith.constant 0 : i32
    %62 = arith.cmpi ne, %61, %c0_i32_75 : i32
    scf.if %62 {
      %cst_78 = arith.constant 0.000000e+00 : f32
      %66 = vector.broadcast %cst_78 : f32 to vector<64x256xf32>
      %67 = arith.maximumf %59, %66 : vector<64x256xf32>
      %68 = arith.truncf %67 : vector<64x256xf32> to vector<64x256xbf16>
      %69 = vector.shape_cast %68 : vector<64x256xbf16> to vector<1x8x8x256xbf16>
      %c0_79 = arith.constant 0 : index
      %c1_80 = arith.constant 1 : index
      %c1_81 = arith.constant 1 : index
      %c0_82 = arith.constant 0 : index
      %70 = vector.load %arg6[%c0_79, %c1_80, %c1_81, %c0_82] : memref<1x10x16x256xbf16, #tpu.memory_space<vmem>>, vector<1x8x8x256xbf16>
      tpu.vector_store %arg6[%c0_79, %c1_80, %c1_81, %c0_82], %69 {strides = array<i32>} : memref<1x10x16x256xbf16, #tpu.memory_space<vmem>>, vector<1x8x8x256xbf16>,
    } else {
    }
    %c4_i32_76 = arith.constant 4 : i32
    %63 = arith.cmpi eq, %arg1, %c4_i32_76 : i32
    %64 = arith.extui %63 : i1 to i32
    %c0_i32_77 = arith.constant 0 : i32
    %65 = arith.cmpi ne, %64, %c0_i32_77 : i32
    scf.if %65 {
      %66 = vector.extract_strided_slice %59 {offsets = [0, 0], sizes = [64, 128], strides = [1, 1]} : vector<64x256xf32> to vector<64x128xf32>
      %67 = vector.shape_cast %66 : vector<64x128xf32> to vector<1x8x8x128xf32>
      %c0_78 = arith.constant 0 : index
      %c0_79 = arith.constant 0 : index
      %c0_80 = arith.constant 0 : index
      %c0_81 = arith.constant 0 : index
      %68 = vector.load %arg5[%c0_78, %c0_79, %c0_80, %c0_81] : memref<1x8x8x128xf32, #tpu.memory_space<vmem>>, vector<1x8x8x128xf32>
      tpu.vector_store %arg5[%c0_78, %c0_79, %c0_80, %c0_81], %67 {strides = array<i32>} : memref<1x8x8x128xf32, #tpu.memory_space<vmem>>, vector<1x8x8x128xf32>,
    } else {
    }
    return
  }
  func.func @transform_0(%arg0: i32, %arg1: i32) -> (i32, i32, i32, i32) {
    %c0_i32 = arith.constant 0 : i32
    %c0_i32_0 = arith.constant 0 : i32
    %c0_i32_1 = arith.constant 0 : i32
    %c0_i32_2 = arith.constant 0 : i32
    return %arg0, %c0_i32, %c0_i32_0, %c0_i32_1 : i32, i32, i32, i32
  }
  func.func @transform_1(%arg0: i32, %arg1: i32) -> (i32, i32, i32, i32) {
    %c0_i32 = arith.constant 0 : i32
    %c0_i32_0 = arith.constant 0 : i32
    %c0_i32_1 = arith.constant 0 : i32
    %c0_i32_2 = arith.constant 0 : i32
    return %arg1, %c0_i32, %c0_i32_0, %c0_i32_1 : i32, i32, i32, i32
  }
  func.func @transform_2(%arg0: i32, %arg1: i32) -> (i32, i32, i32) {
    %c0_i32 = arith.constant 0 : i32
    %c0_i32_0 = arith.constant 0 : i32
    %c0_i32_1 = arith.constant 0 : i32
    return %arg1, %c0_i32, %c0_i32_0 : i32, i32, i32
  }
  func.func @transform_3(%arg0: i32, %arg1: i32) -> (i32, i32, i32, i32) {
    %c0_i32 = arith.constant 0 : i32
    %c0_i32_0 = arith.constant 0 : i32
    %c0_i32_1 = arith.constant 0 : i32
    %c0_i32_2 = arith.constant 0 : i32
    return %arg0, %c0_i32, %c0_i32_0, %c0_i32_1 : i32, i32, i32, i32
  }
}

</mosaic_0001>

<llo_original>
// kernel: subnet_forward.1
$region0: #{subnet_forward.1}
  #allocation0 [shape = 'u32[]', space=smem, size = 0x4, offset = 0x4, fixed_abs, tag = 'smem constant byte address 0x4 - core index']
  #allocation1 [shape = 'u32[144,128]{1,0:T(1,128)}', space=vmem, size = 0x12000, scoped, tag = 'internal scratch']
  #allocation2 [shape = 'bf16[1,10,16,256]{3,2,1,0:T(8,128)(2,1)}', space=vmem, size = 0x14000, scoped, tag = 'scratch operand']
  %s0 = inlined_call_operand.vmem [shape: bf16[2,8,8,256], index: 0, kind: input, shape index: {}]
  %s1 = inlined_call_operand.vmem [shape: bf16[5,9,256,256], index: 1, kind: input, shape index: {}]
  %s2 = inlined_call_operand.vmem [shape: f32[5,1,256], index: 2, kind: input, shape index: {}]
  %s3 = inlined_call_operand.vmem [shape: f32[2,8,8,128], index: 3, kind: output, shape index: {}]
  %s4 = sld [smem:[#allocation0]]
  $region57: #{subnet_forward.1} parent=0
    _
  %s6 = ssub.s32 1, %s4
  %s7 = scalar_select 0, %s6, %s4
  loop: start=0, step=1, limit=12
  $region2: #{subnet_forward.1} parent=0 // loop_pre_header
    _
  $region3: #{subnet_forward.1} parent=0 // loop_header
    %s9 = sphi 0, %s13
    %p10 = scmp.ge.s32.totalorder %s9, 12
    %s16 = sphi 0, %s28
    %s17 = sphi 0, %s24
    %s18 = sphi 0, %s16
    %s19 = sphi 0, %s17
    %s20 = sphi 0, %s18
    %s21 = sphi 0, %s19
    %s31 = sphi 0, %s33
    %s34 = sphi 0, %s31
    %s35 = sphi 0, %s34
    %s51 = sphi 0, %s35
    %s57 = sphi 0, %s59
    %s60 = sphi 0, %s57
    %s61 = sphi 0, %s60
    %s77 = sphi 0, %s61
    %s83 = sphi 0, %s85
    %s86 = sphi 0, %s83
    %s87 = sphi 0, %s86
    %s103 = sphi 0, %s87
    %s109 = sphi 0, %s111
    %s112 = sphi 0, %s109
    %s113 = sphi 0, %s112
    %s129 = sphi 0, %s113
  $region4: #{subnet_forward.1} parent=0 // loop_header_branch
    %12 = sbr.rel (%p10) target = $region8
  $region5: #{subnet_forward.1} parent=0 // loop_body
    %s14 = ssub.s32 %s9, 1
    %s15 = ssub.s32 %s9, 2
    %s22 = sadd.s32 1, %s17
    %p23 = scmp.ge.s32.totalorder %s22, 5
    %s24 = scalar_select %p23, 0, %s22
    %s25 = sadd.s32 1, %s16
    %s26 = scalar_select %p23, %s25, %s16
    %p27 = scmp.ge.s32.totalorder %s26, 2
    %s28 = scalar_select %p27, 0, %s26
    %s29 = ssub.s32 %s16, %s28
    %p30 = scmp.eq.s32.totalorder %s29, 0
    %s32 = sadd.s32 %s31, 1
    %s33 = scalar_select %p30, %s31, %s32
    %p36 = pneg %p30
    %p37 = scmp.eq.s32.totalorder %s9, 9
    %p38 = por %p36, %p37
    %p39 = scmp.ne.s32.totalorder %s31, %s34
    %p40 = scmp.eq.s32.totalorder %s9, 0
    %p41 = por %p39, %p40
    %p42 = scmp.ne.s32.totalorder %s31, %s34
    %p43 = scmp.eq.s32.totalorder %s14, 9
    %p44 = por %p42, %p43
    %p45 = scmp.ne.s32.totalorder %s34, %s35
    %p46 = scmp.eq.s32.totalorder %s14, 0
    %p47 = por %p45, %p46
    %p48 = scmp.ne.s32.totalorder %s34, %s35
    %p49 = scmp.eq.s32.totalorder %s15, 9
    %p50 = por %p48, %p49
    %p52 = scmp.ne.s32.totalorder %s35, %s51
    %p53 = scmp.eq.s32.totalorder %s15, 0
    %p54 = por %p52, %p53
    %s55 = ssub.s32 %s17, %s24
    %p56 = scmp.eq.s32.totalorder %s55, 0
    %s58 = sadd.s32 %s57, 1
    %s59 = scalar_select %p56, %s57, %s58
    %p62 = pneg %p56
    %p63 = scmp.eq.s32.totalorder %s9, 9
    %p64 = por %p62, %p63
    %p65 = scmp.ne.s32.totalorder %s57, %s60
    %p66 = scmp.eq.s32.totalorder %s9, 0
    %p67 = por %p65, %p66
    %p68 = scmp.ne.s32.totalorder %s57, %s60
    %p69 = scmp.eq.s32.totalorder %s14, 9
    %p70 = por %p68, %p69
    %p71 = scmp.ne.s32.totalorder %s60, %s61
    %p72 = scmp.eq.s32.totalorder %s14, 0
    %p73 = por %p71, %p72
    %p74 = scmp.ne.s32.totalorder %s60, %s61
    %p75 = scmp.eq.s32.totalorder %s15, 9
    %p76 = por %p74, %p75
    %p78 = scmp.ne.s32.totalorder %s61, %s77
    %p79 = scmp.eq.s32.totalorder %s15, 0
    %p80 = por %p78, %p79
    %s81 = ssub.s32 %s17, %s24
    %p82 = scmp.eq.s32.totalorder %s81, 0
    %s84 = sadd.s32 %s83, 1
    %s85 = scalar_select %p82, %s83, %s84
    %p88 = pneg %p82
    %p89 = scmp.eq.s32.totalorder %s9, 9
    %p90 = por %p88, %p89
    %p91 = scmp.ne.s32.totalorder %s83, %s86
    %p92 = scmp.eq.s32.totalorder %s9, 0
    %p93 = por %p91, %p92
    %p94 = scmp.ne.s32.totalorder %s83, %s86
    %p95 = scmp.eq.s32.totalorder %s14, 9
    %p96 = por %p94, %p95
    %p97 = scmp.ne.s32.totalorder %s86, %s87
    %p98 = scmp.eq.s32.totalorder %s14, 0
    %p99 = por %p97, %p98
    %p100 = scmp.ne.s32.totalorder %s86, %s87
    %p101 = scmp.eq.s32.totalorder %s15, 9
    %p102 = por %p100, %p101
    %p104 = scmp.ne.s32.totalorder %s87, %s103
    %p105 = scmp.eq.s32.totalorder %s15, 0
    %p106 = por %p104, %p105
    %s107 = ssub.s32 %s16, %s28
    %p108 = scmp.eq.s32.totalorder %s107, 0
    %s110 = sadd.s32 %s109, 1
    %s111 = scalar_select %p108, %s109, %s110
    %p114 = pneg %p108
    %p115 = scmp.eq.s32.totalorder %s9, 9
    %p116 = por %p114, %p115
    %p117 = scmp.ne.s32.totalorder %s109, %s112
    %p118 = scmp.eq.s32.totalorder %s9, 0
    %p119 = por %p117, %p118
    %p120 = scmp.ne.s32.totalorder %s109, %s112
    %p121 = scmp.eq.s32.totalorder %s14, 9
    %p122 = por %p120, %p121
    %p123 = scmp.ne.s32.totalorder %s112, %s113
    %p124 = scmp.eq.s32.totalorder %s14, 0
    %p125 = por %p123, %p124
    %p126 = scmp.ne.s32.totalorder %s112, %s113
    %p127 = scmp.eq.s32.totalorder %s15, 9
    %p128 = por %p126, %p127
    %p130 = scmp.ne.s32.totalorder %s113, %s129
    %p131 = scmp.eq.s32.totalorder %s15, 0
    %p132 = por %p130, %p131
    %p133 = scmp.le.s32.totalorder 1, %s9
    %p134 = scmp.lt.s32.totalorder %s9, 11
    %p135 = pnand %p133, %p134
    %p136 = pneg %p135
    // Predicated region
    $region9: #{subnet_forward.1} parent=5 // pred_check
      _
    $region10: #{subnet_forward.1} parent=5 // pred_check_branch
      %138 = sbr.rel (%p135) target = $region12
    $region11: #{subnet_forward.1} parent=5 // pred_region
      %s139 = ssub.s32 %s9, 1
    $region12: #{subnet_forward.1} parent=5 // pred_fallthru
      _
    %p140 = scmp.lt.s32.totalorder %s9, 10
    // Predicated region
    $region13: #{subnet_forward.1} parent=5 // pred_check
      %p141 = pneg %p140
    $region14: #{subnet_forward.1} parent=5 // pred_check_branch
      %143 = sbr.rel (%p141) target = $region16
    $region15: #{subnet_forward.1} parent=5 // pred_region
      // Predicated region
      $region17: #{subnet_forward.1} parent=15 // pred_check
        %p144 = pneg %p41
      $region18: #{subnet_forward.1} parent=15 // pred_check_branch
        %146 = sbr.rel (%p144) target = $region20
      $region19: #{subnet_forward.1} parent=15 // pred_region
        %p147 = scmp.lt.s32.totalorder %s16, 1
        %s148 = scalar_select %p147, %s16, 1
        %s149 = smul.addr %s148, 16
        %s150 = smul.addr %s149, 4
        %s151 = scalar_lea.vmem %s0, %s150
      $region20: #{subnet_forward.1} parent=15 // pred_fallthru
        _
      // Predicated region
      $region21: #{subnet_forward.1} parent=15 // pred_check
        %p152 = pneg %p67
      $region22: #{subnet_forward.1} parent=15 // pred_check_branch
        %154 = sbr.rel (%p152) target = $region24
      $region23: #{subnet_forward.1} parent=15 // pred_region
        %p155 = scmp.lt.s32.totalorder %s17, 4
        %s156 = scalar_select %p155, %s17, 4
        %s157 = smul.addr %s156, 576
        %s158 = smul.addr %s157, 4
        %s159 = scalar_lea.vmem %s1, %s158
      $region24: #{subnet_forward.1} parent=15 // pred_fallthru
        _
      // Predicated region
      $region25: #{subnet_forward.1} parent=15 // pred_check
        %p160 = pneg %p93
      $region26: #{subnet_forward.1} parent=15 // pred_check_branch
        %162 = sbr.rel (%p160) target = $region28
      $region27: #{subnet_forward.1} parent=15 // pred_region
        %p163 = scmp.lt.s32.totalorder %s17, 4
        %s164 = scalar_select %p163, %s17, 4
        %s165 = smul.addr %s164, 2
        %s166 = scalar_lea.vmem %s2, %s165
      $region28: #{subnet_forward.1} parent=15 // pred_fallthru
        _
    $region16: #{subnet_forward.1} parent=5 // pred_fallthru
      _
    %p167 = scmp.le.s32.totalorder 1, %s9
    %p168 = scmp.lt.s32.totalorder %s9, 11
    %p169 = pnand %p167, %p168
    %p170 = pneg %p169
    // Predicated region
    $region29: #{subnet_forward.1} parent=5 // pred_check
      _
    $region30: #{subnet_forward.1} parent=5 // pred_check_branch
      %172 = sbr.rel (%p169) target = $region32
    $region31: #{subnet_forward.1} parent=5 // pred_region
      %s173 = ssub.s32 %s9, 1
      %p174 = scmp.lt.s32.totalorder %s18, 1
      %s175 = scalar_select %p174, %s18, 1
      %s176 = smul.addr %s175, 16
      %s177 = smul.addr %s176, 4
      %s178 = scalar_lea.vmem %s0, %s177
      %p179 = pneg %p47
      %p180 = pneg %p44
      %p181 = scmp.lt.s32.totalorder %s19, 4
      %s182 = scalar_select %p181, %s19, 4
      %s183 = smul.addr %s182, 576
      %s184 = smul.addr %s183, 4
      %s185 = scalar_lea.vmem %s1, %s184
      %p186 = pneg %p73
      %p187 = pneg %p70
      %p188 = scmp.lt.s32.totalorder %s19, 4
      %s189 = scalar_select %p188, %s19, 4
      %s190 = smul.addr %s189, 2
      %s191 = scalar_lea.vmem %s2, %s190
      %p192 = pneg %p99
      %p193 = pneg %p96
      %p194 = pneg %p125
      %p195 = pneg %p122
      %p196 = scmp.lt.s32.totalorder %s18, 1
      %s197 = scalar_select %p196, %s18, 1
      %s198 = smul.addr %s197, 8
      %s199 = smul.addr %s198, 8
      %s200 = scalar_lea.vmem %s3, %s199
      %p201 = scmp.lt.s32.totalorder %s18, 1
      %s202 = scalar_select %p201, %s18, 1
      %s203 = smul.addr %s202, 16
      %s204 = smul.addr %s203, 4
      %s205 = scalar_lea.vmem %s0, %s204
      %p206 = scmp.lt.s32.totalorder %s19, 4
      %s207 = scalar_select %p206, %s19, 4
      %s208 = smul.addr %s207, 576
      %s209 = smul.addr %s208, 4
      %s210 = scalar_lea.vmem %s1, %s209
      %p211 = scmp.lt.s32.totalorder %s19, 4
      %s212 = scalar_select %p211, %s19, 4
      %s213 = smul.addr %s212, 2
      %s214 = scalar_lea.vmem %s2, %s213
      %p215 = scmp.lt.s32.totalorder %s18, 1
      %s216 = scalar_select %p215, %s18, 1
      %s217 = smul.addr %s216, 8
      %s218 = smul.addr %s217, 8
      %s219 = scalar_lea.vmem %s3, %s218
      %p221 = scmp.eq.s32.totalorder %s19, 0
      // Predicated region
      $region33: #{subnet_forward.1} parent=31 // pred_check
        %p222 = pneg %p221
      $region34: #{subnet_forward.1} parent=31 // pred_check_branch
        %224 = sbr.rel (%p222) target = $region36
      $region35: #{subnet_forward.1} parent=31 // pred_region
        %225 = vst [vmem:[#allocation2] sm:$0xff] 0
        %226 = vst [vmem:[#allocation2 + $0x8] sm:$0xff] 0
        %227 = vst [vmem:[#allocation2 + $0x10] sm:$0xff] 0
        %228 = vst [vmem:[#allocation2 + $0x18] sm:$0xff] 0
        %229 = vst [vmem:[#allocation2 + $0x20] sm:$0xff] 0
        %230 = vst [vmem:[#allocation2 + $0x28] sm:$0xff] 0
        %231 = vst [vmem:[#allocation2 + $0x30] sm:$0xff] 0
        %232 = vst [vmem:[#allocation2 + $0x38] sm:$0xff] 0
        %233 = vst [vmem:[#allocation2 + $0x40] sm:$0xff] 0
        %234 = vst [vmem:[#allocation2 + $0x48] sm:$0xff] 0
        %235 = vst [vmem:[#allocation2 + $0x50] sm:$0xff] 0
        %236 = vst [vmem:[#allocation2 + $0x58] sm:$0xff] 0
        %237 = vst [vmem:[#allocation2 + $0x60] sm:$0xff] 0
        %238 = vst [vmem:[#allocation2 + $0x68] sm:$0xff] 0
        %239 = vst [vmem:[#allocation2 + $0x70] sm:$0xff] 0
        %240 = vst [vmem:[#allocation2 + $0x78] sm:$0xff] 0
        %241 = vst [vmem:[#allocation2 + $0x80] sm:$0xff] 0
        %242 = vst [vmem:[#allocation2 + $0x88] sm:$0xff] 0
        %243 = vst [vmem:[#allocation2 + $0x90] sm:$0xff] 0
        %244 = vst [vmem:[#allocation2 + $0x98] sm:$0xff] 0
        %v245 = vld [vmem:[%s205] sm:$0xff]
        %v246 = vld [vmem:[%s205 + $0x8] sm:$0xff]
        %v247 = vld [vmem:[%s205 + $0x10] sm:$0xff]
        %v248 = vld [vmem:[%s205 + $0x18] sm:$0xff]
        %v249 = vld [vmem:[%s205 + $0x20] sm:$0xff]
        %v250 = vld [vmem:[%s205 + $0x28] sm:$0xff]
        %v251 = vld [vmem:[%s205 + $0x30] sm:$0xff]
        %v252 = vld [vmem:[%s205 + $0x38] sm:$0xff]
        %v254 = vshrl.u32 %v245, 16
        %v256 = vrot.slane %v254, 7
        %v257 = vshll.u32 %v245, 16
        %v259 = vor.u32 %v256, %v257
        %v260 = vrot.slane %v256, 4
        %v262 = vshrl.u32 %v246, 16
        %v264 = vrot.slane %v262, 7
        %v265 = vshll.u32 %v246, 16
        %v267 = vor.u32 %v264, %v265
        %v268 = vrot.slane %v264, 4
        %v270 = vshrl.u32 %v247, 16
        %v272 = vrot.slane %v270, 7
        %v273 = vshll.u32 %v247, 16
        %v275 = vor.u32 %v272, %v273
        %v276 = vrot.slane %v272, 4
        %v278 = vshrl.u32 %v248, 16
        %v280 = vrot.slane %v278, 7
        %v281 = vshll.u32 %v248, 16
        %v283 = vor.u32 %v280, %v281
        %v284 = vrot.slane %v280, 4
        %v286 = vshrl.u32 %v249, 16
        %v288 = vrot.slane %v286, 7
        %v289 = vshll.u32 %v249, 16
        %v291 = vor.u32 %v288, %v289
        %v292 = vrot.slane %v288, 4
        %v294 = vshrl.u32 %v250, 16
        %v296 = vrot.slane %v294, 7
        %v297 = vshll.u32 %v250, 16
        %v299 = vor.u32 %v296, %v297
        %v300 = vrot.slane %v296, 4
        %v302 = vshrl.u32 %v251, 16
        %v304 = vrot.slane %v302, 7
        %v305 = vshll.u32 %v251, 16
        %v307 = vor.u32 %v304, %v305
        %v308 = vrot.slane %v304, 4
        %v310 = vshrl.u32 %v252, 16
        %v312 = vrot.slane %v310, 7
        %v313 = vshll.u32 %v252, 16
        %v315 = vor.u32 %v312, %v313
        %v316 = vrot.slane %v312, 4
        %s333 = scalar_lea.vmem [#allocation2], 16
        %vm334 = vcmask 1043456
        %vm335 = vsmask.f32 7938
        %vm336 = vmand %vm334, %vm335
        %vm337 = vcmask 1047556
        %vm338 = vsmask.f32 7954
        %vm339 = vmand %vm337, %vm338
        %vm340 = vmor %vm339, %vm336
        %v341 = vld [vmem:[%s333] sm:$0xff]
        %v342 = vsel %vm340, %v259, %v341
        %343 = vst [vmem:[%s333] sm:$0xff] %v342
        %vm344 = vcmask 1040384
        %vm345 = vsmask.f32 256
        %vm346 = vmand %vm344, %vm345
        %vm347 = vcmask 1044484
        %vm348 = vsmask.f32 4352
        %vm349 = vmand %vm347, %vm348
        %vm350 = vmor %vm349, %vm346
        %v351 = vld [vmem:[%s333 + $0x8] sm:$0x11]
        %v352 = vsel %vm350, %v260, %v351
        %353 = vst [vmem:[%s333 + $0x8] sm:$0x11] %v352
        %v354 = vld [vmem:[%s333 + $0x10] sm:$0xff]
        %v355 = vsel %vm340, %v267, %v354
        %356 = vst [vmem:[%s333 + $0x10] sm:$0xff] %v355
        %v357 = vld [vmem:[%s333 + $0x18] sm:$0x11]
        %v358 = vsel %vm350, %v268, %v357
        %359 = vst [vmem:[%s333 + $0x18] sm:$0x11] %v358
        %v360 = vld [vmem:[%s333 + $0x20] sm:$0xff]
        %v361 = vsel %vm340, %v275, %v360
        %362 = vst [vmem:[%s333 + $0x20] sm:$0xff] %v361
        %v363 = vld [vmem:[%s333 + $0x28] sm:$0x11]
        %v364 = vsel %vm350, %v276, %v363
        %365 = vst [vmem:[%s333 + $0x28] sm:$0x11] %v364
        %v366 = vld [vmem:[%s333 + $0x30] sm:$0xff]
        %v367 = vsel %vm340, %v283, %v366
        %368 = vst [vmem:[%s333 + $0x30] sm:$0xff] %v367
        %v369 = vld [vmem:[%s333 + $0x38] sm:$0x11]
        %v370 = vsel %vm350, %v284, %v369
        %371 = vst [vmem:[%s333 + $0x38] sm:$0x11] %v370
        %v372 = vld [vmem:[%s333 + $0x40] sm:$0xff]
        %v373 = vsel %vm340, %v291, %v372
        %374 = vst [vmem:[%s333 + $0x40] sm:$0xff] %v373
        %v375 = vld [vmem:[%s333 + $0x48] sm:$0x11]
        %v376 = vsel %vm350, %v292, %v375
        %377 = vst [vmem:[%s333 + $0x48] sm:$0x11] %v376
        %v378 = vld [vmem:[%s333 + $0x50] sm:$0xff]
        %v379 = vsel %vm340, %v299, %v378
        %380 = vst [vmem:[%s333 + $0x50] sm:$0xff] %v379
        %v381 = vld [vmem:[%s333 + $0x58] sm:$0x11]
        %v382 = vsel %vm350, %v300, %v381
        %383 = vst [vmem:[%s333 + $0x58] sm:$0x11] %v382
        %v384 = vld [vmem:[%s333 + $0x60] sm:$0xff]
        %v385 = vsel %vm340, %v307, %v384
        %386 = vst [vmem:[%s333 + $0x60] sm:$0xff] %v385
        %v387 = vld [vmem:[%s333 + $0x68] sm:$0x11]
        %v388 = vsel %vm350, %v308, %v387
        %389 = vst [vmem:[%s333 + $0x68] sm:$0x11] %v388
        %v390 = vld [vmem:[%s333 + $0x70] sm:$0xff]
        %v391 = vsel %vm340, %v315, %v390
        %392 = vst [vmem:[%s333 + $0x70] sm:$0xff] %v391
        %v393 = vld [vmem:[%s333 + $0x78] sm:$0x11]
        %v394 = vsel %vm350, %v316, %v393
        %395 = vst [vmem:[%s333 + $0x78] sm:$0x11] %v394
      $region36: #{subnet_forward.1} parent=31 // pred_fallthru
        _
      %v396 = vld [vmem:[#allocation2] sm:$0xff]
      %v397 = vld [vmem:[#allocation2 + $0x10] sm:$0xff]
      %v398 = vld [vmem:[#allocation2 + $0x20] sm:$0xff]
      %v399 = vld [vmem:[#allocation2 + $0x30] sm:$0xff]
      %v400 = vld [vmem:[#allocation2 + $0x40] sm:$0xff]
      %v401 = vld [vmem:[#allocation2 + $0x50] sm:$0xff]
      %v402 = vld [vmem:[#allocation2 + $0x60] sm:$0xff]
      %v403 = vld [vmem:[#allocation2 + $0x70] sm:$0xff]
      %v404 = vld [vmem:[%s210] sm:$0xff]
      %v405 = vld [vmem:[%s210 + $0x8] sm:$0xff]
      %v406 = vld [vmem:[%s210 + $0x10] sm:$0xff]
      %v407 = vld [vmem:[%s210 + $0x18] sm:$0xff]
      %v408 = vld [vmem:[%s210 + $0x20] sm:$0xff]
      %v409 = vld [vmem:[%s210 + $0x28] sm:$0xff]
      %v410 = vld [vmem:[%s210 + $0x30] sm:$0xff]
      %v411 = vld [vmem:[%s210 + $0x38] sm:$0xff]
      %v412 = vld [vmem:[%s210 + $0x40] sm:$0xff]
      %v413 = vld [vmem:[%s210 + $0x48] sm:$0xff]
      %v414 = vld [vmem:[%s210 + $0x50] sm:$0xff]
      %v415 = vld [vmem:[%s210 + $0x58] sm:$0xff]
      %v416 = vld [vmem:[%s210 + $0x60] sm:$0xff]
      %v417 = vld [vmem:[%s210 + $0x68] sm:$0xff]
      %v418 = vld [vmem:[%s210 + $0x70] sm:$0xff]
      %v419 = vld [vmem:[%s210 + $0x78] sm:$0xff]
      %v420 = vld [vmem:[%s210 + $0x80] sm:$0xff]
      %v421 = vld [vmem:[%s210 + $0x88] sm:$0xff]
      %v422 = vld [vmem:[%s210 + $0x90] sm:$0xff]
      %v423 = vld [vmem:[%s210 + $0x98] sm:$0xff]
      %v424 = vld [vmem:[%s210 + $0xa0] sm:$0xff]
      %v425 = vld [vmem:[%s210 + $0xa8] sm:$0xff]
      %v426 = vld [vmem:[%s210 + $0xb0] sm:$0xff]
      %v427 = vld [vmem:[%s210 + $0xb8] sm:$0xff]
      %v428 = vld [vmem:[%s210 + $0xc0] sm:$0xff]
      %v429 = vld [vmem:[%s210 + $0xc8] sm:$0xff]
      %v430 = vld [vmem:[%s210 + $0xd0] sm:$0xff]
      %v431 = vld [vmem:[%s210 + $0xd8] sm:$0xff]
      %v432 = vld [vmem:[%s210 + $0xe0] sm:$0xff]
      %v433 = vld [vmem:[%s210 + $0xe8] sm:$0xff]
      %v434 = vld [vmem:[%s210 + $0xf0] sm:$0xff]
      %v435 = vld [vmem:[%s210 + $0xf8] sm:$0xff]
      %v436 = vld [vmem:[#allocation2 + $0x8] sm:$0x11]
      %v437 = vld [vmem:[#allocation2 + $0x18] sm:$0x11]
      %v438 = vld [vmem:[#allocation2 + $0x28] sm:$0x11]
      %v439 = vld [vmem:[#allocation2 + $0x38] sm:$0x11]
      %v440 = vld [vmem:[#allocation2 + $0x48] sm:$0x11]
      %v441 = vld [vmem:[#allocation2 + $0x58] sm:$0x11]
      %v442 = vld [vmem:[#allocation2 + $0x68] sm:$0x11]
      %v443 = vld [vmem:[#allocation2 + $0x78] sm:$0x11]
      %vm444 = vsmask.f32 3328
      %vm445 = vsmask.f32 7440
      %vm446 = vmor %vm444, %vm445
      %v448 = vshrl.u32 %v396, 16
      %v450 = vrot.slane %v448, 4
      %v451 = vshll.u32 %v396, 16
      %v453 = vrot.slane %v451, 5
      %v454 = vor.u32 %v450, %v453
      %v455 = vrot.slane %v454, 4
      %v457 = vshll.u32 %v436, 16
      %v459 = vrot.slane %v457, 5
      %v460 = vsel %vm446, %v455, %v459
      %v462 = vshrl.u32 %v397, 16
      %v464 = vrot.slane %v462, 4
      %v465 = vshll.u32 %v397, 16
      %v467 = vrot.slane %v465, 5
      %v468 = vor.u32 %v464, %v467
      %v469 = vrot.slane %v468, 4
      %v471 = vshll.u32 %v437, 16
      %v473 = vrot.slane %v471, 5
      %v474 = vsel %vm446, %v469, %v473
      %v476 = vshrl.u32 %v398, 16
      %v478 = vrot.slane %v476, 4
      %v479 = vshll.u32 %v398, 16
      %v481 = vrot.slane %v479, 5
      %v482 = vor.u32 %v478, %v481
      %v483 = vrot.slane %v482, 4
      %v485 = vshll.u32 %v438, 16
      %v487 = vrot.slane %v485, 5
      %v488 = vsel %vm446, %v483, %v487
      %v490 = vshrl.u32 %v399, 16
      %v492 = vrot.slane %v490, 4
      %v493 = vshll.u32 %v399, 16
      %v495 = vrot.slane %v493, 5
      %v496 = vor.u32 %v492, %v495
      %v497 = vrot.slane %v496, 4
      %v499 = vshll.u32 %v439, 16
      %v501 = vrot.slane %v499, 5
      %v502 = vsel %vm446, %v497, %v501
      %v504 = vshrl.u32 %v400, 16
      %v506 = vrot.slane %v504, 4
      %v507 = vshll.u32 %v400, 16
      %v509 = vrot.slane %v507, 5
      %v510 = vor.u32 %v506, %v509
      %v511 = vrot.slane %v510, 4
      %v513 = vshll.u32 %v440, 16
      %v515 = vrot.slane %v513, 5
      %v516 = vsel %vm446, %v511, %v515
      %v518 = vshrl.u32 %v401, 16
      %v520 = vrot.slane %v518, 4
      %v521 = vshll.u32 %v401, 16
      %v523 = vrot.slane %v521, 5
      %v524 = vor.u32 %v520, %v523
      %v525 = vrot.slane %v524, 4
      %v527 = vshll.u32 %v441, 16
      %v529 = vrot.slane %v527, 5
      %v530 = vsel %vm446, %v525, %v529
      %v532 = vshrl.u32 %v402, 16
      %v534 = vrot.slane %v532, 4
      %v535 = vshll.u32 %v402, 16
      %v537 = vrot.slane %v535, 5
      %v538 = vor.u32 %v534, %v537
      %v539 = vrot.slane %v538, 4
      %v541 = vshll.u32 %v442, 16
      %v543 = vrot.slane %v541, 5
      %v544 = vsel %vm446, %v539, %v543
      %v546 = vshrl.u32 %v403, 16
      %v548 = vrot.slane %v546, 4
      %v549 = vshll.u32 %v403, 16
      %v551 = vrot.slane %v549, 5
      %v552 = vor.u32 %v548, %v551
      %v553 = vrot.slane %v552, 4
      %v555 = vshll.u32 %v443, 16
      %v557 = vrot.slane %v555, 5
      %v558 = vsel %vm446, %v553, %v557
      %s559 = scalar_lea.vmem %s210, 256
      %v560 = vld [vmem:[%s559] sm:$0xff]
      %v561 = vld [vmem:[%s559 + $0x8] sm:$0xff]
      %v562 = vld [vmem:[%s559 + $0x10] sm:$0xff]
      %v563 = vld [vmem:[%s559 + $0x18] sm:$0xff]
      %v564 = vld [vmem:[%s559 + $0x20] sm:$0xff]
      %v565 = vld [vmem:[%s559 + $0x28] sm:$0xff]
      %v566 = vld [vmem:[%s559 + $0x30] sm:$0xff]
      %v567 = vld [vmem:[%s559 + $0x38] sm:$0xff]
      %v568 = vld [vmem:[%s559 + $0x40] sm:$0xff]
      %v569 = vld [vmem:[%s559 + $0x48] sm:$0xff]
      %v570 = vld [vmem:[%s559 + $0x50] sm:$0xff]
      %v571 = vld [vmem:[%s559 + $0x58] sm:$0xff]
      %v572 = vld [vmem:[%s559 + $0x60] sm:$0xff]
      %v573 = vld [vmem:[%s559 + $0x68] sm:$0xff]
      %v574 = vld [vmem:[%s559 + $0x70] sm:$0xff]
      %v575 = vld [vmem:[%s559 + $0x78] sm:$0xff]
      %v576 = vld [vmem:[%s559 + $0x80] sm:$0xff]
      %v577 = vld [vmem:[%s559 + $0x88] sm:$0xff]
      %v578 = vld [vmem:[%s559 + $0x90] sm:$0xff]
      %v579 = vld [vmem:[%s559 + $0x98] sm:$0xff]
      %v580 = vld [vmem:[%s559 + $0xa0] sm:$0xff]
      %v581 = vld [vmem:[%s559 + $0xa8] sm:$0xff]
      %v582 = vld [vmem:[%s559 + $0xb0] sm:$0xff]
      %v583 = vld [vmem:[%s559 + $0xb8] sm:$0xff]
      %v584 = vld [vmem:[%s559 + $0xc0] sm:$0xff]
      %v585 = vld [vmem:[%s559 + $0xc8] sm:$0xff]
      %v586 = vld [vmem:[%s559 + $0xd0] sm:$0xff]
      %v587 = vld [vmem:[%s559 + $0xd8] sm:$0xff]
      %v588 = vld [vmem:[%s559 + $0xe0] sm:$0xff]
      %v589 = vld [vmem:[%s559 + $0xe8] sm:$0xff]
      %v590 = vld [vmem:[%s559 + $0xf0] sm:$0xff]
      %v591 = vld [vmem:[%s559 + $0xf8] sm:$0xff]
      %v592 = vunpack.c.l.b16 %v460
      %v593 = vunpack.c.h.b16 %v460
      %v594 = vunpack.c.l.b16 %v474
      %v595 = vunpack.c.h.b16 %v474
      %v596 = vunpack.c.l.b16 %v488
      %v597 = vunpack.c.h.b16 %v488
      %v598 = vunpack.c.l.b16 %v502
      %v599 = vunpack.c.h.b16 %v502
      %v600 = vunpack.c.l.b16 %v516
      %v601 = vunpack.c.h.b16 %v516
      %v602 = vunpack.c.l.b16 %v530
      %v603 = vunpack.c.h.b16 %v530
      %v604 = vunpack.c.l.b16 %v544
      %v605 = vunpack.c.h.b16 %v544
      %v606 = vunpack.c.l.b16 %v558
      %v607 = vunpack.c.h.b16 %v558
      %v608 = vpack.c.b16 %v594, %v592
      %v609 = vpack.c.b16 %v595, %v593
      %v610 = vpack.c.b16 %v598, %v596
      %v611 = vpack.c.b16 %v599, %v597
      %v612 = vpack.c.b16 %v602, %v600
      %v613 = vpack.c.b16 %v603, %v601
      %v614 = vpack.c.b16 %v606, %v604
      %v615 = vpack.c.b16 %v607, %v605
      %v656 = vunpack.c.l.b16 %v560
      %v657 = vunpack.c.h.b16 %v560
      %v658 = vunpack.c.l.b16 %v561
      %v659 = vunpack.c.h.b16 %v561
      %v660 = vunpack.c.l.b16 %v562
      %v661 = vunpack.c.h.b16 %v562
      %v662 = vunpack.c.l.b16 %v563
      %v663 = vunpack.c.h.b16 %v563
      %v664 = vunpack.c.l.b16 %v564
      %v665 = vunpack.c.h.b16 %v564
      %v666 = vunpack.c.l.b16 %v565
      %v667 = vunpack.c.h.b16 %v565
      %v668 = vunpack.c.l.b16 %v566
      %v669 = vunpack.c.h.b16 %v566
      %v670 = vunpack.c.l.b16 %v567
      %v671 = vunpack.c.h.b16 %v567
      %v672 = vunpack.c.l.b16 %v568
      %v673 = vunpack.c.h.b16 %v568
      %v674 = vunpack.c.l.b16 %v569
      %v675 = vunpack.c.h.b16 %v569
      %v676 = vunpack.c.l.b16 %v570
      %v677 = vunpack.c.h.b16 %v570
      %v678 = vunpack.c.l.b16 %v571
      %v679 = vunpack.c.h.b16 %v571
      %v680 = vunpack.c.l.b16 %v572
      %v681 = vunpack.c.h.b16 %v572
      %v682 = vunpack.c.l.b16 %v573
      %v683 = vunpack.c.h.b16 %v573
      %v684 = vunpack.c.l.b16 %v574
      %v685 = vunpack.c.h.b16 %v574
      %v686 = vunpack.c.l.b16 %v575
      %v687 = vunpack.c.h.b16 %v575
      %v688 = vunpack.c.l.b16 %v576
      %v689 = vunpack.c.h.b16 %v576
      %v690 = vunpack.c.l.b16 %v577
      %v691 = vunpack.c.h.b16 %v577
      %v692 = vunpack.c.l.b16 %v578
      %v693 = vunpack.c.h.b16 %v578
      %v694 = vunpack.c.l.b16 %v579
      %v695 = vunpack.c.h.b16 %v579
      %v696 = vunpack.c.l.b16 %v580
      %v697 = vunpack.c.h.b16 %v580
      %v698 = vunpack.c.l.b16 %v581
      %v699 = vunpack.c.h.b16 %v581
      %v700 = vunpack.c.l.b16 %v582
      %v701 = vunpack.c.h.b16 %v582
      %v702 = vunpack.c.l.b16 %v583
      %v703 = vunpack.c.h.b16 %v583
      %v704 = vunpack.c.l.b16 %v584
      %v705 = vunpack.c.h.b16 %v584
      %v706 = vunpack.c.l.b16 %v585
      %v707 = vunpack.c.h.b16 %v585
      %v708 = vunpack.c.l.b16 %v586
      %v709 = vunpack.c.h.b16 %v586
      %v710 = vunpack.c.l.b16 %v587
      %v711 = vunpack.c.h.b16 %v587
      %v712 = vunpack.c.l.b16 %v588
      %v713 = vunpack.c.h.b16 %v588
      %v714 = vunpack.c.l.b16 %v589
      %v715 = vunpack.c.h.b16 %v589
      %v716 = vunpack.c.l.b16 %v590
      %v717 = vunpack.c.h.b16 %v590
      %v718 = vunpack.c.l.b16 %v591
      %v719 = vunpack.c.h.b16 %v591
      %v720 = vpack.c.b16 %v658, %v656
      %v721 = vpack.c.b16 %v659, %v657
      %v722 = vpack.c.b16 %v662, %v660
      %v723 = vpack.c.b16 %v663, %v661
      %v724 = vpack.c.b16 %v666, %v664
      %v725 = vpack.c.b16 %v667, %v665
      %v726 = vpack.c.b16 %v670, %v668
      %v727 = vpack.c.b16 %v671, %v669
      %v728 = vpack.c.b16 %v674, %v672
      %v729 = vpack.c.b16 %v675, %v673
      %v730 = vpack.c.b16 %v678, %v676
      %v731 = vpack.c.b16 %v679, %v677
      %v732 = vpack.c.b16 %v682, %v680
      %v733 = vpack.c.b16 %v683, %v681
      %v734 = vpack.c.b16 %v686, %v684
      %v735 = vpack.c.b16 %v687, %v685
      %v736 = vpack.c.b16 %v690, %v688
      %v737 = vpack.c.b16 %v691, %v689
      %v738 = vpack.c.b16 %v694, %v692
      %v739 = vpack.c.b16 %v695, %v693
      %v740 = vpack.c.b16 %v698, %v696
      %v741 = vpack.c.b16 %v699, %v697
      %v742 = vpack.c.b16 %v702, %v700
      %v743 = vpack.c.b16 %v703, %v701
      %v744 = vpack.c.b16 %v706, %v704
      %v745 = vpack.c.b16 %v707, %v705
      %v746 = vpack.c.b16 %v710, %v708
      %v747 = vpack.c.b16 %v711, %v709
      %v748 = vpack.c.b16 %v714, %v712
      %v749 = vpack.c.b16 %v715, %v713
      %v750 = vpack.c.b16 %v718, %v716
      %v751 = vpack.c.b16 %v719, %v717
      %784 = vmatprep.subr.bf16.mxu0 %v735
      %785 = vmatpush1.bf16.msra.mxu0 %v734
      %786 = vmatprep.subr.bf16.mxu0 %v733
      %787 = vmatpush1.bf16.msra.mxu0 %v732
      %788 = vmatprep.subr.bf16.mxu0 %v731
      %789 = vmatpush1.bf16.msra.mxu0 %v730
      %790 = vmatprep.subr.bf16.mxu0 %v729
      %791 = vmatpush1.bf16.msra.mxu0 %v728
      %792 = vmatprep.subr.bf16.mxu0 %v727
      %793 = vmatpush1.bf16.msra.mxu0 %v726
      %794 = vmatprep.subr.bf16.mxu0 %v725
      %795 = vmatpush1.bf16.msra.mxu0 %v724
      %796 = vmatprep.subr.bf16.mxu0 %v723
      %797 = vmatpush1.bf16.msra.mxu0 %v722
      %798 = vmatprep.subr.bf16.mxu0 %v721
      %799 = vmatpush1.bf16.msra.mxu0 %v720
      %800 = vmatprep.subr.bf16.mxu0 %v751
      %801 = vmatpush2.bf16.msra.mxu0 %v750
      %802 = vmatprep.subr.bf16.mxu0 %v749
      %803 = vmatpush2.bf16.msra.mxu0 %v748
      %804 = vmatprep.subr.bf16.mxu0 %v747
      %805 = vmatpush2.bf16.msra.mxu0 %v746
      %806 = vmatprep.subr.bf16.mxu0 %v745
      %807 = vmatpush2.bf16.msra.mxu0 %v744
      %808 = vmatprep.subr.bf16.mxu0 %v743
      %809 = vmatpush2.bf16.msra.mxu0 %v742
      %810 = vmatprep.subr.bf16.mxu0 %v741
      %811 = vmatpush2.bf16.msra.mxu0 %v740
      %812 = vmatprep.subr.bf16.mxu0 %v739
      %813 = vmatpush2.bf16.msra.mxu0 %v738
      %814 = vmatprep.subr.bf16.mxu0 %v737
      %815 = vmatpush2.bf16.msra.mxu0 %v736
      %816 = vmatprep.mubr.bf16.mxu0 %v609
      %817 = vmatmul.mubr.bf16.gmra.mxu0 %v608
      %v818 = vpop.f32.mrf.mxu0
      %v819 = vadd.f32 0.0, %v818
      %v820 = vpop.f32.mrf.mxu0
      %v821 = vadd.f32 0.0, %v820
      %v822 = vpop.f32.mrf.mxu0
      %v823 = vadd.f32 0.0, %v822
      %v824 = vpop.f32.mrf.mxu0
      %v825 = vadd.f32 0.0, %v824
      %826 = vmatprep.mubr.bf16.mxu0 %v611
      %827 = vmatmul.mubr.bf16.gmra.mxu0 %v610
      %v828 = vpop.f32.mrf.mxu0
      %v829 = vadd.f32 0.0, %v828
      %v830 = vpop.f32.mrf.mxu0
      %v831 = vadd.f32 0.0, %v830
      %v832 = vpop.f32.mrf.mxu0
      %v833 = vadd.f32 0.0, %v832
      %v834 = vpop.f32.mrf.mxu0
      %v835 = vadd.f32 0.0, %v834
      %836 = vmatprep.mubr.bf16.mxu0 %v613
      %837 = vmatmul.mubr.bf16.gmra.mxu0 %v612
      %v838 = vpop.f32.mrf.mxu0
      %v839 = vadd.f32 0.0, %v838
      %v840 = vpop.f32.mrf.mxu0
      %v841 = vadd.f32 0.0, %v840
      %v842 = vpop.f32.mrf.mxu0
      %v843 = vadd.f32 0.0, %v842
      %v844 = vpop.f32.mrf.mxu0
      %v845 = vadd.f32 0.0, %v844
      %846 = vmatprep.mubr.bf16.mxu0 %v615
      %847 = vmatmul.mubr.bf16.gmra.mxu0 %v614
      %v848 = vpop.f32.mrf.mxu0
      %v849 = vadd.f32 0.0, %v848
      %v850 = vpop.f32.mrf.mxu0
      %v851 = vadd.f32 0.0, %v850
      %v852 = vpop.f32.mrf.mxu0
      %v853 = vadd.f32 0.0, %v852
      %v854 = vpop.f32.mrf.mxu0
      %v855 = vadd.f32 0.0, %v854
      %856 = vdwg.mxu0
      %v865 = vunpack.c.l.b16 %v396
      %v866 = vunpack.c.h.b16 %v396
      %v867 = vunpack.c.l.b16 %v397
      %v868 = vunpack.c.h.b16 %v397
      %v869 = vunpack.c.l.b16 %v398
      %v870 = vunpack.c.h.b16 %v398
      %v871 = vunpack.c.l.b16 %v399
      %v872 = vunpack.c.h.b16 %v399
      %v873 = vunpack.c.l.b16 %v400
      %v874 = vunpack.c.h.b16 %v400
      %v875 = vunpack.c.l.b16 %v401
      %v876 = vunpack.c.h.b16 %v401
      %v877 = vunpack.c.l.b16 %v402
      %v878 = vunpack.c.h.b16 %v402
      %v879 = vunpack.c.l.b16 %v403
      %v880 = vunpack.c.h.b16 %v403
      %v881 = vpack.c.b16 %v867, %v865
      %v882 = vpack.c.b16 %v868, %v866
      %v883 = vpack.c.b16 %v871, %v869
      %v884 = vpack.c.b16 %v872, %v870
      %v885 = vpack.c.b16 %v875, %v873
      %v886 = vpack.c.b16 %v876, %v874
      %v887 = vpack.c.b16 %v879, %v877
      %v888 = vpack.c.b16 %v880, %v878
      %v929 = vunpack.c.l.b16 %v404
      %v930 = vunpack.c.h.b16 %v404
      %v931 = vunpack.c.l.b16 %v405
      %v932 = vunpack.c.h.b16 %v405
      %v933 = vunpack.c.l.b16 %v406
      %v934 = vunpack.c.h.b16 %v406
      %v935 = vunpack.c.l.b16 %v407
      %v936 = vunpack.c.h.b16 %v407
      %v937 = vunpack.c.l.b16 %v408
      %v938 = vunpack.c.h.b16 %v408
      %v939 = vunpack.c.l.b16 %v409
      %v940 = vunpack.c.h.b16 %v409
      %v941 = vunpack.c.l.b16 %v410
      %v942 = vunpack.c.h.b16 %v410
      %v943 = vunpack.c.l.b16 %v411
      %v944 = vunpack.c.h.b16 %v411
      %v945 = vunpack.c.l.b16 %v412
      %v946 = vunpack.c.h.b16 %v412
      %v947 = vunpack.c.l.b16 %v413
      %v948 = vunpack.c.h.b16 %v413
      %v949 = vunpack.c.l.b16 %v414
      %v950 = vunpack.c.h.b16 %v414
      %v951 = vunpack.c.l.b16 %v415
      %v952 = vunpack.c.h.b16 %v415
      %v953 = vunpack.c.l.b16 %v416
      %v954 = vunpack.c.h.b16 %v416
      %v955 = vunpack.c.l.b16 %v417
      %v956 = vunpack.c.h.b16 %v417
      %v957 = vunpack.c.l.b16 %v418
      %v958 = vunpack.c.h.b16 %v418
      %v959 = vunpack.c.l.b16 %v419
      %v960 = vunpack.c.h.b16 %v419
      %v961 = vunpack.c.l.b16 %v420
      %v962 = vunpack.c.h.b16 %v420
      %v963 = vunpack.c.l.b16 %v421
      %v964 = vunpack.c.h.b16 %v421
      %v965 = vunpack.c.l.b16 %v422
      %v966 = vunpack.c.h.b16 %v422
      %v967 = vunpack.c.l.b16 %v423
      %v968 = vunpack.c.h.b16 %v423
      %v969 = vunpack.c.l.b16 %v424
      %v970 = vunpack.c.h.b16 %v424
      %v971 = vunpack.c.l.b16 %v425
      %v972 = vunpack.c.h.b16 %v425
      %v973 = vunpack.c.l.b16 %v426
      %v974 = vunpack.c.h.b16 %v426
      %v975 = vunpack.c.l.b16 %v427
      %v976 = vunpack.c.h.b16 %v427
      %v977 = vunpack.c.l.b16 %v428
      %v978 = vunpack.c.h.b16 %v428
      %v979 = vunpack.c.l.b16 %v429
      %v980 = vunpack.c.h.b16 %v429
      %v981 = vunpack.c.l.b16 %v430
      %v982 = vunpack.c.h.b16 %v430
      %v983 = vunpack.c.l.b16 %v431
      %v984 = vunpack.c.h.b16 %v431
      %v985 = vunpack.c.l.b16 %v432
      %v986 = vunpack.c.h.b16 %v432
      %v987 = vunpack.c.l.b16 %v433
      %v988 = vunpack.c.h.b16 %v433
      %v989 = vunpack.c.l.b16 %v434
      %v990 = vunpack.c.h.b16 %v434
      %v991 = vunpack.c.l.b16 %v435
      %v992 = vunpack.c.h.b16 %v435
      %v993 = vpack.c.b16 %v931, %v929
      %v994 = vpack.c.b16 %v932, %v930
      %v995 = vpack.c.b16 %v935, %v933
      %v996 = vpack.c.b16 %v936, %v934
      %v997 = vpack.c.b16 %v939, %v937
      %v998 = vpack.c.b16 %v940, %v938
      %v999 = vpack.c.b16 %v943, %v941
      %v1000 = vpack.c.b16 %v944, %v942
      %v1001 = vpack.c.b16 %v947, %v945
      %v1002 = vpack.c.b16 %v948, %v946
      %v1003 = vpack.c.b16 %v951, %v949
      %v1004 = vpack.c.b16 %v952, %v950
      %v1005 = vpack.c.b16 %v955, %v953
      %v1006 = vpack.c.b16 %v956, %v954
      %v1007 = vpack.c.b16 %v959, %v957
      %v1008 = vpack.c.b16 %v960, %v958
      %v1009 = vpack.c.b16 %v963, %v961
      %v1010 = vpack.c.b16 %v964, %v962
      %v1011 = vpack.c.b16 %v967, %v965
      %v1012 = vpack.c.b16 %v968, %v966
      %v1013 = vpack.c.b16 %v971, %v969
      %v1014 = vpack.c.b16 %v972, %v970
      %v1015 = vpack.c.b16 %v975, %v973
      %v1016 = vpack.c.b16 %v976, %v974
      %v1017 = vpack.c.b16 %v979, %v977
      %v1018 = vpack.c.b16 %v980, %v978
      %v1019 = vpack.c.b16 %v983, %v981
      %v1020 = vpack.c.b16 %v984, %v982
      %v1021 = vpack.c.b16 %v987, %v985
      %v1022 = vpack.c.b16 %v988, %v986
      %v1023 = vpack.c.b16 %v991, %v989
      %v1024 = vpack.c.b16 %v992, %v990
      %1057 = vmatprep.subr.bf16.mxu0 %v1008
      %1058 = vmatpush1.bf16.msra.mxu0 %v1007
      %1059 = vmatprep.subr.bf16.mxu0 %v1006
      %1060 = vmatpush1.bf16.msra.mxu0 %v1005
      %1061 = vmatprep.subr.bf16.mxu0 %v1004
      %1062 = vmatpush1.bf16.msra.mxu0 %v1003
      %1063 = vmatprep.subr.bf16.mxu0 %v1002
      %1064 = vmatpush1.bf16.msra.mxu0 %v1001
      %1065 = vmatprep.subr.bf16.mxu0 %v1000
      %1066 = vmatpush1.bf16.msra.mxu0 %v999
      %1067 = vmatprep.subr.bf16.mxu0 %v998
      %1068 = vmatpush1.bf16.msra.mxu0 %v997
      %1069 = vmatprep.subr.bf16.mxu0 %v996
      %1070 = vmatpush1.bf16.msra.mxu0 %v995
      %1071 = vmatprep.subr.bf16.mxu0 %v994
      %1072 = vmatpush1.bf16.msra.mxu0 %v993
      %1073 = vmatprep.subr.bf16.mxu0 %v1024
      %1074 = vmatpush2.bf16.msra.mxu0 %v1023
      %1075 = vmatprep.subr.bf16.mxu0 %v1022
      %1076 = vmatpush2.bf16.msra.mxu0 %v1021
      %1077 = vmatprep.subr.bf16.mxu0 %v1020
      %1078 = vmatpush2.bf16.msra.mxu0 %v1019
      %1079 = vmatprep.subr.bf16.mxu0 %v1018
      %1080 = vmatpush2.bf16.msra.mxu0 %v1017
      %1081 = vmatprep.subr.bf16.mxu0 %v1016
      %1082 = vmatpush2.bf16.msra.mxu0 %v1015
      %1083 = vmatprep.subr.bf16.mxu0 %v1014
      %1084 = vmatpush2.bf16.msra.mxu0 %v1013
      %1085 = vmatprep.subr.bf16.mxu0 %v1012
      %1086 = vmatpush2.bf16.msra.mxu0 %v1011
      %1087 = vmatprep.subr.bf16.mxu0 %v1010
      %1088 = vmatpush2.bf16.msra.mxu0 %v1009
      %1089 = vmatprep.mubr.bf16.mxu0 %v882
      %1090 = vmatmul.mubr.bf16.gmra.mxu0 %v881
      %v1091 = vpop.f32.mrf.mxu0
      %v1092 = vadd.f32 %v819, %v1091
      %v1093 = vpop.f32.mrf.mxu0
      %v1094 = vadd.f32 %v821, %v1093
      %v1095 = vpop.f32.mrf.mxu0
      %v1096 = vadd.f32 %v823, %v1095
      %v1097 = vpop.f32.mrf.mxu0
      %v1098 = vadd.f32 %v825, %v1097
      %1099 = vmatprep.mubr.bf16.mxu0 %v884
      %1100 = vmatmul.mubr.bf16.gmra.mxu0 %v883
      %v1101 = vpop.f32.mrf.mxu0
      %v1102 = vadd.f32 %v829, %v1101
      %v1103 = vpop.f32.mrf.mxu0
      %v1104 = vadd.f32 %v831, %v1103
      %v1105 = vpop.f32.mrf.mxu0
      %v1106 = vadd.f32 %v833, %v1105
      %v1107 = vpop.f32.mrf.mxu0
      %v1108 = vadd.f32 %v835, %v1107
      %1109 = vmatprep.mubr.bf16.mxu0 %v886
      %1110 = vmatmul.mubr.bf16.gmra.mxu0 %v885
      %v1111 = vpop.f32.mrf.mxu0
      %v1112 = vadd.f32 %v839, %v1111
      %v1113 = vpop.f32.mrf.mxu0
      %v1114 = vadd.f32 %v841, %v1113
      %v1115 = vpop.f32.mrf.mxu0
      %v1116 = vadd.f32 %v843, %v1115
      %v1117 = vpop.f32.mrf.mxu0
      %v1118 = vadd.f32 %v845, %v1117
      %1119 = vmatprep.mubr.bf16.mxu0 %v888
      %1120 = vmatmul.mubr.bf16.gmra.mxu0 %v887
      %v1121 = vpop.f32.mrf.mxu0
      %v1122 = vadd.f32 %v849, %v1121
      %v1123 = vpop.f32.mrf.mxu0
      %v1124 = vadd.f32 %v851, %v1123
      %v1125 = vpop.f32.mrf.mxu0
      %v1126 = vadd.f32 %v853, %v1125
      %v1127 = vpop.f32.mrf.mxu0
      %v1128 = vadd.f32 %v855, %v1127
      %1129 = vdwg.mxu0
      %v1130 = vld [vmem:[#allocation2] sm:$0xee]
      %v1131 = vld [vmem:[#allocation2 + $0x10] sm:$0xee]
      %v1132 = vld [vmem:[#allocation2 + $0x20] sm:$0xee]
      %v1133 = vld [vmem:[#allocation2 + $0x30] sm:$0xee]
      %v1134 = vld [vmem:[#allocation2 + $0x40] sm:$0xee]
      %v1135 = vld [vmem:[#allocation2 + $0x50] sm:$0xee]
      %v1136 = vld [vmem:[#allocation2 + $0x60] sm:$0xee]
      %v1137 = vld [vmem:[#allocation2 + $0x70] sm:$0xee]
      %vm1154 = vcmask 1042432
      %vm1155 = vcmask 1046532
      %vm1156 = vmor %vm1154, %vm1155
      %v1157 = vrot.slane %v1130, 5
      %v1158 = vrot.slane %v1157, 4
      %v1159 = vrot.slane %v436, 5
      %v1160 = vsel %vm1156, %v1158, %v1159
      %v1161 = vrot.slane %v1131, 5
      %v1162 = vrot.slane %v1161, 4
      %v1163 = vrot.slane %v437, 5
      %v1164 = vsel %vm1156, %v1162, %v1163
      %v1165 = vrot.slane %v1132, 5
      %v1166 = vrot.slane %v1165, 4
      %v1167 = vrot.slane %v438, 5
      %v1168 = vsel %vm1156, %v1166, %v1167
      %v1169 = vrot.slane %v1133, 5
      %v1170 = vrot.slane %v1169, 4
      %v1171 = vrot.slane %v439, 5
      %v1172 = vsel %vm1156, %v1170, %v1171
      %v1173 = vrot.slane %v1134, 5
      %v1174 = vrot.slane %v1173, 4
      %v1175 = vrot.slane %v440, 5
      %v1176 = vsel %vm1156, %v1174, %v1175
      %v1177 = vrot.slane %v1135, 5
      %v1178 = vrot.slane %v1177, 4
      %v1179 = vrot.slane %v441, 5
      %v1180 = vsel %vm1156, %v1178, %v1179
      %v1181 = vrot.slane %v1136, 5
      %v1182 = vrot.slane %v1181, 4
      %v1183 = vrot.slane %v442, 5
      %v1184 = vsel %vm1156, %v1182, %v1183
      %v1185 = vrot.slane %v1137, 5
      %v1186 = vrot.slane %v1185, 4
      %v1187 = vrot.slane %v443, 5
      %v1188 = vsel %vm1156, %v1186, %v1187
      %s1189 = scalar_lea.vmem %s210, 512
      %v1190 = vld [vmem:[%s1189] sm:$0xff]
      %v1191 = vld [vmem:[%s1189 + $0x8] sm:$0xff]
      %v1192 = vld [vmem:[%s1189 + $0x10] sm:$0xff]
      %v1193 = vld [vmem:[%s1189 + $0x18] sm:$0xff]
      %v1194 = vld [vmem:[%s1189 + $0x20] sm:$0xff]
      %v1195 = vld [vmem:[%s1189 + $0x28] sm:$0xff]
      %v1196 = vld [vmem:[%s1189 + $0x30] sm:$0xff]
      %v1197 = vld [vmem:[%s1189 + $0x38] sm:$0xff]
      %v1198 = vld [vmem:[%s1189 + $0x40] sm:$0xff]
      %v1199 = vld [vmem:[%s1189 + $0x48] sm:$0xff]
      %v1200 = vld [vmem:[%s1189 + $0x50] sm:$0xff]
      %v1201 = vld [vmem:[%s1189 + $0x58] sm:$0xff]
      %v1202 = vld [vmem:[%s1189 + $0x60] sm:$0xff]
      %v1203 = vld [vmem:[%s1189 + $0x68] sm:$0xff]
      %v1204 = vld [vmem:[%s1189 + $0x70] sm:$0xff]
      %v1205 = vld [vmem:[%s1189 + $0x78] sm:$0xff]
      %v1206 = vld [vmem:[%s1189 + $0x80] sm:$0xff]
      %v1207 = vld [vmem:[%s1189 + $0x88] sm:$0xff]
      %v1208 = vld [vmem:[%s1189 + $0x90] sm:$0xff]
      %v1209 = vld [vmem:[%s1189 + $0x98] sm:$0xff]
      %v1210 = vld [vmem:[%s1189 + $0xa0] sm:$0xff]
      %v1211 = vld [vmem:[%s1189 + $0xa8] sm:$0xff]
      %v1212 = vld [vmem:[%s1189 + $0xb0] sm:$0xff]
      %v1213 = vld [vmem:[%s1189 + $0xb8] sm:$0xff]
      %v1214 = vld [vmem:[%s1189 + $0xc0] sm:$0xff]
      %v1215 = vld [vmem:[%s1189 + $0xc8] sm:$0xff]
      %v1216 = vld [vmem:[%s1189 + $0xd0] sm:$0xff]
      %v1217 = vld [vmem:[%s1189 + $0xd8] sm:$0xff]
      %v1218 = vld [vmem:[%s1189 + $0xe0] sm:$0xff]
      %v1219 = vld [vmem:[%s1189 + $0xe8] sm:$0xff]
      %v1220 = vld [vmem:[%s1189 + $0xf0] sm:$0xff]
      %v1221 = vld [vmem:[%s1189 + $0xf8] sm:$0xff]
      %v1222 = vunpack.c.l.b16 %v1160
      %v1223 = vunpack.c.h.b16 %v1160
      %v1224 = vunpack.c.l.b16 %v1164
      %v1225 = vunpack.c.h.b16 %v1164
      %v1226 = vunpack.c.l.b16 %v1168
      %v1227 = vunpack.c.h.b16 %v1168
      %v1228 = vunpack.c.l.b16 %v1172
      %v1229 = vunpack.c.h.b16 %v1172
      %v1230 = vunpack.c.l.b16 %v1176
      %v1231 = vunpack.c.h.b16 %v1176
      %v1232 = vunpack.c.l.b16 %v1180
      %v1233 = vunpack.c.h.b16 %v1180
      %v1234 = vunpack.c.l.b16 %v1184
      %v1235 = vunpack.c.h.b16 %v1184
      %v1236 = vunpack.c.l.b16 %v1188
      %v1237 = vunpack.c.h.b16 %v1188
      %v1238 = vpack.c.b16 %v1224, %v1222
      %v1239 = vpack.c.b16 %v1225, %v1223
      %v1240 = vpack.c.b16 %v1228, %v1226
      %v1241 = vpack.c.b16 %v1229, %v1227
      %v1242 = vpack.c.b16 %v1232, %v1230
      %v1243 = vpack.c.b16 %v1233, %v1231
      %v1244 = vpack.c.b16 %v1236, %v1234
      %v1245 = vpack.c.b16 %v1237, %v1235
      %v1286 = vunpack.c.l.b16 %v1190
      %v1287 = vunpack.c.h.b16 %v1190
      %v1288 = vunpack.c.l.b16 %v1191
      %v1289 = vunpack.c.h.b16 %v1191
      %v1290 = vunpack.c.l.b16 %v1192
      %v1291 = vunpack.c.h.b16 %v1192
      %v1292 = vunpack.c.l.b16 %v1193
      %v1293 = vunpack.c.h.b16 %v1193
      %v1294 = vunpack.c.l.b16 %v1194
      %v1295 = vunpack.c.h.b16 %v1194
      %v1296 = vunpack.c.l.b16 %v1195
      %v1297 = vunpack.c.h.b16 %v1195
      %v1298 = vunpack.c.l.b16 %v1196
      %v1299 = vunpack.c.h.b16 %v1196
      %v1300 = vunpack.c.l.b16 %v1197
      %v1301 = vunpack.c.h.b16 %v1197
      %v1302 = vunpack.c.l.b16 %v1198
      %v1303 = vunpack.c.h.b16 %v1198
      %v1304 = vunpack.c.l.b16 %v1199
      %v1305 = vunpack.c.h.b16 %v1199
      %v1306 = vunpack.c.l.b16 %v1200
      %v1307 = vunpack.c.h.b16 %v1200
      %v1308 = vunpack.c.l.b16 %v1201
      %v1309 = vunpack.c.h.b16 %v1201
      %v1310 = vunpack.c.l.b16 %v1202
      %v1311 = vunpack.c.h.b16 %v1202
      %v1312 = vunpack.c.l.b16 %v1203
      %v1313 = vunpack.c.h.b16 %v1203
      %v1314 = vunpack.c.l.b16 %v1204
      %v1315 = vunpack.c.h.b16 %v1204
      %v1316 = vunpack.c.l.b16 %v1205
      %v1317 = vunpack.c.h.b16 %v1205
      %v1318 = vunpack.c.l.b16 %v1206
      %v1319 = vunpack.c.h.b16 %v1206
      %v1320 = vunpack.c.l.b16 %v1207
      %v1321 = vunpack.c.h.b16 %v1207
      %v1322 = vunpack.c.l.b16 %v1208
      %v1323 = vunpack.c.h.b16 %v1208
      %v1324 = vunpack.c.l.b16 %v1209
      %v1325 = vunpack.c.h.b16 %v1209
      %v1326 = vunpack.c.l.b16 %v1210
      %v1327 = vunpack.c.h.b16 %v1210
      %v1328 = vunpack.c.l.b16 %v1211
      %v1329 = vunpack.c.h.b16 %v1211
      %v1330 = vunpack.c.l.b16 %v1212
      %v1331 = vunpack.c.h.b16 %v1212
      %v1332 = vunpack.c.l.b16 %v1213
      %v1333 = vunpack.c.h.b16 %v1213
      %v1334 = vunpack.c.l.b16 %v1214
      %v1335 = vunpack.c.h.b16 %v1214
      %v1336 = vunpack.c.l.b16 %v1215
      %v1337 = vunpack.c.h.b16 %v1215
      %v1338 = vunpack.c.l.b16 %v1216
      %v1339 = vunpack.c.h.b16 %v1216
      %v1340 = vunpack.c.l.b16 %v1217
      %v1341 = vunpack.c.h.b16 %v1217
      %v1342 = vunpack.c.l.b16 %v1218
      %v1343 = vunpack.c.h.b16 %v1218
      %v1344 = vunpack.c.l.b16 %v1219
      %v1345 = vunpack.c.h.b16 %v1219
      %v1346 = vunpack.c.l.b16 %v1220
      %v1347 = vunpack.c.h.b16 %v1220
      %v1348 = vunpack.c.l.b16 %v1221
      %v1349 = vunpack.c.h.b16 %v1221
      %v1350 = vpack.c.b16 %v1288, %v1286
      %v1351 = vpack.c.b16 %v1289, %v1287
      %v1352 = vpack.c.b16 %v1292, %v1290
      %v1353 = vpack.c.b16 %v1293, %v1291
      %v1354 = vpack.c.b16 %v1296, %v1294
      %v1355 = vpack.c.b16 %v1297, %v1295
      %v1356 = vpack.c.b16 %v1300, %v1298
      %v1357 = vpack.c.b16 %v1301, %v1299
      %v1358 = vpack.c.b16 %v1304, %v1302
      %v1359 = vpack.c.b16 %v1305, %v1303
      %v1360 = vpack.c.b16 %v1308, %v1306
      %v1361 = vpack.c.b16 %v1309, %v1307
      %v1362 = vpack.c.b16 %v1312, %v1310
      %v1363 = vpack.c.b16 %v1313, %v1311
      %v1364 = vpack.c.b16 %v1316, %v1314
      %v1365 = vpack.c.b16 %v1317, %v1315
      %v1366 = vpack.c.b16 %v1320, %v1318
      %v1367 = vpack.c.b16 %v1321, %v1319
      %v1368 = vpack.c.b16 %v1324, %v1322
      %v1369 = vpack.c.b16 %v1325, %v1323
      %v1370 = vpack.c.b16 %v1328, %v1326
      %v1371 = vpack.c.b16 %v1329, %v1327
      %v1372 = vpack.c.b16 %v1332, %v1330
      %v1373 = vpack.c.b16 %v1333, %v1331
      %v1374 = vpack.c.b16 %v1336, %v1334
      %v1375 = vpack.c.b16 %v1337, %v1335
      %v1376 = vpack.c.b16 %v1340, %v1338
      %v1377 = vpack.c.b16 %v1341, %v1339
      %v1378 = vpack.c.b16 %v1344, %v1342
      %v1379 = vpack.c.b16 %v1345, %v1343
      %v1380 = vpack.c.b16 %v1348, %v1346
      %v1381 = vpack.c.b16 %v1349, %v1347
      %1414 = vmatprep.subr.bf16.mxu0 %v1365
      %1415 = vmatpush1.bf16.msra.mxu0 %v1364
      %1416 = vmatprep.subr.bf16.mxu0 %v1363
      %1417 = vmatpush1.bf16.msra.mxu0 %v1362
      %1418 = vmatprep.subr.bf16.mxu0 %v1361
      %1419 = vmatpush1.bf16.msra.mxu0 %v1360
      %1420 = vmatprep.subr.bf16.mxu0 %v1359
      %1421 = vmatpush1.bf16.msra.mxu0 %v1358
      %1422 = vmatprep.subr.bf16.mxu0 %v1357
      %1423 = vmatpush1.bf16.msra.mxu0 %v1356
      %1424 = vmatprep.subr.bf16.mxu0 %v1355
      %1425 = vmatpush1.bf16.msra.mxu0 %v1354
      %1426 = vmatprep.subr.bf16.mxu0 %v1353
      %1427 = vmatpush1.bf16.msra.mxu0 %v1352
      %1428 = vmatprep.subr.bf16.mxu0 %v1351
      %1429 = vmatpush1.bf16.msra.mxu0 %v1350
      %1430 = vmatprep.subr.bf16.mxu0 %v1381
      %1431 = vmatpush2.bf16.msra.mxu0 %v1380
      %1432 = vmatprep.subr.bf16.mxu0 %v1379
      %1433 = vmatpush2.bf16.msra.mxu0 %v1378
      %1434 = vmatprep.subr.bf16.mxu0 %v1377
      %1435 = vmatpush2.bf16.msra.mxu0 %v1376
      %1436 = vmatprep.subr.bf16.mxu0 %v1375
      %1437 = vmatpush2.bf16.msra.mxu0 %v1374
      %1438 = vmatprep.subr.bf16.mxu0 %v1373
      %1439 = vmatpush2.bf16.msra.mxu0 %v1372
      %1440 = vmatprep.subr.bf16.mxu0 %v1371
      %1441 = vmatpush2.bf16.msra.mxu0 %v1370
      %1442 = vmatprep.subr.bf16.mxu0 %v1369
      %1443 = vmatpush2.bf16.msra.mxu0 %v1368
      %1444 = vmatprep.subr.bf16.mxu0 %v1367
      %1445 = vmatpush2.bf16.msra.mxu0 %v1366
      %1446 = vmatprep.mubr.bf16.mxu0 %v1239
      %1447 = vmatmul.mubr.bf16.gmra.mxu0 %v1238
      %v1448 = vpop.f32.mrf.mxu0
      %v1449 = vadd.f32 0.0, %v1448
      %v1450 = vpop.f32.mrf.mxu0
      %v1451 = vadd.f32 0.0, %v1450
      %v1452 = vpop.f32.mrf.mxu0
      %v1453 = vadd.f32 0.0, %v1452
      %v1454 = vpop.f32.mrf.mxu0
      %v1455 = vadd.f32 0.0, %v1454
      %1456 = vmatprep.mubr.bf16.mxu0 %v1241
      %1457 = vmatmul.mubr.bf16.gmra.mxu0 %v1240
      %v1458 = vpop.f32.mrf.mxu0
      %v1459 = vadd.f32 0.0, %v1458
      %v1460 = vpop.f32.mrf.mxu0
      %v1461 = vadd.f32 0.0, %v1460
      %v1462 = vpop.f32.mrf.mxu0
      %v1463 = vadd.f32 0.0, %v1462
      %v1464 = vpop.f32.mrf.mxu0
      %v1465 = vadd.f32 0.0, %v1464
      %1466 = vmatprep.mubr.bf16.mxu0 %v1243
      %1467 = vmatmul.mubr.bf16.gmra.mxu0 %v1242
      %v1468 = vpop.f32.mrf.mxu0
      %v1469 = vadd.f32 0.0, %v1468
      %v1470 = vpop.f32.mrf.mxu0
      %v1471 = vadd.f32 0.0, %v1470
      %v1472 = vpop.f32.mrf.mxu0
      %v1473 = vadd.f32 0.0, %v1472
      %v1474 = vpop.f32.mrf.mxu0
      %v1475 = vadd.f32 0.0, %v1474
      %1476 = vmatprep.mubr.bf16.mxu0 %v1245
      %1477 = vmatmul.mubr.bf16.gmra.mxu0 %v1244
      %v1478 = vpop.f32.mrf.mxu0
      %v1479 = vadd.f32 0.0, %v1478
      %v1480 = vpop.f32.mrf.mxu0
      %v1481 = vadd.f32 0.0, %v1480
      %v1482 = vpop.f32.mrf.mxu0
      %v1483 = vadd.f32 0.0, %v1482
      %v1484 = vpop.f32.mrf.mxu0
      %v1485 = vadd.f32 0.0, %v1484
      %1486 = vdwg.mxu0
      %v1487 = vadd.f32 %v1092, %v1449
      %v1488 = vadd.f32 %v1094, %v1451
      %v1489 = vadd.f32 %v1096, %v1453
      %v1490 = vadd.f32 %v1098, %v1455
      %v1491 = vadd.f32 %v1102, %v1459
      %v1492 = vadd.f32 %v1104, %v1461
      %v1493 = vadd.f32 %v1106, %v1463
      %v1494 = vadd.f32 %v1108, %v1465
      %v1495 = vadd.f32 %v1112, %v1469
      %v1496 = vadd.f32 %v1114, %v1471
      %v1497 = vadd.f32 %v1116, %v1473
      %v1498 = vadd.f32 %v1118, %v1475
      %v1499 = vadd.f32 %v1122, %v1479
      %v1500 = vadd.f32 %v1124, %v1481
      %v1501 = vadd.f32 %v1126, %v1483
      %v1502 = vadd.f32 %v1128, %v1485
      %s1503 = scalar_lea.vmem [#allocation2], 16
      %v1504 = vld [vmem:[%s1503] sm:$0xff]
      %v1505 = vld [vmem:[%s1503 + $0x10] sm:$0xff]
      %v1506 = vld [vmem:[%s1503 + $0x20] sm:$0xff]
      %v1507 = vld [vmem:[%s1503 + $0x30] sm:$0xff]
      %v1508 = vld [vmem:[%s1503 + $0x40] sm:$0xff]
      %v1509 = vld [vmem:[%s1503 + $0x50] sm:$0xff]
      %v1510 = vld [vmem:[%s1503 + $0x60] sm:$0xff]
      %v1511 = vld [vmem:[%s1503 + $0x70] sm:$0xff]
      %s1512 = scalar_lea.vmem %s210, 768
      %v1513 = vld [vmem:[%s1512] sm:$0xff]
      %v1514 = vld [vmem:[%s1512 + $0x8] sm:$0xff]
      %v1515 = vld [vmem:[%s1512 + $0x10] sm:$0xff]
      %v1516 = vld [vmem:[%s1512 + $0x18] sm:$0xff]
      %v1517 = vld [vmem:[%s1512 + $0x20] sm:$0xff]
      %v1518 = vld [vmem:[%s1512 + $0x28] sm:$0xff]
      %v1519 = vld [vmem:[%s1512 + $0x30] sm:$0xff]
      %v1520 = vld [vmem:[%s1512 + $0x38] sm:$0xff]
      %v1521 = vld [vmem:[%s1512 + $0x40] sm:$0xff]
      %v1522 = vld [vmem:[%s1512 + $0x48] sm:$0xff]
      %v1523 = vld [vmem:[%s1512 + $0x50] sm:$0xff]
      %v1524 = vld [vmem:[%s1512 + $0x58] sm:$0xff]
      %v1525 = vld [vmem:[%s1512 + $0x60] sm:$0xff]
      %v1526 = vld [vmem:[%s1512 + $0x68] sm:$0xff]
      %v1527 = vld [vmem:[%s1512 + $0x70] sm:$0xff]
      %v1528 = vld [vmem:[%s1512 + $0x78] sm:$0xff]
      %v1529 = vld [vmem:[%s1512 + $0x80] sm:$0xff]
      %v1530 = vld [vmem:[%s1512 + $0x88] sm:$0xff]
      %v1531 = vld [vmem:[%s1512 + $0x90] sm:$0xff]
      %v1532 = vld [vmem:[%s1512 + $0x98] sm:$0xff]
      %v1533 = vld [vmem:[%s1512 + $0xa0] sm:$0xff]
      %v1534 = vld [vmem:[%s1512 + $0xa8] sm:$0xff]
      %v1535 = vld [vmem:[%s1512 + $0xb0] sm:$0xff]
      %v1536 = vld [vmem:[%s1512 + $0xb8] sm:$0xff]
      %v1537 = vld [vmem:[%s1512 + $0xc0] sm:$0xff]
      %v1538 = vld [vmem:[%s1512 + $0xc8] sm:$0xff]
      %v1539 = vld [vmem:[%s1512 + $0xd0] sm:$0xff]
      %v1540 = vld [vmem:[%s1512 + $0xd8] sm:$0xff]
      %v1541 = vld [vmem:[%s1512 + $0xe0] sm:$0xff]
      %v1542 = vld [vmem:[%s1512 + $0xe8] sm:$0xff]
      %v1543 = vld [vmem:[%s1512 + $0xf0] sm:$0xff]
      %v1544 = vld [vmem:[%s1512 + $0xf8] sm:$0xff]
      %v1553 = vunpack.c.l.b16 %v1504
      %v1554 = vunpack.c.h.b16 %v1504
      %v1555 = vunpack.c.l.b16 %v1505
      %v1556 = vunpack.c.h.b16 %v1505
      %v1557 = vunpack.c.l.b16 %v1506
      %v1558 = vunpack.c.h.b16 %v1506
      %v1559 = vunpack.c.l.b16 %v1507
      %v1560 = vunpack.c.h.b16 %v1507
      %v1561 = vunpack.c.l.b16 %v1508
      %v1562 = vunpack.c.h.b16 %v1508
      %v1563 = vunpack.c.l.b16 %v1509
      %v1564 = vunpack.c.h.b16 %v1509
      %v1565 = vunpack.c.l.b16 %v1510
      %v1566 = vunpack.c.h.b16 %v1510
      %v1567 = vunpack.c.l.b16 %v1511
      %v1568 = vunpack.c.h.b16 %v1511
      %v1569 = vpack.c.b16 %v1555, %v1553
      %v1570 = vpack.c.b16 %v1556, %v1554
      %v1571 = vpack.c.b16 %v1559, %v1557
      %v1572 = vpack.c.b16 %v1560, %v1558
      %v1573 = vpack.c.b16 %v1563, %v1561
      %v1574 = vpack.c.b16 %v1564, %v1562
      %v1575 = vpack.c.b16 %v1567, %v1565
      %v1576 = vpack.c.b16 %v1568, %v1566
      %v1617 = vunpack.c.l.b16 %v1513
      %v1618 = vunpack.c.h.b16 %v1513
      %v1619 = vunpack.c.l.b16 %v1514
      %v1620 = vunpack.c.h.b16 %v1514
      %v1621 = vunpack.c.l.b16 %v1515
      %v1622 = vunpack.c.h.b16 %v1515
      %v1623 = vunpack.c.l.b16 %v1516
      %v1624 = vunpack.c.h.b16 %v1516
      %v1625 = vunpack.c.l.b16 %v1517
      %v1626 = vunpack.c.h.b16 %v1517
      %v1627 = vunpack.c.l.b16 %v1518
      %v1628 = vunpack.c.h.b16 %v1518
      %v1629 = vunpack.c.l.b16 %v1519
      %v1630 = vunpack.c.h.b16 %v1519
      %v1631 = vunpack.c.l.b16 %v1520
      %v1632 = vunpack.c.h.b16 %v1520
      %v1633 = vunpack.c.l.b16 %v1521
      %v1634 = vunpack.c.h.b16 %v1521
      %v1635 = vunpack.c.l.b16 %v1522
      %v1636 = vunpack.c.h.b16 %v1522
      %v1637 = vunpack.c.l.b16 %v1523
      %v1638 = vunpack.c.h.b16 %v1523
      %v1639 = vunpack.c.l.b16 %v1524
      %v1640 = vunpack.c.h.b16 %v1524
      %v1641 = vunpack.c.l.b16 %v1525
      %v1642 = vunpack.c.h.b16 %v1525
      %v1643 = vunpack.c.l.b16 %v1526
      %v1644 = vunpack.c.h.b16 %v1526
      %v1645 = vunpack.c.l.b16 %v1527
      %v1646 = vunpack.c.h.b16 %v1527
      %v1647 = vunpack.c.l.b16 %v1528
      %v1648 = vunpack.c.h.b16 %v1528
      %v1649 = vunpack.c.l.b16 %v1529
      %v1650 = vunpack.c.h.b16 %v1529
      %v1651 = vunpack.c.l.b16 %v1530
      %v1652 = vunpack.c.h.b16 %v1530
      %v1653 = vunpack.c.l.b16 %v1531
      %v1654 = vunpack.c.h.b16 %v1531
      %v1655 = vunpack.c.l.b16 %v1532
      %v1656 = vunpack.c.h.b16 %v1532
      %v1657 = vunpack.c.l.b16 %v1533
      %v1658 = vunpack.c.h.b16 %v1533
      %v1659 = vunpack.c.l.b16 %v1534
      %v1660 = vunpack.c.h.b16 %v1534
      %v1661 = vunpack.c.l.b16 %v1535
      %v1662 = vunpack.c.h.b16 %v1535
      %v1663 = vunpack.c.l.b16 %v1536
      %v1664 = vunpack.c.h.b16 %v1536
      %v1665 = vunpack.c.l.b16 %v1537
      %v1666 = vunpack.c.h.b16 %v1537
      %v1667 = vunpack.c.l.b16 %v1538
      %v1668 = vunpack.c.h.b16 %v1538
      %v1669 = vunpack.c.l.b16 %v1539
      %v1670 = vunpack.c.h.b16 %v1539
      %v1671 = vunpack.c.l.b16 %v1540
      %v1672 = vunpack.c.h.b16 %v1540
      %v1673 = vunpack.c.l.b16 %v1541
      %v1674 = vunpack.c.h.b16 %v1541
      %v1675 = vunpack.c.l.b16 %v1542
      %v1676 = vunpack.c.h.b16 %v1542
      %v1677 = vunpack.c.l.b16 %v1543
      %v1678 = vunpack.c.h.b16 %v1543
      %v1679 = vunpack.c.l.b16 %v1544
      %v1680 = vunpack.c.h.b16 %v1544
      %v1681 = vpack.c.b16 %v1619, %v1617
      %v1682 = vpack.c.b16 %v1620, %v1618
      %v1683 = vpack.c.b16 %v1623, %v1621
      %v1684 = vpack.c.b16 %v1624, %v1622
      %v1685 = vpack.c.b16 %v1627, %v1625
      %v1686 = vpack.c.b16 %v1628, %v1626
      %v1687 = vpack.c.b16 %v1631, %v1629
      %v1688 = vpack.c.b16 %v1632, %v1630
      %v1689 = vpack.c.b16 %v1635, %v1633
      %v1690 = vpack.c.b16 %v1636, %v1634
      %v1691 = vpack.c.b16 %v1639, %v1637
      %v1692 = vpack.c.b16 %v1640, %v1638
      %v1693 = vpack.c.b16 %v1643, %v1641
      %v1694 = vpack.c.b16 %v1644, %v1642
      %v1695 = vpack.c.b16 %v1647, %v1645
      %v1696 = vpack.c.b16 %v1648, %v1646
      %v1697 = vpack.c.b16 %v1651, %v1649
      %v1698 = vpack.c.b16 %v1652, %v1650
      %v1699 = vpack.c.b16 %v1655, %v1653
      %v1700 = vpack.c.b16 %v1656, %v1654
      %v1701 = vpack.c.b16 %v1659, %v1657
      %v1702 = vpack.c.b16 %v1660, %v1658
      %v1703 = vpack.c.b16 %v1663, %v1661
      %v1704 = vpack.c.b16 %v1664, %v1662
      %v1705 = vpack.c.b16 %v1667, %v1665
      %v1706 = vpack.c.b16 %v1668, %v1666
      %v1707 = vpack.c.b16 %v1671, %v1669
      %v1708 = vpack.c.b16 %v1672, %v1670
      %v1709 = vpack.c.b16 %v1675, %v1673
      %v1710 = vpack.c.b16 %v1676, %v1674
      %v1711 = vpack.c.b16 %v1679, %v1677
      %v1712 = vpack.c.b16 %v1680, %v1678
      %1745 = vmatprep.subr.bf16.mxu0 %v1696
      %1746 = vmatpush1.bf16.msra.mxu0 %v1695
      %1747 = vmatprep.subr.bf16.mxu0 %v1694
      %1748 = vmatpush1.bf16.msra.mxu0 %v1693
      %1749 = vmatprep.subr.bf16.mxu0 %v1692
      %1750 = vmatpush1.bf16.msra.mxu0 %v1691
      %1751 = vmatprep.subr.bf16.mxu0 %v1690
      %1752 = vmatpush1.bf16.msra.mxu0 %v1689
      %1753 = vmatprep.subr.bf16.mxu0 %v1688
      %1754 = vmatpush1.bf16.msra.mxu0 %v1687
      %1755 = vmatprep.subr.bf16.mxu0 %v1686
      %1756 = vmatpush1.bf16.msra.mxu0 %v1685
      %1757 = vmatprep.subr.bf16.mxu0 %v1684
      %1758 = vmatpush1.bf16.msra.mxu0 %v1683
      %1759 = vmatprep.subr.bf16.mxu0 %v1682
      %1760 = vmatpush1.bf16.msra.mxu0 %v1681
      %1761 = vmatprep.subr.bf16.mxu0 %v1712
      %1762 = vmatpush2.bf16.msra.mxu0 %v1711
      %1763 = vmatprep.subr.bf16.mxu0 %v1710
      %1764 = vmatpush2.bf16.msra.mxu0 %v1709
      %1765 = vmatprep.subr.bf16.mxu0 %v1708
      %1766 = vmatpush2.bf16.msra.mxu0 %v1707
      %1767 = vmatprep.subr.bf16.mxu0 %v1706
      %1768 = vmatpush2.bf16.msra.mxu0 %v1705
      %1769 = vmatprep.subr.bf16.mxu0 %v1704
      %1770 = vmatpush2.bf16.msra.mxu0 %v1703
      %1771 = vmatprep.subr.bf16.mxu0 %v1702
      %1772 = vmatpush2.bf16.msra.mxu0 %v1701
      %1773 = vmatprep.subr.bf16.mxu0 %v1700
      %1774 = vmatpush2.bf16.msra.mxu0 %v1699
      %1775 = vmatprep.subr.bf16.mxu0 %v1698
      %1776 = vmatpush2.bf16.msra.mxu0 %v1697
      %1777 = vmatprep.mubr.bf16.mxu0 %v1570
      %1778 = vmatmul.mubr.bf16.gmra.mxu0 %v1569
      %v1779 = vpop.f32.mrf.mxu0
      %v1780 = vadd.f32 0.0, %v1779
      %v1781 = vpop.f32.mrf.mxu0
      %v1782 = vadd.f32 0.0, %v1781
      %v1783 = vpop.f32.mrf.mxu0
      %v1784 = vadd.f32 0.0, %v1783
      %v1785 = vpop.f32.mrf.mxu0
      %v1786 = vadd.f32 0.0, %v1785
      %1787 = vmatprep.mubr.bf16.mxu0 %v1572
      %1788 = vmatmul.mubr.bf16.gmra.mxu0 %v1571
      %v1789 = vpop.f32.mrf.mxu0
      %v1790 = vadd.f32 0.0, %v1789
      %v1791 = vpop.f32.mrf.mxu0
      %v1792 = vadd.f32 0.0, %v1791
      %v1793 = vpop.f32.mrf.mxu0
      %v1794 = vadd.f32 0.0, %v1793
      %v1795 = vpop.f32.mrf.mxu0
      %v1796 = vadd.f32 0.0, %v1795
      %1797 = vmatprep.mubr.bf16.mxu0 %v1574
      %1798 = vmatmul.mubr.bf16.gmra.mxu0 %v1573
      %v1799 = vpop.f32.mrf.mxu0
      %v1800 = vadd.f32 0.0, %v1799
      %v1801 = vpop.f32.mrf.mxu0
      %v1802 = vadd.f32 0.0, %v1801
      %v1803 = vpop.f32.mrf.mxu0
      %v1804 = vadd.f32 0.0, %v1803
      %v1805 = vpop.f32.mrf.mxu0
      %v1806 = vadd.f32 0.0, %v1805
      %1807 = vmatprep.mubr.bf16.mxu0 %v1576
      %1808 = vmatmul.mubr.bf16.gmra.mxu0 %v1575
      %v1809 = vpop.f32.mrf.mxu0
      %v1810 = vadd.f32 0.0, %v1809
      %v1811 = vpop.f32.mrf.mxu0
      %v1812 = vadd.f32 0.0, %v1811
      %v1813 = vpop.f32.mrf.mxu0
      %v1814 = vadd.f32 0.0, %v1813
      %v1815 = vpop.f32.mrf.mxu0
      %v1816 = vadd.f32 0.0, %v1815
      %1817 = vdwg.mxu0
      %v1818 = vadd.f32 %v1487, %v1780
      %v1819 = vadd.f32 %v1488, %v1782
      %v1820 = vadd.f32 %v1489, %v1784
      %v1821 = vadd.f32 %v1490, %v1786
      %v1822 = vadd.f32 %v1491, %v1790
      %v1823 = vadd.f32 %v1492, %v1792
      %v1824 = vadd.f32 %v1493, %v1794
      %v1825 = vadd.f32 %v1494, %v1796
      %v1826 = vadd.f32 %v1495, %v1800
      %v1827 = vadd.f32 %v1496, %v1802
      %v1828 = vadd.f32 %v1497, %v1804
      %v1829 = vadd.f32 %v1498, %v1806
      %v1830 = vadd.f32 %v1499, %v1810
      %v1831 = vadd.f32 %v1500, %v1812
      %v1832 = vadd.f32 %v1501, %v1814
      %v1833 = vadd.f32 %v1502, %v1816
      %v1834 = vld [vmem:[%s1503] sm:$0xff]
      %v1835 = vld [vmem:[%s1503 + $0x8] sm:$0x11]
      %v1836 = vld [vmem:[%s1503 + $0x10] sm:$0xff]
      %v1837 = vld [vmem:[%s1503 + $0x18] sm:$0x11]
      %v1838 = vld [vmem:[%s1503 + $0x20] sm:$0xff]
      %v1839 = vld [vmem:[%s1503 + $0x28] sm:$0x11]
      %v1840 = vld [vmem:[%s1503 + $0x30] sm:$0xff]
      %v1841 = vld [vmem:[%s1503 + $0x38] sm:$0x11]
      %v1842 = vld [vmem:[%s1503 + $0x40] sm:$0xff]
      %v1843 = vld [vmem:[%s1503 + $0x48] sm:$0x11]
      %v1844 = vld [vmem:[%s1503 + $0x50] sm:$0xff]
      %v1845 = vld [vmem:[%s1503 + $0x58] sm:$0x11]
      %v1846 = vld [vmem:[%s1503 + $0x60] sm:$0xff]
      %v1847 = vld [vmem:[%s1503 + $0x68] sm:$0x11]
      %v1848 = vld [vmem:[%s1503 + $0x70] sm:$0xff]
      %v1849 = vld [vmem:[%s1503 + $0x78] sm:$0x11]
      %v1851 = vshrl.u32 %v1834, 16
      %v1853 = vrot.slane %v1851, 4
      %v1854 = vshll.u32 %v1834, 16
      %v1856 = vrot.slane %v1854, 5
      %v1857 = vor.u32 %v1853, %v1856
      %v1858 = vrot.slane %v1857, 4
      %v1860 = vshll.u32 %v1835, 16
      %v1862 = vrot.slane %v1860, 5
      %v1863 = vsel %vm446, %v1858, %v1862
      %v1865 = vshrl.u32 %v1836, 16
      %v1867 = vrot.slane %v1865, 4
      %v1868 = vshll.u32 %v1836, 16
      %v1870 = vrot.slane %v1868, 5
      %v1871 = vor.u32 %v1867, %v1870
      %v1872 = vrot.slane %v1871, 4
      %v1874 = vshll.u32 %v1837, 16
      %v1876 = vrot.slane %v1874, 5
      %v1877 = vsel %vm446, %v1872, %v1876
      %v1879 = vshrl.u32 %v1838, 16
      %v1881 = vrot.slane %v1879, 4
      %v1882 = vshll.u32 %v1838, 16
      %v1884 = vrot.slane %v1882, 5
      %v1885 = vor.u32 %v1881, %v1884
      %v1886 = vrot.slane %v1885, 4
      %v1888 = vshll.u32 %v1839, 16
      %v1890 = vrot.slane %v1888, 5
      %v1891 = vsel %vm446, %v1886, %v1890
      %v1893 = vshrl.u32 %v1840, 16
      %v1895 = vrot.slane %v1893, 4
      %v1896 = vshll.u32 %v1840, 16
      %v1898 = vrot.slane %v1896, 5
      %v1899 = vor.u32 %v1895, %v1898
      %v1900 = vrot.slane %v1899, 4
      %v1902 = vshll.u32 %v1841, 16
      %v1904 = vrot.slane %v1902, 5
      %v1905 = vsel %vm446, %v1900, %v1904
      %v1907 = vshrl.u32 %v1842, 16
      %v1909 = vrot.slane %v1907, 4
      %v1910 = vshll.u32 %v1842, 16
      %v1912 = vrot.slane %v1910, 5
      %v1913 = vor.u32 %v1909, %v1912
      %v1914 = vrot.slane %v1913, 4
      %v1916 = vshll.u32 %v1843, 16
      %v1918 = vrot.slane %v1916, 5
      %v1919 = vsel %vm446, %v1914, %v1918
      %v1921 = vshrl.u32 %v1844, 16
      %v1923 = vrot.slane %v1921, 4
      %v1924 = vshll.u32 %v1844, 16
      %v1926 = vrot.slane %v1924, 5
      %v1927 = vor.u32 %v1923, %v1926
      %v1928 = vrot.slane %v1927, 4
      %v1930 = vshll.u32 %v1845, 16
      %v1932 = vrot.slane %v1930, 5
      %v1933 = vsel %vm446, %v1928, %v1932
      %v1935 = vshrl.u32 %v1846, 16
      %v1937 = vrot.slane %v1935, 4
      %v1938 = vshll.u32 %v1846, 16
      %v1940 = vrot.slane %v1938, 5
      %v1941 = vor.u32 %v1937, %v1940
      %v1942 = vrot.slane %v1941, 4
      %v1944 = vshll.u32 %v1847, 16
      %v1946 = vrot.slane %v1944, 5
      %v1947 = vsel %vm446, %v1942, %v1946
      %v1949 = vshrl.u32 %v1848, 16
      %v1951 = vrot.slane %v1949, 4
      %v1952 = vshll.u32 %v1848, 16
      %v1954 = vrot.slane %v1952, 5
      %v1955 = vor.u32 %v1951, %v1954
      %v1956 = vrot.slane %v1955, 4
      %v1958 = vshll.u32 %v1849, 16
      %v1960 = vrot.slane %v1958, 5
      %v1961 = vsel %vm446, %v1956, %v1960
      %s1962 = scalar_lea.vmem %s210, 1024
      %v1963 = vld [vmem:[%s1962] sm:$0xff]
      %v1964 = vld [vmem:[%s1962 + $0x8] sm:$0xff]
      %v1965 = vld [vmem:[%s1962 + $0x10] sm:$0xff]
      %v1966 = vld [vmem:[%s1962 + $0x18] sm:$0xff]
      %v1967 = vld [vmem:[%s1962 + $0x20] sm:$0xff]
      %v1968 = vld [vmem:[%s1962 + $0x28] sm:$0xff]
      %v1969 = vld [vmem:[%s1962 + $0x30] sm:$0xff]
      %v1970 = vld [vmem:[%s1962 + $0x38] sm:$0xff]
      %v1971 = vld [vmem:[%s1962 + $0x40] sm:$0xff]
      %v1972 = vld [vmem:[%s1962 + $0x48] sm:$0xff]
      %v1973 = vld [vmem:[%s1962 + $0x50] sm:$0xff]
      %v1974 = vld [vmem:[%s1962 + $0x58] sm:$0xff]
      %v1975 = vld [vmem:[%s1962 + $0x60] sm:$0xff]
      %v1976 = vld [vmem:[%s1962 + $0x68] sm:$0xff]
      %v1977 = vld [vmem:[%s1962 + $0x70] sm:$0xff]
      %v1978 = vld [vmem:[%s1962 + $0x78] sm:$0xff]
      %v1979 = vld [vmem:[%s1962 + $0x80] sm:$0xff]
      %v1980 = vld [vmem:[%s1962 + $0x88] sm:$0xff]
      %v1981 = vld [vmem:[%s1962 + $0x90] sm:$0xff]
      %v1982 = vld [vmem:[%s1962 + $0x98] sm:$0xff]
      %v1983 = vld [vmem:[%s1962 + $0xa0] sm:$0xff]
      %v1984 = vld [vmem:[%s1962 + $0xa8] sm:$0xff]
      %v1985 = vld [vmem:[%s1962 + $0xb0] sm:$0xff]
      %v1986 = vld [vmem:[%s1962 + $0xb8] sm:$0xff]
      %v1987 = vld [vmem:[%s1962 + $0xc0] sm:$0xff]
      %v1988 = vld [vmem:[%s1962 + $0xc8] sm:$0xff]
      %v1989 = vld [vmem:[%s1962 + $0xd0] sm:$0xff]
      %v1990 = vld [vmem:[%s1962 + $0xd8] sm:$0xff]
      %v1991 = vld [vmem:[%s1962 + $0xe0] sm:$0xff]
      %v1992 = vld [vmem:[%s1962 + $0xe8] sm:$0xff]
      %v1993 = vld [vmem:[%s1962 + $0xf0] sm:$0xff]
      %v1994 = vld [vmem:[%s1962 + $0xf8] sm:$0xff]
      %v1995 = vunpack.c.l.b16 %v1863
      %v1996 = vunpack.c.h.b16 %v1863
      %v1997 = vunpack.c.l.b16 %v1877
      %v1998 = vunpack.c.h.b16 %v1877
      %v1999 = vunpack.c.l.b16 %v1891
      %v2000 = vunpack.c.h.b16 %v1891
      %v2001 = vunpack.c.l.b16 %v1905
      %v2002 = vunpack.c.h.b16 %v1905
      %v2003 = vunpack.c.l.b16 %v1919
      %v2004 = vunpack.c.h.b16 %v1919
      %v2005 = vunpack.c.l.b16 %v1933
      %v2006 = vunpack.c.h.b16 %v1933
      %v2007 = vunpack.c.l.b16 %v1947
      %v2008 = vunpack.c.h.b16 %v1947
      %v2009 = vunpack.c.l.b16 %v1961
      %v2010 = vunpack.c.h.b16 %v1961
      %v2011 = vpack.c.b16 %v1997, %v1995
      %v2012 = vpack.c.b16 %v1998, %v1996
      %v2013 = vpack.c.b16 %v2001, %v1999
      %v2014 = vpack.c.b16 %v2002, %v2000
      %v2015 = vpack.c.b16 %v2005, %v2003
      %v2016 = vpack.c.b16 %v2006, %v2004
      %v2017 = vpack.c.b16 %v2009, %v2007
      %v2018 = vpack.c.b16 %v2010, %v2008
      %v2059 = vunpack.c.l.b16 %v1963
      %v2060 = vunpack.c.h.b16 %v1963
      %v2061 = vunpack.c.l.b16 %v1964
      %v2062 = vunpack.c.h.b16 %v1964
      %v2063 = vunpack.c.l.b16 %v1965
      %v2064 = vunpack.c.h.b16 %v1965
      %v2065 = vunpack.c.l.b16 %v1966
      %v2066 = vunpack.c.h.b16 %v1966
      %v2067 = vunpack.c.l.b16 %v1967
      %v2068 = vunpack.c.h.b16 %v1967
      %v2069 = vunpack.c.l.b16 %v1968
      %v2070 = vunpack.c.h.b16 %v1968
      %v2071 = vunpack.c.l.b16 %v1969
      %v2072 = vunpack.c.h.b16 %v1969
      %v2073 = vunpack.c.l.b16 %v1970
      %v2074 = vunpack.c.h.b16 %v1970
      %v2075 = vunpack.c.l.b16 %v1971
      %v2076 = vunpack.c.h.b16 %v1971
      %v2077 = vunpack.c.l.b16 %v1972
      %v2078 = vunpack.c.h.b16 %v1972
      %v2079 = vunpack.c.l.b16 %v1973
      %v2080 = vunpack.c.h.b16 %v1973
      %v2081 = vunpack.c.l.b16 %v1974
      %v2082 = vunpack.c.h.b16 %v1974
      %v2083 = vunpack.c.l.b16 %v1975
      %v2084 = vunpack.c.h.b16 %v1975
      %v2085 = vunpack.c.l.b16 %v1976
      %v2086 = vunpack.c.h.b16 %v1976
      %v2087 = vunpack.c.l.b16 %v1977
      %v2088 = vunpack.c.h.b16 %v1977
      %v2089 = vunpack.c.l.b16 %v1978
      %v2090 = vunpack.c.h.b16 %v1978
      %v2091 = vunpack.c.l.b16 %v1979
      %v2092 = vunpack.c.h.b16 %v1979
      %v2093 = vunpack.c.l.b16 %v1980
      %v2094 = vunpack.c.h.b16 %v1980
      %v2095 = vunpack.c.l.b16 %v1981
      %v2096 = vunpack.c.h.b16 %v1981
      %v2097 = vunpack.c.l.b16 %v1982
      %v2098 = vunpack.c.h.b16 %v1982
      %v2099 = vunpack.c.l.b16 %v1983
      %v2100 = vunpack.c.h.b16 %v1983
      %v2101 = vunpack.c.l.b16 %v1984
      %v2102 = vunpack.c.h.b16 %v1984
      %v2103 = vunpack.c.l.b16 %v1985
      %v2104 = vunpack.c.h.b16 %v1985
      %v2105 = vunpack.c.l.b16 %v1986
      %v2106 = vunpack.c.h.b16 %v1986
      %v2107 = vunpack.c.l.b16 %v1987
      %v2108 = vunpack.c.h.b16 %v1987
      %v2109 = vunpack.c.l.b16 %v1988
      %v2110 = vunpack.c.h.b16 %v1988
      %v2111 = vunpack.c.l.b16 %v1989
      %v2112 = vunpack.c.h.b16 %v1989
      %v2113 = vunpack.c.l.b16 %v1990
      %v2114 = vunpack.c.h.b16 %v1990
      %v2115 = vunpack.c.l.b16 %v1991
      %v2116 = vunpack.c.h.b16 %v1991
      %v2117 = vunpack.c.l.b16 %v1992
      %v2118 = vunpack.c.h.b16 %v1992
      %v2119 = vunpack.c.l.b16 %v1993
      %v2120 = vunpack.c.h.b16 %v1993
      %v2121 = vunpack.c.l.b16 %v1994
      %v2122 = vunpack.c.h.b16 %v1994
      %v2123 = vpack.c.b16 %v2061, %v2059
      %v2124 = vpack.c.b16 %v2062, %v2060
      %v2125 = vpack.c.b16 %v2065, %v2063
      %v2126 = vpack.c.b16 %v2066, %v2064
      %v2127 = vpack.c.b16 %v2069, %v2067
      %v2128 = vpack.c.b16 %v2070, %v2068
      %v2129 = vpack.c.b16 %v2073, %v2071
      %v2130 = vpack.c.b16 %v2074, %v2072
      %v2131 = vpack.c.b16 %v2077, %v2075
      %v2132 = vpack.c.b16 %v2078, %v2076
      %v2133 = vpack.c.b16 %v2081, %v2079
      %v2134 = vpack.c.b16 %v2082, %v2080
      %v2135 = vpack.c.b16 %v2085, %v2083
      %v2136 = vpack.c.b16 %v2086, %v2084
      %v2137 = vpack.c.b16 %v2089, %v2087
      %v2138 = vpack.c.b16 %v2090, %v2088
      %v2139 = vpack.c.b16 %v2093, %v2091
      %v2140 = vpack.c.b16 %v2094, %v2092
      %v2141 = vpack.c.b16 %v2097, %v2095
      %v2142 = vpack.c.b16 %v2098, %v2096
      %v2143 = vpack.c.b16 %v2101, %v2099
      %v2144 = vpack.c.b16 %v2102, %v2100
      %v2145 = vpack.c.b16 %v2105, %v2103
      %v2146 = vpack.c.b16 %v2106, %v2104
      %v2147 = vpack.c.b16 %v2109, %v2107
      %v2148 = vpack.c.b16 %v2110, %v2108
      %v2149 = vpack.c.b16 %v2113, %v2111
      %v2150 = vpack.c.b16 %v2114, %v2112
      %v2151 = vpack.c.b16 %v2117, %v2115
      %v2152 = vpack.c.b16 %v2118, %v2116
      %v2153 = vpack.c.b16 %v2121, %v2119
      %v2154 = vpack.c.b16 %v2122, %v2120
      %2187 = vmatprep.subr.bf16.mxu0 %v2138
      %2188 = vmatpush1.bf16.msra.mxu0 %v2137
      %2189 = vmatprep.subr.bf16.mxu0 %v2136
      %2190 = vmatpush1.bf16.msra.mxu0 %v2135
      %2191 = vmatprep.subr.bf16.mxu0 %v2134
      %2192 = vmatpush1.bf16.msra.mxu0 %v2133
      %2193 = vmatprep.subr.bf16.mxu0 %v2132
      %2194 = vmatpush1.bf16.msra.mxu0 %v2131
      %2195 = vmatprep.subr.bf16.mxu0 %v2130
      %2196 = vmatpush1.bf16.msra.mxu0 %v2129
      %2197 = vmatprep.subr.bf16.mxu0 %v2128
      %2198 = vmatpush1.bf16.msra.mxu0 %v2127
      %2199 = vmatprep.subr.bf16.mxu0 %v2126
      %2200 = vmatpush1.bf16.msra.mxu0 %v2125
      %2201 = vmatprep.subr.bf16.mxu0 %v2124
      %2202 = vmatpush1.bf16.msra.mxu0 %v2123
      %2203 = vmatprep.subr.bf16.mxu0 %v2154
      %2204 = vmatpush2.bf16.msra.mxu0 %v2153
      %2205 = vmatprep.subr.bf16.mxu0 %v2152
      %2206 = vmatpush2.bf16.msra.mxu0 %v2151
      %2207 = vmatprep.subr.bf16.mxu0 %v2150
      %2208 = vmatpush2.bf16.msra.mxu0 %v2149
      %2209 = vmatprep.subr.bf16.mxu0 %v2148
      %2210 = vmatpush2.bf16.msra.mxu0 %v2147
      %2211 = vmatprep.subr.bf16.mxu0 %v2146
      %2212 = vmatpush2.bf16.msra.mxu0 %v2145
      %2213 = vmatprep.subr.bf16.mxu0 %v2144
      %2214 = vmatpush2.bf16.msra.mxu0 %v2143
      %2215 = vmatprep.subr.bf16.mxu0 %v2142
      %2216 = vmatpush2.bf16.msra.mxu0 %v2141
      %2217 = vmatprep.subr.bf16.mxu0 %v2140
      %2218 = vmatpush2.bf16.msra.mxu0 %v2139
      %2219 = vmatprep.mubr.bf16.mxu0 %v2012
      %2220 = vmatmul.mubr.bf16.gmra.mxu0 %v2011
      %v2221 = vpop.f32.mrf.mxu0
      %v2222 = vadd.f32 0.0, %v2221
      %v2223 = vpop.f32.mrf.mxu0
      %v2224 = vadd.f32 0.0, %v2223
      %v2225 = vpop.f32.mrf.mxu0
      %v2226 = vadd.f32 0.0, %v2225
      %v2227 = vpop.f32.mrf.mxu0
      %v2228 = vadd.f32 0.0, %v2227
      %2229 = vmatprep.mubr.bf16.mxu0 %v2014
      %2230 = vmatmul.mubr.bf16.gmra.mxu0 %v2013
      %v2231 = vpop.f32.mrf.mxu0
      %v2232 = vadd.f32 0.0, %v2231
      %v2233 = vpop.f32.mrf.mxu0
      %v2234 = vadd.f32 0.0, %v2233
      %v2235 = vpop.f32.mrf.mxu0
      %v2236 = vadd.f32 0.0, %v2235
      %v2237 = vpop.f32.mrf.mxu0
      %v2238 = vadd.f32 0.0, %v2237
      %2239 = vmatprep.mubr.bf16.mxu0 %v2016
      %2240 = vmatmul.mubr.bf16.gmra.mxu0 %v2015
      %v2241 = vpop.f32.mrf.mxu0
      %v2242 = vadd.f32 0.0, %v2241
      %v2243 = vpop.f32.mrf.mxu0
      %v2244 = vadd.f32 0.0, %v2243
      %v2245 = vpop.f32.mrf.mxu0
      %v2246 = vadd.f32 0.0, %v2245
      %v2247 = vpop.f32.mrf.mxu0
      %v2248 = vadd.f32 0.0, %v2247
      %2249 = vmatprep.mubr.bf16.mxu0 %v2018
      %2250 = vmatmul.mubr.bf16.gmra.mxu0 %v2017
      %v2251 = vpop.f32.mrf.mxu0
      %v2252 = vadd.f32 0.0, %v2251
      %v2253 = vpop.f32.mrf.mxu0
      %v2254 = vadd.f32 0.0, %v2253
      %v2255 = vpop.f32.mrf.mxu0
      %v2256 = vadd.f32 0.0, %v2255
      %v2257 = vpop.f32.mrf.mxu0
      %v2258 = vadd.f32 0.0, %v2257
      %2259 = vdwg.mxu0
      %v2260 = vadd.f32 %v1818, %v2222
      %v2261 = vadd.f32 %v1819, %v2224
      %v2262 = vadd.f32 %v1820, %v2226
      %v2263 = vadd.f32 %v1821, %v2228
      %v2264 = vadd.f32 %v1822, %v2232
      %v2265 = vadd.f32 %v1823, %v2234
      %v2266 = vadd.f32 %v1824, %v2236
      %v2267 = vadd.f32 %v1825, %v2238
      %v2268 = vadd.f32 %v1826, %v2242
      %v2269 = vadd.f32 %v1827, %v2244
      %v2270 = vadd.f32 %v1828, %v2246
      %v2271 = vadd.f32 %v1829, %v2248
      %v2272 = vadd.f32 %v1830, %v2252
      %v2273 = vadd.f32 %v1831, %v2254
      %v2274 = vadd.f32 %v1832, %v2256
      %v2275 = vadd.f32 %v1833, %v2258
      %v2276 = vld [vmem:[%s1503] sm:$0xee]
      %v2277 = vld [vmem:[%s1503 + $0x10] sm:$0xee]
      %v2278 = vld [vmem:[%s1503 + $0x20] sm:$0xee]
      %v2279 = vld [vmem:[%s1503 + $0x30] sm:$0xee]
      %v2280 = vld [vmem:[%s1503 + $0x40] sm:$0xee]
      %v2281 = vld [vmem:[%s1503 + $0x50] sm:$0xee]
      %v2282 = vld [vmem:[%s1503 + $0x60] sm:$0xee]
      %v2283 = vld [vmem:[%s1503 + $0x70] sm:$0xee]
      %v2300 = vrot.slane %v2276, 5
      %v2301 = vrot.slane %v2300, 4
      %v2302 = vrot.slane %v1835, 5
      %v2303 = vsel %vm1156, %v2301, %v2302
      %v2304 = vrot.slane %v2277, 5
      %v2305 = vrot.slane %v2304, 4
      %v2306 = vrot.slane %v1837, 5
      %v2307 = vsel %vm1156, %v2305, %v2306
      %v2308 = vrot.slane %v2278, 5
      %v2309 = vrot.slane %v2308, 4
      %v2310 = vrot.slane %v1839, 5
      %v2311 = vsel %vm1156, %v2309, %v2310
      %v2312 = vrot.slane %v2279, 5
      %v2313 = vrot.slane %v2312, 4
      %v2314 = vrot.slane %v1841, 5
      %v2315 = vsel %vm1156, %v2313, %v2314
      %v2316 = vrot.slane %v2280, 5
      %v2317 = vrot.slane %v2316, 4
      %v2318 = vrot.slane %v1843, 5
      %v2319 = vsel %vm1156, %v2317, %v2318
      %v2320 = vrot.slane %v2281, 5
      %v2321 = vrot.slane %v2320, 4
      %v2322 = vrot.slane %v1845, 5
      %v2323 = vsel %vm1156, %v2321, %v2322
      %v2324 = vrot.slane %v2282, 5
      %v2325 = vrot.slane %v2324, 4
      %v2326 = vrot.slane %v1847, 5
      %v2327 = vsel %vm1156, %v2325, %v2326
      %v2328 = vrot.slane %v2283, 5
      %v2329 = vrot.slane %v2328, 4
      %v2330 = vrot.slane %v1849, 5
      %v2331 = vsel %vm1156, %v2329, %v2330
      %s2332 = scalar_lea.vmem %s210, 1280
      %v2333 = vld [vmem:[%s2332] sm:$0xff]
      %v2334 = vld [vmem:[%s2332 + $0x8] sm:$0xff]
      %v2335 = vld [vmem:[%s2332 + $0x10] sm:$0xff]
      %v2336 = vld [vmem:[%s2332 + $0x18] sm:$0xff]
      %v2337 = vld [vmem:[%s2332 + $0x20] sm:$0xff]
      %v2338 = vld [vmem:[%s2332 + $0x28] sm:$0xff]
      %v2339 = vld [vmem:[%s2332 + $0x30] sm:$0xff]
      %v2340 = vld [vmem:[%s2332 + $0x38] sm:$0xff]
      %v2341 = vld [vmem:[%s2332 + $0x40] sm:$0xff]
      %v2342 = vld [vmem:[%s2332 + $0x48] sm:$0xff]
      %v2343 = vld [vmem:[%s2332 + $0x50] sm:$0xff]
      %v2344 = vld [vmem:[%s2332 + $0x58] sm:$0xff]
      %v2345 = vld [vmem:[%s2332 + $0x60] sm:$0xff]
      %v2346 = vld [vmem:[%s2332 + $0x68] sm:$0xff]
      %v2347 = vld [vmem:[%s2332 + $0x70] sm:$0xff]
      %v2348 = vld [vmem:[%s2332 + $0x78] sm:$0xff]
      %v2349 = vld [vmem:[%s2332 + $0x80] sm:$0xff]
      %v2350 = vld [vmem:[%s2332 + $0x88] sm:$0xff]
      %v2351 = vld [vmem:[%s2332 + $0x90] sm:$0xff]
      %v2352 = vld [vmem:[%s2332 + $0x98] sm:$0xff]
      %v2353 = vld [vmem:[%s2332 + $0xa0] sm:$0xff]
      %v2354 = vld [vmem:[%s2332 + $0xa8] sm:$0xff]
      %v2355 = vld [vmem:[%s2332 + $0xb0] sm:$0xff]
      %v2356 = vld [vmem:[%s2332 + $0xb8] sm:$0xff]
      %v2357 = vld [vmem:[%s2332 + $0xc0] sm:$0xff]
      %v2358 = vld [vmem:[%s2332 + $0xc8] sm:$0xff]
      %v2359 = vld [vmem:[%s2332 + $0xd0] sm:$0xff]
      %v2360 = vld [vmem:[%s2332 + $0xd8] sm:$0xff]
      %v2361 = vld [vmem:[%s2332 + $0xe0] sm:$0xff]
      %v2362 = vld [vmem:[%s2332 + $0xe8] sm:$0xff]
      %v2363 = vld [vmem:[%s2332 + $0xf0] sm:$0xff]
      %v2364 = vld [vmem:[%s2332 + $0xf8] sm:$0xff]
      %v2365 = vunpack.c.l.b16 %v2303
      %v2366 = vunpack.c.h.b16 %v2303
      %v2367 = vunpack.c.l.b16 %v2307
      %v2368 = vunpack.c.h.b16 %v2307
      %v2369 = vunpack.c.l.b16 %v2311
      %v2370 = vunpack.c.h.b16 %v2311
      %v2371 = vunpack.c.l.b16 %v2315
      %v2372 = vunpack.c.h.b16 %v2315
      %v2373 = vunpack.c.l.b16 %v2319
      %v2374 = vunpack.c.h.b16 %v2319
      %v2375 = vunpack.c.l.b16 %v2323
      %v2376 = vunpack.c.h.b16 %v2323
      %v2377 = vunpack.c.l.b16 %v2327
      %v2378 = vunpack.c.h.b16 %v2327
      %v2379 = vunpack.c.l.b16 %v2331
      %v2380 = vunpack.c.h.b16 %v2331
      %v2381 = vpack.c.b16 %v2367, %v2365
      %v2382 = vpack.c.b16 %v2368, %v2366
      %v2383 = vpack.c.b16 %v2371, %v2369
      %v2384 = vpack.c.b16 %v2372, %v2370
      %v2385 = vpack.c.b16 %v2375, %v2373
      %v2386 = vpack.c.b16 %v2376, %v2374
      %v2387 = vpack.c.b16 %v2379, %v2377
      %v2388 = vpack.c.b16 %v2380, %v2378
      %v2429 = vunpack.c.l.b16 %v2333
      %v2430 = vunpack.c.h.b16 %v2333
      %v2431 = vunpack.c.l.b16 %v2334
      %v2432 = vunpack.c.h.b16 %v2334
      %v2433 = vunpack.c.l.b16 %v2335
      %v2434 = vunpack.c.h.b16 %v2335
      %v2435 = vunpack.c.l.b16 %v2336
      %v2436 = vunpack.c.h.b16 %v2336
      %v2437 = vunpack.c.l.b16 %v2337
      %v2438 = vunpack.c.h.b16 %v2337
      %v2439 = vunpack.c.l.b16 %v2338
      %v2440 = vunpack.c.h.b16 %v2338
      %v2441 = vunpack.c.l.b16 %v2339
      %v2442 = vunpack.c.h.b16 %v2339
      %v2443 = vunpack.c.l.b16 %v2340
      %v2444 = vunpack.c.h.b16 %v2340
      %v2445 = vunpack.c.l.b16 %v2341
      %v2446 = vunpack.c.h.b16 %v2341
      %v2447 = vunpack.c.l.b16 %v2342
      %v2448 = vunpack.c.h.b16 %v2342
      %v2449 = vunpack.c.l.b16 %v2343
      %v2450 = vunpack.c.h.b16 %v2343
      %v2451 = vunpack.c.l.b16 %v2344
      %v2452 = vunpack.c.h.b16 %v2344
      %v2453 = vunpack.c.l.b16 %v2345
      %v2454 = vunpack.c.h.b16 %v2345
      %v2455 = vunpack.c.l.b16 %v2346
      %v2456 = vunpack.c.h.b16 %v2346
      %v2457 = vunpack.c.l.b16 %v2347
      %v2458 = vunpack.c.h.b16 %v2347
      %v2459 = vunpack.c.l.b16 %v2348
      %v2460 = vunpack.c.h.b16 %v2348
      %v2461 = vunpack.c.l.b16 %v2349
      %v2462 = vunpack.c.h.b16 %v2349
      %v2463 = vunpack.c.l.b16 %v2350
      %v2464 = vunpack.c.h.b16 %v2350
      %v2465 = vunpack.c.l.b16 %v2351
      %v2466 = vunpack.c.h.b16 %v2351
      %v2467 = vunpack.c.l.b16 %v2352
      %v2468 = vunpack.c.h.b16 %v2352
      %v2469 = vunpack.c.l.b16 %v2353
      %v2470 = vunpack.c.h.b16 %v2353
      %v2471 = vunpack.c.l.b16 %v2354
      %v2472 = vunpack.c.h.b16 %v2354
      %v2473 = vunpack.c.l.b16 %v2355
      %v2474 = vunpack.c.h.b16 %v2355
      %v2475 = vunpack.c.l.b16 %v2356
      %v2476 = vunpack.c.h.b16 %v2356
      %v2477 = vunpack.c.l.b16 %v2357
      %v2478 = vunpack.c.h.b16 %v2357
      %v2479 = vunpack.c.l.b16 %v2358
      %v2480 = vunpack.c.h.b16 %v2358
      %v2481 = vunpack.c.l.b16 %v2359
      %v2482 = vunpack.c.h.b16 %v2359
      %v2483 = vunpack.c.l.b16 %v2360
      %v2484 = vunpack.c.h.b16 %v2360
      %v2485 = vunpack.c.l.b16 %v2361
      %v2486 = vunpack.c.h.b16 %v2361
      %v2487 = vunpack.c.l.b16 %v2362
      %v2488 = vunpack.c.h.b16 %v2362
      %v2489 = vunpack.c.l.b16 %v2363
      %v2490 = vunpack.c.h.b16 %v2363
      %v2491 = vunpack.c.l.b16 %v2364
      %v2492 = vunpack.c.h.b16 %v2364
      %v2493 = vpack.c.b16 %v2431, %v2429
      %v2494 = vpack.c.b16 %v2432, %v2430
      %v2495 = vpack.c.b16 %v2435, %v2433
      %v2496 = vpack.c.b16 %v2436, %v2434
      %v2497 = vpack.c.b16 %v2439, %v2437
      %v2498 = vpack.c.b16 %v2440, %v2438
      %v2499 = vpack.c.b16 %v2443, %v2441
      %v2500 = vpack.c.b16 %v2444, %v2442
      %v2501 = vpack.c.b16 %v2447, %v2445
      %v2502 = vpack.c.b16 %v2448, %v2446
      %v2503 = vpack.c.b16 %v2451, %v2449
      %v2504 = vpack.c.b16 %v2452, %v2450
      %v2505 = vpack.c.b16 %v2455, %v2453
      %v2506 = vpack.c.b16 %v2456, %v2454
      %v2507 = vpack.c.b16 %v2459, %v2457
      %v2508 = vpack.c.b16 %v2460, %v2458
      %v2509 = vpack.c.b16 %v2463, %v2461
      %v2510 = vpack.c.b16 %v2464, %v2462
      %v2511 = vpack.c.b16 %v2467, %v2465
      %v2512 = vpack.c.b16 %v2468, %v2466
      %v2513 = vpack.c.b16 %v2471, %v2469
      %v2514 = vpack.c.b16 %v2472, %v2470
      %v2515 = vpack.c.b16 %v2475, %v2473
      %v2516 = vpack.c.b16 %v2476, %v2474
      %v2517 = vpack.c.b16 %v2479, %v2477
      %v2518 = vpack.c.b16 %v2480, %v2478
      %v2519 = vpack.c.b16 %v2483, %v2481
      %v2520 = vpack.c.b16 %v2484, %v2482
      %v2521 = vpack.c.b16 %v2487, %v2485
      %v2522 = vpack.c.b16 %v2488, %v2486
      %v2523 = vpack.c.b16 %v2491, %v2489
      %v2524 = vpack.c.b16 %v2492, %v2490
      %2557 = vmatprep.subr.bf16.mxu0 %v2508
      %2558 = vmatpush1.bf16.msra.mxu0 %v2507
      %2559 = vmatprep.subr.bf16.mxu0 %v2506
      %2560 = vmatpush1.bf16.msra.mxu0 %v2505
      %2561 = vmatprep.subr.bf16.mxu0 %v2504
      %2562 = vmatpush1.bf16.msra.mxu0 %v2503
      %2563 = vmatprep.subr.bf16.mxu0 %v2502
      %2564 = vmatpush1.bf16.msra.mxu0 %v2501
      %2565 = vmatprep.subr.bf16.mxu0 %v2500
      %2566 = vmatpush1.bf16.msra.mxu0 %v2499
      %2567 = vmatprep.subr.bf16.mxu0 %v2498
      %2568 = vmatpush1.bf16.msra.mxu0 %v2497
      %2569 = vmatprep.subr.bf16.mxu0 %v2496
      %2570 = vmatpush1.bf16.msra.mxu0 %v2495
      %2571 = vmatprep.subr.bf16.mxu0 %v2494
      %2572 = vmatpush1.bf16.msra.mxu0 %v2493
      %2573 = vmatprep.subr.bf16.mxu0 %v2524
      %2574 = vmatpush2.bf16.msra.mxu0 %v2523
      %2575 = vmatprep.subr.bf16.mxu0 %v2522
      %2576 = vmatpush2.bf16.msra.mxu0 %v2521
      %2577 = vmatprep.subr.bf16.mxu0 %v2520
      %2578 = vmatpush2.bf16.msra.mxu0 %v2519
      %2579 = vmatprep.subr.bf16.mxu0 %v2518
      %2580 = vmatpush2.bf16.msra.mxu0 %v2517
      %2581 = vmatprep.subr.bf16.mxu0 %v2516
      %2582 = vmatpush2.bf16.msra.mxu0 %v2515
      %2583 = vmatprep.subr.bf16.mxu0 %v2514
      %2584 = vmatpush2.bf16.msra.mxu0 %v2513
      %2585 = vmatprep.subr.bf16.mxu0 %v2512
      %2586 = vmatpush2.bf16.msra.mxu0 %v2511
      %2587 = vmatprep.subr.bf16.mxu0 %v2510
      %2588 = vmatpush2.bf16.msra.mxu0 %v2509
      %2589 = vmatprep.mubr.bf16.mxu0 %v2382
      %2590 = vmatmul.mubr.bf16.gmra.mxu0 %v2381
      %v2591 = vpop.f32.mrf.mxu0
      %v2592 = vadd.f32 0.0, %v2591
      %v2593 = vpop.f32.mrf.mxu0
      %v2594 = vadd.f32 0.0, %v2593
      %v2595 = vpop.f32.mrf.mxu0
      %v2596 = vadd.f32 0.0, %v2595
      %v2597 = vpop.f32.mrf.mxu0
      %v2598 = vadd.f32 0.0, %v2597
      %2599 = vmatprep.mubr.bf16.mxu0 %v2384
      %2600 = vmatmul.mubr.bf16.gmra.mxu0 %v2383
      %v2601 = vpop.f32.mrf.mxu0
      %v2602 = vadd.f32 0.0, %v2601
      %v2603 = vpop.f32.mrf.mxu0
      %v2604 = vadd.f32 0.0, %v2603
      %v2605 = vpop.f32.mrf.mxu0
      %v2606 = vadd.f32 0.0, %v2605
      %v2607 = vpop.f32.mrf.mxu0
      %v2608 = vadd.f32 0.0, %v2607
      %2609 = vmatprep.mubr.bf16.mxu0 %v2386
      %2610 = vmatmul.mubr.bf16.gmra.mxu0 %v2385
      %v2611 = vpop.f32.mrf.mxu0
      %v2612 = vadd.f32 0.0, %v2611
      %v2613 = vpop.f32.mrf.mxu0
      %v2614 = vadd.f32 0.0, %v2613
      %v2615 = vpop.f32.mrf.mxu0
      %v2616 = vadd.f32 0.0, %v2615
      %v2617 = vpop.f32.mrf.mxu0
      %v2618 = vadd.f32 0.0, %v2617
      %2619 = vmatprep.mubr.bf16.mxu0 %v2388
      %2620 = vmatmul.mubr.bf16.gmra.mxu0 %v2387
      %v2621 = vpop.f32.mrf.mxu0
      %v2622 = vadd.f32 0.0, %v2621
      %v2623 = vpop.f32.mrf.mxu0
      %v2624 = vadd.f32 0.0, %v2623
      %v2625 = vpop.f32.mrf.mxu0
      %v2626 = vadd.f32 0.0, %v2625
      %v2627 = vpop.f32.mrf.mxu0
      %v2628 = vadd.f32 0.0, %v2627
      %2629 = vdwg.mxu0
      %v2630 = vadd.f32 %v2260, %v2592
      %v2631 = vadd.f32 %v2261, %v2594
      %v2632 = vadd.f32 %v2262, %v2596
      %v2633 = vadd.f32 %v2263, %v2598
      %v2634 = vadd.f32 %v2264, %v2602
      %v2635 = vadd.f32 %v2265, %v2604
      %v2636 = vadd.f32 %v2266, %v2606
      %v2637 = vadd.f32 %v2267, %v2608
      %v2638 = vadd.f32 %v2268, %v2612
      %v2639 = vadd.f32 %v2269, %v2614
      %v2640 = vadd.f32 %v2270, %v2616
      %v2641 = vadd.f32 %v2271, %v2618
      %v2642 = vadd.f32 %v2272, %v2622
      %v2643 = vadd.f32 %v2273, %v2624
      %v2644 = vadd.f32 %v2274, %v2626
      %v2645 = vadd.f32 %v2275, %v2628
      %s2646 = scalar_lea.vmem [#allocation2], 32
      %v2647 = vld [vmem:[%s2646] sm:$0xff]
      %v2648 = vld [vmem:[%s2646 + $0x10] sm:$0xff]
      %v2649 = vld [vmem:[%s2646 + $0x20] sm:$0xff]
      %v2650 = vld [vmem:[%s2646 + $0x30] sm:$0xff]
      %v2651 = vld [vmem:[%s2646 + $0x40] sm:$0xff]
      %v2652 = vld [vmem:[%s2646 + $0x50] sm:$0xff]
      %v2653 = vld [vmem:[%s2646 + $0x60] sm:$0xff]
      %v2654 = vld [vmem:[%s2646 + $0x70] sm:$0xff]
      %s2655 = scalar_lea.vmem %s210, 1536
      %v2656 = vld [vmem:[%s2655] sm:$0xff]
      %v2657 = vld [vmem:[%s2655 + $0x8] sm:$0xff]
      %v2658 = vld [vmem:[%s2655 + $0x10] sm:$0xff]
      %v2659 = vld [vmem:[%s2655 + $0x18] sm:$0xff]
      %v2660 = vld [vmem:[%s2655 + $0x20] sm:$0xff]
      %v2661 = vld [vmem:[%s2655 + $0x28] sm:$0xff]
      %v2662 = vld [vmem:[%s2655 + $0x30] sm:$0xff]
      %v2663 = vld [vmem:[%s2655 + $0x38] sm:$0xff]
      %v2664 = vld [vmem:[%s2655 + $0x40] sm:$0xff]
      %v2665 = vld [vmem:[%s2655 + $0x48] sm:$0xff]
      %v2666 = vld [vmem:[%s2655 + $0x50] sm:$0xff]
      %v2667 = vld [vmem:[%s2655 + $0x58] sm:$0xff]
      %v2668 = vld [vmem:[%s2655 + $0x60] sm:$0xff]
      %v2669 = vld [vmem:[%s2655 + $0x68] sm:$0xff]
      %v2670 = vld [vmem:[%s2655 + $0x70] sm:$0xff]
      %v2671 = vld [vmem:[%s2655 + $0x78] sm:$0xff]
      %v2672 = vld [vmem:[%s2655 + $0x80] sm:$0xff]
      %v2673 = vld [vmem:[%s2655 + $0x88] sm:$0xff]
      %v2674 = vld [vmem:[%s2655 + $0x90] sm:$0xff]
      %v2675 = vld [vmem:[%s2655 + $0x98] sm:$0xff]
      %v2676 = vld [vmem:[%s2655 + $0xa0] sm:$0xff]
      %v2677 = vld [vmem:[%s2655 + $0xa8] sm:$0xff]
      %v2678 = vld [vmem:[%s2655 + $0xb0] sm:$0xff]
      %v2679 = vld [vmem:[%s2655 + $0xb8] sm:$0xff]
      %v2680 = vld [vmem:[%s2655 + $0xc0] sm:$0xff]
      %v2681 = vld [vmem:[%s2655 + $0xc8] sm:$0xff]
      %v2682 = vld [vmem:[%s2655 + $0xd0] sm:$0xff]
      %v2683 = vld [vmem:[%s2655 + $0xd8] sm:$0xff]
      %v2684 = vld [vmem:[%s2655 + $0xe0] sm:$0xff]
      %v2685 = vld [vmem:[%s2655 + $0xe8] sm:$0xff]
      %v2686 = vld [vmem:[%s2655 + $0xf0] sm:$0xff]
      %v2687 = vld [vmem:[%s2655 + $0xf8] sm:$0xff]
      %v2696 = vunpack.c.l.b16 %v2647
      %v2697 = vunpack.c.h.b16 %v2647
      %v2698 = vunpack.c.l.b16 %v2648
      %v2699 = vunpack.c.h.b16 %v2648
      %v2700 = vunpack.c.l.b16 %v2649
      %v2701 = vunpack.c.h.b16 %v2649
      %v2702 = vunpack.c.l.b16 %v2650
      %v2703 = vunpack.c.h.b16 %v2650
      %v2704 = vunpack.c.l.b16 %v2651
      %v2705 = vunpack.c.h.b16 %v2651
      %v2706 = vunpack.c.l.b16 %v2652
      %v2707 = vunpack.c.h.b16 %v2652
      %v2708 = vunpack.c.l.b16 %v2653
      %v2709 = vunpack.c.h.b16 %v2653
      %v2710 = vunpack.c.l.b16 %v2654
      %v2711 = vunpack.c.h.b16 %v2654
      %v2712 = vpack.c.b16 %v2698, %v2696
      %v2713 = vpack.c.b16 %v2699, %v2697
      %v2714 = vpack.c.b16 %v2702, %v2700
      %v2715 = vpack.c.b16 %v2703, %v2701
      %v2716 = vpack.c.b16 %v2706, %v2704
      %v2717 = vpack.c.b16 %v2707, %v2705
      %v2718 = vpack.c.b16 %v2710, %v2708
      %v2719 = vpack.c.b16 %v2711, %v2709
      %v2760 = vunpack.c.l.b16 %v2656
      %v2761 = vunpack.c.h.b16 %v2656
      %v2762 = vunpack.c.l.b16 %v2657
      %v2763 = vunpack.c.h.b16 %v2657
      %v2764 = vunpack.c.l.b16 %v2658
      %v2765 = vunpack.c.h.b16 %v2658
      %v2766 = vunpack.c.l.b16 %v2659
      %v2767 = vunpack.c.h.b16 %v2659
      %v2768 = vunpack.c.l.b16 %v2660
      %v2769 = vunpack.c.h.b16 %v2660
      %v2770 = vunpack.c.l.b16 %v2661
      %v2771 = vunpack.c.h.b16 %v2661
      %v2772 = vunpack.c.l.b16 %v2662
      %v2773 = vunpack.c.h.b16 %v2662
      %v2774 = vunpack.c.l.b16 %v2663
      %v2775 = vunpack.c.h.b16 %v2663
      %v2776 = vunpack.c.l.b16 %v2664
      %v2777 = vunpack.c.h.b16 %v2664
      %v2778 = vunpack.c.l.b16 %v2665
      %v2779 = vunpack.c.h.b16 %v2665
      %v2780 = vunpack.c.l.b16 %v2666
      %v2781 = vunpack.c.h.b16 %v2666
      %v2782 = vunpack.c.l.b16 %v2667
      %v2783 = vunpack.c.h.b16 %v2667
      %v2784 = vunpack.c.l.b16 %v2668
      %v2785 = vunpack.c.h.b16 %v2668
      %v2786 = vunpack.c.l.b16 %v2669
      %v2787 = vunpack.c.h.b16 %v2669
      %v2788 = vunpack.c.l.b16 %v2670
      %v2789 = vunpack.c.h.b16 %v2670
      %v2790 = vunpack.c.l.b16 %v2671
      %v2791 = vunpack.c.h.b16 %v2671
      %v2792 = vunpack.c.l.b16 %v2672
      %v2793 = vunpack.c.h.b16 %v2672
      %v2794 = vunpack.c.l.b16 %v2673
      %v2795 = vunpack.c.h.b16 %v2673
      %v2796 = vunpack.c.l.b16 %v2674
      %v2797 = vunpack.c.h.b16 %v2674
      %v2798 = vunpack.c.l.b16 %v2675
      %v2799 = vunpack.c.h.b16 %v2675
      %v2800 = vunpack.c.l.b16 %v2676
      %v2801 = vunpack.c.h.b16 %v2676
      %v2802 = vunpack.c.l.b16 %v2677
      %v2803 = vunpack.c.h.b16 %v2677
      %v2804 = vunpack.c.l.b16 %v2678
      %v2805 = vunpack.c.h.b16 %v2678
      %v2806 = vunpack.c.l.b16 %v2679
      %v2807 = vunpack.c.h.b16 %v2679
      %v2808 = vunpack.c.l.b16 %v2680
      %v2809 = vunpack.c.h.b16 %v2680
      %v2810 = vunpack.c.l.b16 %v2681
      %v2811 = vunpack.c.h.b16 %v2681
      %v2812 = vunpack.c.l.b16 %v2682
      %v2813 = vunpack.c.h.b16 %v2682
      %v2814 = vunpack.c.l.b16 %v2683
      %v2815 = vunpack.c.h.b16 %v2683
      %v2816 = vunpack.c.l.b16 %v2684
      %v2817 = vunpack.c.h.b16 %v2684
      %v2818 = vunpack.c.l.b16 %v2685
      %v2819 = vunpack.c.h.b16 %v2685
      %v2820 = vunpack.c.l.b16 %v2686
      %v2821 = vunpack.c.h.b16 %v2686
      %v2822 = vunpack.c.l.b16 %v2687
      %v2823 = vunpack.c.h.b16 %v2687
      %v2824 = vpack.c.b16 %v2762, %v2760
      %v2825 = vpack.c.b16 %v2763, %v2761
      %v2826 = vpack.c.b16 %v2766, %v2764
      %v2827 = vpack.c.b16 %v2767, %v2765
      %v2828 = vpack.c.b16 %v2770, %v2768
      %v2829 = vpack.c.b16 %v2771, %v2769
      %v2830 = vpack.c.b16 %v2774, %v2772
      %v2831 = vpack.c.b16 %v2775, %v2773
      %v2832 = vpack.c.b16 %v2778, %v2776
      %v2833 = vpack.c.b16 %v2779, %v2777
      %v2834 = vpack.c.b16 %v2782, %v2780
      %v2835 = vpack.c.b16 %v2783, %v2781
      %v2836 = vpack.c.b16 %v2786, %v2784
      %v2837 = vpack.c.b16 %v2787, %v2785
      %v2838 = vpack.c.b16 %v2790, %v2788
      %v2839 = vpack.c.b16 %v2791, %v2789
      %v2840 = vpack.c.b16 %v2794, %v2792
      %v2841 = vpack.c.b16 %v2795, %v2793
      %v2842 = vpack.c.b16 %v2798, %v2796
      %v2843 = vpack.c.b16 %v2799, %v2797
      %v2844 = vpack.c.b16 %v2802, %v2800
      %v2845 = vpack.c.b16 %v2803, %v2801
      %v2846 = vpack.c.b16 %v2806, %v2804
      %v2847 = vpack.c.b16 %v2807, %v2805
      %v2848 = vpack.c.b16 %v2810, %v2808
      %v2849 = vpack.c.b16 %v2811, %v2809
      %v2850 = vpack.c.b16 %v2814, %v2812
      %v2851 = vpack.c.b16 %v2815, %v2813
      %v2852 = vpack.c.b16 %v2818, %v2816
      %v2853 = vpack.c.b16 %v2819, %v2817
      %v2854 = vpack.c.b16 %v2822, %v2820
      %v2855 = vpack.c.b16 %v2823, %v2821
      %2888 = vmatprep.subr.bf16.mxu0 %v2839
      %2889 = vmatpush1.bf16.msra.mxu0 %v2838
      %2890 = vmatprep.subr.bf16.mxu0 %v2837
      %2891 = vmatpush1.bf16.msra.mxu0 %v2836
      %2892 = vmatprep.subr.bf16.mxu0 %v2835
      %2893 = vmatpush1.bf16.msra.mxu0 %v2834
      %2894 = vmatprep.subr.bf16.mxu0 %v2833
      %2895 = vmatpush1.bf16.msra.mxu0 %v2832
      %2896 = vmatprep.subr.bf16.mxu0 %v2831
      %2897 = vmatpush1.bf16.msra.mxu0 %v2830
      %2898 = vmatprep.subr.bf16.mxu0 %v2829
      %2899 = vmatpush1.bf16.msra.mxu0 %v2828
      %2900 = vmatprep.subr.bf16.mxu0 %v2827
      %2901 = vmatpush1.bf16.msra.mxu0 %v2826
      %2902 = vmatprep.subr.bf16.mxu0 %v2825
      %2903 = vmatpush1.bf16.msra.mxu0 %v2824
      %2904 = vmatprep.subr.bf16.mxu0 %v2855
      %2905 = vmatpush2.bf16.msra.mxu0 %v2854
      %2906 = vmatprep.subr.bf16.mxu0 %v2853
      %2907 = vmatpush2.bf16.msra.mxu0 %v2852
      %2908 = vmatprep.subr.bf16.mxu0 %v2851
      %2909 = vmatpush2.bf16.msra.mxu0 %v2850
      %2910 = vmatprep.subr.bf16.mxu0 %v2849
      %2911 = vmatpush2.bf16.msra.mxu0 %v2848
      %2912 = vmatprep.subr.bf16.mxu0 %v2847
      %2913 = vmatpush2.bf16.msra.mxu0 %v2846
      %2914 = vmatprep.subr.bf16.mxu0 %v2845
      %2915 = vmatpush2.bf16.msra.mxu0 %v2844
      %2916 = vmatprep.subr.bf16.mxu0 %v2843
      %2917 = vmatpush2.bf16.msra.mxu0 %v2842
      %2918 = vmatprep.subr.bf16.mxu0 %v2841
      %2919 = vmatpush2.bf16.msra.mxu0 %v2840
      %2920 = vmatprep.mubr.bf16.mxu0 %v2713
      %2921 = vmatmul.mubr.bf16.gmra.mxu0 %v2712
      %v2922 = vpop.f32.mrf.mxu0
      %v2923 = vadd.f32 0.0, %v2922
      %v2924 = vpop.f32.mrf.mxu0
      %v2925 = vadd.f32 0.0, %v2924
      %v2926 = vpop.f32.mrf.mxu0
      %v2927 = vadd.f32 0.0, %v2926
      %v2928 = vpop.f32.mrf.mxu0
      %v2929 = vadd.f32 0.0, %v2928
      %2930 = vmatprep.mubr.bf16.mxu0 %v2715
      %2931 = vmatmul.mubr.bf16.gmra.mxu0 %v2714
      %v2932 = vpop.f32.mrf.mxu0
      %v2933 = vadd.f32 0.0, %v2932
      %v2934 = vpop.f32.mrf.mxu0
      %v2935 = vadd.f32 0.0, %v2934
      %v2936 = vpop.f32.mrf.mxu0
      %v2937 = vadd.f32 0.0, %v2936
      %v2938 = vpop.f32.mrf.mxu0
      %v2939 = vadd.f32 0.0, %v2938
      %2940 = vmatprep.mubr.bf16.mxu0 %v2717
      %2941 = vmatmul.mubr.bf16.gmra.mxu0 %v2716
      %v2942 = vpop.f32.mrf.mxu0
      %v2943 = vadd.f32 0.0, %v2942
      %v2944 = vpop.f32.mrf.mxu0
      %v2945 = vadd.f32 0.0, %v2944
      %v2946 = vpop.f32.mrf.mxu0
      %v2947 = vadd.f32 0.0, %v2946
      %v2948 = vpop.f32.mrf.mxu0
      %v2949 = vadd.f32 0.0, %v2948
      %2950 = vmatprep.mubr.bf16.mxu0 %v2719
      %2951 = vmatmul.mubr.bf16.gmra.mxu0 %v2718
      %v2952 = vpop.f32.mrf.mxu0
      %v2953 = vadd.f32 0.0, %v2952
      %v2954 = vpop.f32.mrf.mxu0
      %v2955 = vadd.f32 0.0, %v2954
      %v2956 = vpop.f32.mrf.mxu0
      %v2957 = vadd.f32 0.0, %v2956
      %v2958 = vpop.f32.mrf.mxu0
      %v2959 = vadd.f32 0.0, %v2958
      %2960 = vdwg.mxu0
      %v2961 = vadd.f32 %v2630, %v2923
      %v2962 = vadd.f32 %v2631, %v2925
      %v2963 = vadd.f32 %v2632, %v2927
      %v2964 = vadd.f32 %v2633, %v2929
      %v2965 = vadd.f32 %v2634, %v2933
      %v2966 = vadd.f32 %v2635, %v2935
      %v2967 = vadd.f32 %v2636, %v2937
      %v2968 = vadd.f32 %v2637, %v2939
      %v2969 = vadd.f32 %v2638, %v2943
      %v2970 = vadd.f32 %v2639, %v2945
      %v2971 = vadd.f32 %v2640, %v2947
      %v2972 = vadd.f32 %v2641, %v2949
      %v2973 = vadd.f32 %v2642, %v2953
      %v2974 = vadd.f32 %v2643, %v2955
      %v2975 = vadd.f32 %v2644, %v2957
      %v2976 = vadd.f32 %v2645, %v2959
      %v2977 = vld [vmem:[%s2646] sm:$0xff]
      %v2978 = vld [vmem:[%s2646 + $0x8] sm:$0x11]
      %v2979 = vld [vmem:[%s2646 + $0x10] sm:$0xff]
      %v2980 = vld [vmem:[%s2646 + $0x18] sm:$0x11]
      %v2981 = vld [vmem:[%s2646 + $0x20] sm:$0xff]
      %v2982 = vld [vmem:[%s2646 + $0x28] sm:$0x11]
      %v2983 = vld [vmem:[%s2646 + $0x30] sm:$0xff]
      %v2984 = vld [vmem:[%s2646 + $0x38] sm:$0x11]
      %v2985 = vld [vmem:[%s2646 + $0x40] sm:$0xff]
      %v2986 = vld [vmem:[%s2646 + $0x48] sm:$0x11]
      %v2987 = vld [vmem:[%s2646 + $0x50] sm:$0xff]
      %v2988 = vld [vmem:[%s2646 + $0x58] sm:$0x11]
      %v2989 = vld [vmem:[%s2646 + $0x60] sm:$0xff]
      %v2990 = vld [vmem:[%s2646 + $0x68] sm:$0x11]
      %v2991 = vld [vmem:[%s2646 + $0x70] sm:$0xff]
      %v2992 = vld [vmem:[%s2646 + $0x78] sm:$0x11]
      %v2994 = vshrl.u32 %v2977, 16
      %v2996 = vrot.slane %v2994, 4
      %v2997 = vshll.u32 %v2977, 16
      %v2999 = vrot.slane %v2997, 5
      %v3000 = vor.u32 %v2996, %v2999
      %v3001 = vrot.slane %v3000, 4
      %v3003 = vshll.u32 %v2978, 16
      %v3005 = vrot.slane %v3003, 5
      %v3006 = vsel %vm446, %v3001, %v3005
      %v3008 = vshrl.u32 %v2979, 16
      %v3010 = vrot.slane %v3008, 4
      %v3011 = vshll.u32 %v2979, 16
      %v3013 = vrot.slane %v3011, 5
      %v3014 = vor.u32 %v3010, %v3013
      %v3015 = vrot.slane %v3014, 4
      %v3017 = vshll.u32 %v2980, 16
      %v3019 = vrot.slane %v3017, 5
      %v3020 = vsel %vm446, %v3015, %v3019
      %v3022 = vshrl.u32 %v2981, 16
      %v3024 = vrot.slane %v3022, 4
      %v3025 = vshll.u32 %v2981, 16
      %v3027 = vrot.slane %v3025, 5
      %v3028 = vor.u32 %v3024, %v3027
      %v3029 = vrot.slane %v3028, 4
      %v3031 = vshll.u32 %v2982, 16
      %v3033 = vrot.slane %v3031, 5
      %v3034 = vsel %vm446, %v3029, %v3033
      %v3036 = vshrl.u32 %v2983, 16
      %v3038 = vrot.slane %v3036, 4
      %v3039 = vshll.u32 %v2983, 16
      %v3041 = vrot.slane %v3039, 5
      %v3042 = vor.u32 %v3038, %v3041
      %v3043 = vrot.slane %v3042, 4
      %v3045 = vshll.u32 %v2984, 16
      %v3047 = vrot.slane %v3045, 5
      %v3048 = vsel %vm446, %v3043, %v3047
      %v3050 = vshrl.u32 %v2985, 16
      %v3052 = vrot.slane %v3050, 4
      %v3053 = vshll.u32 %v2985, 16
      %v3055 = vrot.slane %v3053, 5
      %v3056 = vor.u32 %v3052, %v3055
      %v3057 = vrot.slane %v3056, 4
      %v3059 = vshll.u32 %v2986, 16
      %v3061 = vrot.slane %v3059, 5
      %v3062 = vsel %vm446, %v3057, %v3061
      %v3064 = vshrl.u32 %v2987, 16
      %v3066 = vrot.slane %v3064, 4
      %v3067 = vshll.u32 %v2987, 16
      %v3069 = vrot.slane %v3067, 5
      %v3070 = vor.u32 %v3066, %v3069
      %v3071 = vrot.slane %v3070, 4
      %v3073 = vshll.u32 %v2988, 16
      %v3075 = vrot.slane %v3073, 5
      %v3076 = vsel %vm446, %v3071, %v3075
      %v3078 = vshrl.u32 %v2989, 16
      %v3080 = vrot.slane %v3078, 4
      %v3081 = vshll.u32 %v2989, 16
      %v3083 = vrot.slane %v3081, 5
      %v3084 = vor.u32 %v3080, %v3083
      %v3085 = vrot.slane %v3084, 4
      %v3087 = vshll.u32 %v2990, 16
      %v3089 = vrot.slane %v3087, 5
      %v3090 = vsel %vm446, %v3085, %v3089
      %v3092 = vshrl.u32 %v2991, 16
      %v3094 = vrot.slane %v3092, 4
      %v3095 = vshll.u32 %v2991, 16
      %v3097 = vrot.slane %v3095, 5
      %v3098 = vor.u32 %v3094, %v3097
      %v3099 = vrot.slane %v3098, 4
      %v3101 = vshll.u32 %v2992, 16
      %v3103 = vrot.slane %v3101, 5
      %v3104 = vsel %vm446, %v3099, %v3103
      %s3105 = scalar_lea.vmem %s210, 1792
      %v3106 = vld [vmem:[%s3105] sm:$0xff]
      %v3107 = vld [vmem:[%s3105 + $0x8] sm:$0xff]
      %v3108 = vld [vmem:[%s3105 + $0x10] sm:$0xff]
      %v3109 = vld [vmem:[%s3105 + $0x18] sm:$0xff]
      %v3110 = vld [vmem:[%s3105 + $0x20] sm:$0xff]
      %v3111 = vld [vmem:[%s3105 + $0x28] sm:$0xff]
      %v3112 = vld [vmem:[%s3105 + $0x30] sm:$0xff]
      %v3113 = vld [vmem:[%s3105 + $0x38] sm:$0xff]
      %v3114 = vld [vmem:[%s3105 + $0x40] sm:$0xff]
      %v3115 = vld [vmem:[%s3105 + $0x48] sm:$0xff]
      %v3116 = vld [vmem:[%s3105 + $0x50] sm:$0xff]
      %v3117 = vld [vmem:[%s3105 + $0x58] sm:$0xff]
      %v3118 = vld [vmem:[%s3105 + $0x60] sm:$0xff]
      %v3119 = vld [vmem:[%s3105 + $0x68] sm:$0xff]
      %v3120 = vld [vmem:[%s3105 + $0x70] sm:$0xff]
      %v3121 = vld [vmem:[%s3105 + $0x78] sm:$0xff]
      %v3122 = vld [vmem:[%s3105 + $0x80] sm:$0xff]
      %v3123 = vld [vmem:[%s3105 + $0x88] sm:$0xff]
      %v3124 = vld [vmem:[%s3105 + $0x90] sm:$0xff]
      %v3125 = vld [vmem:[%s3105 + $0x98] sm:$0xff]
      %v3126 = vld [vmem:[%s3105 + $0xa0] sm:$0xff]
      %v3127 = vld [vmem:[%s3105 + $0xa8] sm:$0xff]
      %v3128 = vld [vmem:[%s3105 + $0xb0] sm:$0xff]
      %v3129 = vld [vmem:[%s3105 + $0xb8] sm:$0xff]
      %v3130 = vld [vmem:[%s3105 + $0xc0] sm:$0xff]
      %v3131 = vld [vmem:[%s3105 + $0xc8] sm:$0xff]
      %v3132 = vld [vmem:[%s3105 + $0xd0] sm:$0xff]
      %v3133 = vld [vmem:[%s3105 + $0xd8] sm:$0xff]
      %v3134 = vld [vmem:[%s3105 + $0xe0] sm:$0xff]
      %v3135 = vld [vmem:[%s3105 + $0xe8] sm:$0xff]
      %v3136 = vld [vmem:[%s3105 + $0xf0] sm:$0xff]
      %v3137 = vld [vmem:[%s3105 + $0xf8] sm:$0xff]
      %v3138 = vunpack.c.l.b16 %v3006
      %v3139 = vunpack.c.h.b16 %v3006
      %v3140 = vunpack.c.l.b16 %v3020
      %v3141 = vunpack.c.h.b16 %v3020
      %v3142 = vunpack.c.l.b16 %v3034
      %v3143 = vunpack.c.h.b16 %v3034
      %v3144 = vunpack.c.l.b16 %v3048
      %v3145 = vunpack.c.h.b16 %v3048
      %v3146 = vunpack.c.l.b16 %v3062
      %v3147 = vunpack.c.h.b16 %v3062
      %v3148 = vunpack.c.l.b16 %v3076
      %v3149 = vunpack.c.h.b16 %v3076
      %v3150 = vunpack.c.l.b16 %v3090
      %v3151 = vunpack.c.h.b16 %v3090
      %v3152 = vunpack.c.l.b16 %v3104
      %v3153 = vunpack.c.h.b16 %v3104
      %v3154 = vpack.c.b16 %v3140, %v3138
      %v3155 = vpack.c.b16 %v3141, %v3139
      %v3156 = vpack.c.b16 %v3144, %v3142
      %v3157 = vpack.c.b16 %v3145, %v3143
      %v3158 = vpack.c.b16 %v3148, %v3146
      %v3159 = vpack.c.b16 %v3149, %v3147
      %v3160 = vpack.c.b16 %v3152, %v3150
      %v3161 = vpack.c.b16 %v3153, %v3151
      %v3202 = vunpack.c.l.b16 %v3106
      %v3203 = vunpack.c.h.b16 %v3106
      %v3204 = vunpack.c.l.b16 %v3107
      %v3205 = vunpack.c.h.b16 %v3107
      %v3206 = vunpack.c.l.b16 %v3108
      %v3207 = vunpack.c.h.b16 %v3108
      %v3208 = vunpack.c.l.b16 %v3109
      %v3209 = vunpack.c.h.b16 %v3109
      %v3210 = vunpack.c.l.b16 %v3110
      %v3211 = vunpack.c.h.b16 %v3110
      %v3212 = vunpack.c.l.b16 %v3111
      %v3213 = vunpack.c.h.b16 %v3111
      %v3214 = vunpack.c.l.b16 %v3112
      %v3215 = vunpack.c.h.b16 %v3112
      %v3216 = vunpack.c.l.b16 %v3113
      %v3217 = vunpack.c.h.b16 %v3113
      %v3218 = vunpack.c.l.b16 %v3114
      %v3219 = vunpack.c.h.b16 %v3114
      %v3220 = vunpack.c.l.b16 %v3115
      %v3221 = vunpack.c.h.b16 %v3115
      %v3222 = vunpack.c.l.b16 %v3116
      %v3223 = vunpack.c.h.b16 %v3116
      %v3224 = vunpack.c.l.b16 %v3117
      %v3225 = vunpack.c.h.b16 %v3117
      %v3226 = vunpack.c.l.b16 %v3118
      %v3227 = vunpack.c.h.b16 %v3118
      %v3228 = vunpack.c.l.b16 %v3119
      %v3229 = vunpack.c.h.b16 %v3119
      %v3230 = vunpack.c.l.b16 %v3120
      %v3231 = vunpack.c.h.b16 %v3120
      %v3232 = vunpack.c.l.b16 %v3121
      %v3233 = vunpack.c.h.b16 %v3121
      %v3234 = vunpack.c.l.b16 %v3122
      %v3235 = vunpack.c.h.b16 %v3122
      %v3236 = vunpack.c.l.b16 %v3123
      %v3237 = vunpack.c.h.b16 %v3123
      %v3238 = vunpack.c.l.b16 %v3124
      %v3239 = vunpack.c.h.b16 %v3124
      %v3240 = vunpack.c.l.b16 %v3125
      %v3241 = vunpack.c.h.b16 %v3125
      %v3242 = vunpack.c.l.b16 %v3126
      %v3243 = vunpack.c.h.b16 %v3126
      %v3244 = vunpack.c.l.b16 %v3127
      %v3245 = vunpack.c.h.b16 %v3127
      %v3246 = vunpack.c.l.b16 %v3128
      %v3247 = vunpack.c.h.b16 %v3128
      %v3248 = vunpack.c.l.b16 %v3129
      %v3249 = vunpack.c.h.b16 %v3129
      %v3250 = vunpack.c.l.b16 %v3130
      %v3251 = vunpack.c.h.b16 %v3130
      %v3252 = vunpack.c.l.b16 %v3131
      %v3253 = vunpack.c.h.b16 %v3131
      %v3254 = vunpack.c.l.b16 %v3132
      %v3255 = vunpack.c.h.b16 %v3132
      %v3256 = vunpack.c.l.b16 %v3133
      %v3257 = vunpack.c.h.b16 %v3133
      %v3258 = vunpack.c.l.b16 %v3134
      %v3259 = vunpack.c.h.b16 %v3134
      %v3260 = vunpack.c.l.b16 %v3135
      %v3261 = vunpack.c.h.b16 %v3135
      %v3262 = vunpack.c.l.b16 %v3136
      %v3263 = vunpack.c.h.b16 %v3136
      %v3264 = vunpack.c.l.b16 %v3137
      %v3265 = vunpack.c.h.b16 %v3137
      %v3266 = vpack.c.b16 %v3204, %v3202
      %v3267 = vpack.c.b16 %v3205, %v3203
      %v3268 = vpack.c.b16 %v3208, %v3206
      %v3269 = vpack.c.b16 %v3209, %v3207
      %v3270 = vpack.c.b16 %v3212, %v3210
      %v3271 = vpack.c.b16 %v3213, %v3211
      %v3272 = vpack.c.b16 %v3216, %v3214
      %v3273 = vpack.c.b16 %v3217, %v3215
      %v3274 = vpack.c.b16 %v3220, %v3218
      %v3275 = vpack.c.b16 %v3221, %v3219
      %v3276 = vpack.c.b16 %v3224, %v3222
      %v3277 = vpack.c.b16 %v3225, %v3223
      %v3278 = vpack.c.b16 %v3228, %v3226
      %v3279 = vpack.c.b16 %v3229, %v3227
      %v3280 = vpack.c.b16 %v3232, %v3230
      %v3281 = vpack.c.b16 %v3233, %v3231
      %v3282 = vpack.c.b16 %v3236, %v3234
      %v3283 = vpack.c.b16 %v3237, %v3235
      %v3284 = vpack.c.b16 %v3240, %v3238
      %v3285 = vpack.c.b16 %v3241, %v3239
      %v3286 = vpack.c.b16 %v3244, %v3242
      %v3287 = vpack.c.b16 %v3245, %v3243
      %v3288 = vpack.c.b16 %v3248, %v3246
      %v3289 = vpack.c.b16 %v3249, %v3247
      %v3290 = vpack.c.b16 %v3252, %v3250
      %v3291 = vpack.c.b16 %v3253, %v3251
      %v3292 = vpack.c.b16 %v3256, %v3254
      %v3293 = vpack.c.b16 %v3257, %v3255
      %v3294 = vpack.c.b16 %v3260, %v3258
      %v3295 = vpack.c.b16 %v3261, %v3259
      %v3296 = vpack.c.b16 %v3264, %v3262
      %v3297 = vpack.c.b16 %v3265, %v3263
      %3330 = vmatprep.subr.bf16.mxu0 %v3281
      %3331 = vmatpush1.bf16.msra.mxu0 %v3280
      %3332 = vmatprep.subr.bf16.mxu0 %v3279
      %3333 = vmatpush1.bf16.msra.mxu0 %v3278
      %3334 = vmatprep.subr.bf16.mxu0 %v3277
      %3335 = vmatpush1.bf16.msra.mxu0 %v3276
      %3336 = vmatprep.subr.bf16.mxu0 %v3275
      %3337 = vmatpush1.bf16.msra.mxu0 %v3274
      %3338 = vmatprep.subr.bf16.mxu0 %v3273
      %3339 = vmatpush1.bf16.msra.mxu0 %v3272
      %3340 = vmatprep.subr.bf16.mxu0 %v3271
      %3341 = vmatpush1.bf16.msra.mxu0 %v3270
      %3342 = vmatprep.subr.bf16.mxu0 %v3269
      %3343 = vmatpush1.bf16.msra.mxu0 %v3268
      %3344 = vmatprep.subr.bf16.mxu0 %v3267
      %3345 = vmatpush1.bf16.msra.mxu0 %v3266
      %3346 = vmatprep.subr.bf16.mxu0 %v3297
      %3347 = vmatpush2.bf16.msra.mxu0 %v3296
      %3348 = vmatprep.subr.bf16.mxu0 %v3295
      %3349 = vmatpush2.bf16.msra.mxu0 %v3294
      %3350 = vmatprep.subr.bf16.mxu0 %v3293
      %3351 = vmatpush2.bf16.msra.mxu0 %v3292
      %3352 = vmatprep.subr.bf16.mxu0 %v3291
      %3353 = vmatpush2.bf16.msra.mxu0 %v3290
      %3354 = vmatprep.subr.bf16.mxu0 %v3289
      %3355 = vmatpush2.bf16.msra.mxu0 %v3288
      %3356 = vmatprep.subr.bf16.mxu0 %v3287
      %3357 = vmatpush2.bf16.msra.mxu0 %v3286
      %3358 = vmatprep.subr.bf16.mxu0 %v3285
      %3359 = vmatpush2.bf16.msra.mxu0 %v3284
      %3360 = vmatprep.subr.bf16.mxu0 %v3283
      %3361 = vmatpush2.bf16.msra.mxu0 %v3282
      %3362 = vmatprep.mubr.bf16.mxu0 %v3155
      %3363 = vmatmul.mubr.bf16.gmra.mxu0 %v3154
      %v3364 = vpop.f32.mrf.mxu0
      %v3365 = vadd.f32 0.0, %v3364
      %v3366 = vpop.f32.mrf.mxu0
      %v3367 = vadd.f32 0.0, %v3366
      %v3368 = vpop.f32.mrf.mxu0
      %v3369 = vadd.f32 0.0, %v3368
      %v3370 = vpop.f32.mrf.mxu0
      %v3371 = vadd.f32 0.0, %v3370
      %3372 = vmatprep.mubr.bf16.mxu0 %v3157
      %3373 = vmatmul.mubr.bf16.gmra.mxu0 %v3156
      %v3374 = vpop.f32.mrf.mxu0
      %v3375 = vadd.f32 0.0, %v3374
      %v3376 = vpop.f32.mrf.mxu0
      %v3377 = vadd.f32 0.0, %v3376
      %v3378 = vpop.f32.mrf.mxu0
      %v3379 = vadd.f32 0.0, %v3378
      %v3380 = vpop.f32.mrf.mxu0
      %v3381 = vadd.f32 0.0, %v3380
      %3382 = vmatprep.mubr.bf16.mxu0 %v3159
      %3383 = vmatmul.mubr.bf16.gmra.mxu0 %v3158
      %v3384 = vpop.f32.mrf.mxu0
      %v3385 = vadd.f32 0.0, %v3384
      %v3386 = vpop.f32.mrf.mxu0
      %v3387 = vadd.f32 0.0, %v3386
      %v3388 = vpop.f32.mrf.mxu0
      %v3389 = vadd.f32 0.0, %v3388
      %v3390 = vpop.f32.mrf.mxu0
      %v3391 = vadd.f32 0.0, %v3390
      %3392 = vmatprep.mubr.bf16.mxu0 %v3161
      %3393 = vmatmul.mubr.bf16.gmra.mxu0 %v3160
      %v3394 = vpop.f32.mrf.mxu0
      %v3395 = vadd.f32 0.0, %v3394
      %v3396 = vpop.f32.mrf.mxu0
      %v3397 = vadd.f32 0.0, %v3396
      %v3398 = vpop.f32.mrf.mxu0
      %v3399 = vadd.f32 0.0, %v3398
      %v3400 = vpop.f32.mrf.mxu0
      %v3401 = vadd.f32 0.0, %v3400
      %3402 = vdwg.mxu0
      %v3403 = vadd.f32 %v2961, %v3365
      %v3404 = vadd.f32 %v2962, %v3367
      %v3405 = vadd.f32 %v2963, %v3369
      %v3406 = vadd.f32 %v2964, %v3371
      %v3407 = vadd.f32 %v2965, %v3375
      %v3408 = vadd.f32 %v2966, %v3377
      %v3409 = vadd.f32 %v2967, %v3379
      %v3410 = vadd.f32 %v2968, %v3381
      %v3411 = vadd.f32 %v2969, %v3385
      %v3412 = vadd.f32 %v2970, %v3387
      %v3413 = vadd.f32 %v2971, %v3389
      %v3414 = vadd.f32 %v2972, %v3391
      %v3415 = vadd.f32 %v2973, %v3395
      %v3416 = vadd.f32 %v2974, %v3397
      %v3417 = vadd.f32 %v2975, %v3399
      %v3418 = vadd.f32 %v2976, %v3401
      %v3419 = vld [vmem:[%s2646] sm:$0xee]
      %v3420 = vld [vmem:[%s2646 + $0x10] sm:$0xee]
      %v3421 = vld [vmem:[%s2646 + $0x20] sm:$0xee]
      %v3422 = vld [vmem:[%s2646 + $0x30] sm:$0xee]
      %v3423 = vld [vmem:[%s2646 + $0x40] sm:$0xee]
      %v3424 = vld [vmem:[%s2646 + $0x50] sm:$0xee]
      %v3425 = vld [vmem:[%s2646 + $0x60] sm:$0xee]
      %v3426 = vld [vmem:[%s2646 + $0x70] sm:$0xee]
      %v3443 = vrot.slane %v3419, 5
      %v3444 = vrot.slane %v3443, 4
      %v3445 = vrot.slane %v2978, 5
      %v3446 = vsel %vm1156, %v3444, %v3445
      %v3447 = vrot.slane %v3420, 5
      %v3448 = vrot.slane %v3447, 4
      %v3449 = vrot.slane %v2980, 5
      %v3450 = vsel %vm1156, %v3448, %v3449
      %v3451 = vrot.slane %v3421, 5
      %v3452 = vrot.slane %v3451, 4
      %v3453 = vrot.slane %v2982, 5
      %v3454 = vsel %vm1156, %v3452, %v3453
      %v3455 = vrot.slane %v3422, 5
      %v3456 = vrot.slane %v3455, 4
      %v3457 = vrot.slane %v2984, 5
      %v3458 = vsel %vm1156, %v3456, %v3457
      %v3459 = vrot.slane %v3423, 5
      %v3460 = vrot.slane %v3459, 4
      %v3461 = vrot.slane %v2986, 5
      %v3462 = vsel %vm1156, %v3460, %v3461
      %v3463 = vrot.slane %v3424, 5
      %v3464 = vrot.slane %v3463, 4
      %v3465 = vrot.slane %v2988, 5
      %v3466 = vsel %vm1156, %v3464, %v3465
      %v3467 = vrot.slane %v3425, 5
      %v3468 = vrot.slane %v3467, 4
      %v3469 = vrot.slane %v2990, 5
      %v3470 = vsel %vm1156, %v3468, %v3469
      %v3471 = vrot.slane %v3426, 5
      %v3472 = vrot.slane %v3471, 4
      %v3473 = vrot.slane %v2992, 5
      %v3474 = vsel %vm1156, %v3472, %v3473
      %s3475 = scalar_lea.vmem %s210, 2048
      %v3476 = vld [vmem:[%s3475] sm:$0xff]
      %v3477 = vld [vmem:[%s3475 + $0x8] sm:$0xff]
      %v3478 = vld [vmem:[%s3475 + $0x10] sm:$0xff]
      %v3479 = vld [vmem:[%s3475 + $0x18] sm:$0xff]
      %v3480 = vld [vmem:[%s3475 + $0x20] sm:$0xff]
      %v3481 = vld [vmem:[%s3475 + $0x28] sm:$0xff]
      %v3482 = vld [vmem:[%s3475 + $0x30] sm:$0xff]
      %v3483 = vld [vmem:[%s3475 + $0x38] sm:$0xff]
      %v3484 = vld [vmem:[%s3475 + $0x40] sm:$0xff]
      %v3485 = vld [vmem:[%s3475 + $0x48] sm:$0xff]
      %v3486 = vld [vmem:[%s3475 + $0x50] sm:$0xff]
      %v3487 = vld [vmem:[%s3475 + $0x58] sm:$0xff]
      %v3488 = vld [vmem:[%s3475 + $0x60] sm:$0xff]
      %v3489 = vld [vmem:[%s3475 + $0x68] sm:$0xff]
      %v3490 = vld [vmem:[%s3475 + $0x70] sm:$0xff]
      %v3491 = vld [vmem:[%s3475 + $0x78] sm:$0xff]
      %v3492 = vld [vmem:[%s3475 + $0x80] sm:$0xff]
      %v3493 = vld [vmem:[%s3475 + $0x88] sm:$0xff]
      %v3494 = vld [vmem:[%s3475 + $0x90] sm:$0xff]
      %v3495 = vld [vmem:[%s3475 + $0x98] sm:$0xff]
      %v3496 = vld [vmem:[%s3475 + $0xa0] sm:$0xff]
      %v3497 = vld [vmem:[%s3475 + $0xa8] sm:$0xff]
      %v3498 = vld [vmem:[%s3475 + $0xb0] sm:$0xff]
      %v3499 = vld [vmem:[%s3475 + $0xb8] sm:$0xff]
      %v3500 = vld [vmem:[%s3475 + $0xc0] sm:$0xff]
      %v3501 = vld [vmem:[%s3475 + $0xc8] sm:$0xff]
      %v3502 = vld [vmem:[%s3475 + $0xd0] sm:$0xff]
      %v3503 = vld [vmem:[%s3475 + $0xd8] sm:$0xff]
      %v3504 = vld [vmem:[%s3475 + $0xe0] sm:$0xff]
      %v3505 = vld [vmem:[%s3475 + $0xe8] sm:$0xff]
      %v3506 = vld [vmem:[%s3475 + $0xf0] sm:$0xff]
      %v3507 = vld [vmem:[%s3475 + $0xf8] sm:$0xff]
      %v3508 = vunpack.c.l.b16 %v3446
      %v3509 = vunpack.c.h.b16 %v3446
      %v3510 = vunpack.c.l.b16 %v3450
      %v3511 = vunpack.c.h.b16 %v3450
      %v3512 = vunpack.c.l.b16 %v3454
      %v3513 = vunpack.c.h.b16 %v3454
      %v3514 = vunpack.c.l.b16 %v3458
      %v3515 = vunpack.c.h.b16 %v3458
      %v3516 = vunpack.c.l.b16 %v3462
      %v3517 = vunpack.c.h.b16 %v3462
      %v3518 = vunpack.c.l.b16 %v3466
      %v3519 = vunpack.c.h.b16 %v3466
      %v3520 = vunpack.c.l.b16 %v3470
      %v3521 = vunpack.c.h.b16 %v3470
      %v3522 = vunpack.c.l.b16 %v3474
      %v3523 = vunpack.c.h.b16 %v3474
      %v3524 = vpack.c.b16 %v3510, %v3508
      %v3525 = vpack.c.b16 %v3511, %v3509
      %v3526 = vpack.c.b16 %v3514, %v3512
      %v3527 = vpack.c.b16 %v3515, %v3513
      %v3528 = vpack.c.b16 %v3518, %v3516
      %v3529 = vpack.c.b16 %v3519, %v3517
      %v3530 = vpack.c.b16 %v3522, %v3520
      %v3531 = vpack.c.b16 %v3523, %v3521
      %v3572 = vunpack.c.l.b16 %v3476
      %v3573 = vunpack.c.h.b16 %v3476
      %v3574 = vunpack.c.l.b16 %v3477
      %v3575 = vunpack.c.h.b16 %v3477
      %v3576 = vunpack.c.l.b16 %v3478
      %v3577 = vunpack.c.h.b16 %v3478
      %v3578 = vunpack.c.l.b16 %v3479
      %v3579 = vunpack.c.h.b16 %v3479
      %v3580 = vunpack.c.l.b16 %v3480
      %v3581 = vunpack.c.h.b16 %v3480
      %v3582 = vunpack.c.l.b16 %v3481
      %v3583 = vunpack.c.h.b16 %v3481
      %v3584 = vunpack.c.l.b16 %v3482
      %v3585 = vunpack.c.h.b16 %v3482
      %v3586 = vunpack.c.l.b16 %v3483
      %v3587 = vunpack.c.h.b16 %v3483
      %v3588 = vunpack.c.l.b16 %v3484
      %v3589 = vunpack.c.h.b16 %v3484
      %v3590 = vunpack.c.l.b16 %v3485
      %v3591 = vunpack.c.h.b16 %v3485
      %v3592 = vunpack.c.l.b16 %v3486
      %v3593 = vunpack.c.h.b16 %v3486
      %v3594 = vunpack.c.l.b16 %v3487
      %v3595 = vunpack.c.h.b16 %v3487
      %v3596 = vunpack.c.l.b16 %v3488
      %v3597 = vunpack.c.h.b16 %v3488
      %v3598 = vunpack.c.l.b16 %v3489
      %v3599 = vunpack.c.h.b16 %v3489
      %v3600 = vunpack.c.l.b16 %v3490
      %v3601 = vunpack.c.h.b16 %v3490
      %v3602 = vunpack.c.l.b16 %v3491
      %v3603 = vunpack.c.h.b16 %v3491
      %v3604 = vunpack.c.l.b16 %v3492
      %v3605 = vunpack.c.h.b16 %v3492
      %v3606 = vunpack.c.l.b16 %v3493
      %v3607 = vunpack.c.h.b16 %v3493
      %v3608 = vunpack.c.l.b16 %v3494
      %v3609 = vunpack.c.h.b16 %v3494
      %v3610 = vunpack.c.l.b16 %v3495
      %v3611 = vunpack.c.h.b16 %v3495
      %v3612 = vunpack.c.l.b16 %v3496
      %v3613 = vunpack.c.h.b16 %v3496
      %v3614 = vunpack.c.l.b16 %v3497
      %v3615 = vunpack.c.h.b16 %v3497
      %v3616 = vunpack.c.l.b16 %v3498
      %v3617 = vunpack.c.h.b16 %v3498
      %v3618 = vunpack.c.l.b16 %v3499
      %v3619 = vunpack.c.h.b16 %v3499
      %v3620 = vunpack.c.l.b16 %v3500
      %v3621 = vunpack.c.h.b16 %v3500
      %v3622 = vunpack.c.l.b16 %v3501
      %v3623 = vunpack.c.h.b16 %v3501
      %v3624 = vunpack.c.l.b16 %v3502
      %v3625 = vunpack.c.h.b16 %v3502
      %v3626 = vunpack.c.l.b16 %v3503
      %v3627 = vunpack.c.h.b16 %v3503
      %v3628 = vunpack.c.l.b16 %v3504
      %v3629 = vunpack.c.h.b16 %v3504
      %v3630 = vunpack.c.l.b16 %v3505
      %v3631 = vunpack.c.h.b16 %v3505
      %v3632 = vunpack.c.l.b16 %v3506
      %v3633 = vunpack.c.h.b16 %v3506
      %v3634 = vunpack.c.l.b16 %v3507
      %v3635 = vunpack.c.h.b16 %v3507
      %v3636 = vpack.c.b16 %v3574, %v3572
      %v3637 = vpack.c.b16 %v3575, %v3573
      %v3638 = vpack.c.b16 %v3578, %v3576
      %v3639 = vpack.c.b16 %v3579, %v3577
      %v3640 = vpack.c.b16 %v3582, %v3580
      %v3641 = vpack.c.b16 %v3583, %v3581
      %v3642 = vpack.c.b16 %v3586, %v3584
      %v3643 = vpack.c.b16 %v3587, %v3585
      %v3644 = vpack.c.b16 %v3590, %v3588
      %v3645 = vpack.c.b16 %v3591, %v3589
      %v3646 = vpack.c.b16 %v3594, %v3592
      %v3647 = vpack.c.b16 %v3595, %v3593
      %v3648 = vpack.c.b16 %v3598, %v3596
      %v3649 = vpack.c.b16 %v3599, %v3597
      %v3650 = vpack.c.b16 %v3602, %v3600
      %v3651 = vpack.c.b16 %v3603, %v3601
      %v3652 = vpack.c.b16 %v3606, %v3604
      %v3653 = vpack.c.b16 %v3607, %v3605
      %v3654 = vpack.c.b16 %v3610, %v3608
      %v3655 = vpack.c.b16 %v3611, %v3609
      %v3656 = vpack.c.b16 %v3614, %v3612
      %v3657 = vpack.c.b16 %v3615, %v3613
      %v3658 = vpack.c.b16 %v3618, %v3616
      %v3659 = vpack.c.b16 %v3619, %v3617
      %v3660 = vpack.c.b16 %v3622, %v3620
      %v3661 = vpack.c.b16 %v3623, %v3621
      %v3662 = vpack.c.b16 %v3626, %v3624
      %v3663 = vpack.c.b16 %v3627, %v3625
      %v3664 = vpack.c.b16 %v3630, %v3628
      %v3665 = vpack.c.b16 %v3631, %v3629
      %v3666 = vpack.c.b16 %v3634, %v3632
      %v3667 = vpack.c.b16 %v3635, %v3633
      %3700 = vmatprep.subr.bf16.mxu0 %v3651
      %3701 = vmatpush1.bf16.msra.mxu0 %v3650
      %3702 = vmatprep.subr.bf16.mxu0 %v3649
      %3703 = vmatpush1.bf16.msra.mxu0 %v3648
      %3704 = vmatprep.subr.bf16.mxu0 %v3647
      %3705 = vmatpush1.bf16.msra.mxu0 %v3646
      %3706 = vmatprep.subr.bf16.mxu0 %v3645
      %3707 = vmatpush1.bf16.msra.mxu0 %v3644
      %3708 = vmatprep.subr.bf16.mxu0 %v3643
      %3709 = vmatpush1.bf16.msra.mxu0 %v3642
      %3710 = vmatprep.subr.bf16.mxu0 %v3641
      %3711 = vmatpush1.bf16.msra.mxu0 %v3640
      %3712 = vmatprep.subr.bf16.mxu0 %v3639
      %3713 = vmatpush1.bf16.msra.mxu0 %v3638
      %3714 = vmatprep.subr.bf16.mxu0 %v3637
      %3715 = vmatpush1.bf16.msra.mxu0 %v3636
      %3716 = vmatprep.subr.bf16.mxu0 %v3667
      %3717 = vmatpush2.bf16.msra.mxu0 %v3666
      %3718 = vmatprep.subr.bf16.mxu0 %v3665
      %3719 = vmatpush2.bf16.msra.mxu0 %v3664
      %3720 = vmatprep.subr.bf16.mxu0 %v3663
      %3721 = vmatpush2.bf16.msra.mxu0 %v3662
      %3722 = vmatprep.subr.bf16.mxu0 %v3661
      %3723 = vmatpush2.bf16.msra.mxu0 %v3660
      %3724 = vmatprep.subr.bf16.mxu0 %v3659
      %3725 = vmatpush2.bf16.msra.mxu0 %v3658
      %3726 = vmatprep.subr.bf16.mxu0 %v3657
      %3727 = vmatpush2.bf16.msra.mxu0 %v3656
      %3728 = vmatprep.subr.bf16.mxu0 %v3655
      %3729 = vmatpush2.bf16.msra.mxu0 %v3654
      %3730 = vmatprep.subr.bf16.mxu0 %v3653
      %3731 = vmatpush2.bf16.msra.mxu0 %v3652
      %3732 = vmatprep.mubr.bf16.mxu0 %v3525
      %3733 = vmatmul.mubr.bf16.gmra.mxu0 %v3524
      %v3734 = vpop.f32.mrf.mxu0
      %v3735 = vadd.f32 0.0, %v3734
      %v3736 = vpop.f32.mrf.mxu0
      %v3737 = vadd.f32 0.0, %v3736
      %v3738 = vpop.f32.mrf.mxu0
      %v3739 = vadd.f32 0.0, %v3738
      %v3740 = vpop.f32.mrf.mxu0
      %v3741 = vadd.f32 0.0, %v3740
      %3742 = vmatprep.mubr.bf16.mxu0 %v3527
      %3743 = vmatmul.mubr.bf16.gmra.mxu0 %v3526
      %v3744 = vpop.f32.mrf.mxu0
      %v3745 = vadd.f32 0.0, %v3744
      %v3746 = vpop.f32.mrf.mxu0
      %v3747 = vadd.f32 0.0, %v3746
      %v3748 = vpop.f32.mrf.mxu0
      %v3749 = vadd.f32 0.0, %v3748
      %v3750 = vpop.f32.mrf.mxu0
      %v3751 = vadd.f32 0.0, %v3750
      %3752 = vmatprep.mubr.bf16.mxu0 %v3529
      %3753 = vmatmul.mubr.bf16.gmra.mxu0 %v3528
      %v3754 = vpop.f32.mrf.mxu0
      %v3755 = vadd.f32 0.0, %v3754
      %v3756 = vpop.f32.mrf.mxu0
      %v3757 = vadd.f32 0.0, %v3756
      %v3758 = vpop.f32.mrf.mxu0
      %v3759 = vadd.f32 0.0, %v3758
      %v3760 = vpop.f32.mrf.mxu0
      %v3761 = vadd.f32 0.0, %v3760
      %3762 = vmatprep.mubr.bf16.mxu0 %v3531
      %3763 = vmatmul.mubr.bf16.gmra.mxu0 %v3530
      %v3764 = vpop.f32.mrf.mxu0
      %v3765 = vadd.f32 0.0, %v3764
      %v3766 = vpop.f32.mrf.mxu0
      %v3767 = vadd.f32 0.0, %v3766
      %v3768 = vpop.f32.mrf.mxu0
      %v3769 = vadd.f32 0.0, %v3768
      %v3770 = vpop.f32.mrf.mxu0
      %v3771 = vadd.f32 0.0, %v3770
      %3772 = vdwg.mxu0
      %v3773 = vadd.f32 %v3403, %v3735
      %v3774 = vadd.f32 %v3404, %v3737
      %v3775 = vadd.f32 %v3405, %v3739
      %v3776 = vadd.f32 %v3406, %v3741
      %v3777 = vadd.f32 %v3407, %v3745
      %v3778 = vadd.f32 %v3408, %v3747
      %v3779 = vadd.f32 %v3409, %v3749
      %v3780 = vadd.f32 %v3410, %v3751
      %v3781 = vadd.f32 %v3411, %v3755
      %v3782 = vadd.f32 %v3412, %v3757
      %v3783 = vadd.f32 %v3413, %v3759
      %v3784 = vadd.f32 %v3414, %v3761
      %v3785 = vadd.f32 %v3415, %v3765
      %v3786 = vadd.f32 %v3416, %v3767
      %v3787 = vadd.f32 %v3417, %v3769
      %v3788 = vadd.f32 %v3418, %v3771
      %v3789 = vld [vmem:[%s214] sm:$0x3]
      %v3791 = vlaneseq
      %v3792 = vshrl.u32 %v3791, 7
      %v3793 = vsub.s32 0, %v3792
      %v3794 = vrot.slane %v3789, %v3793
      %v3795 = vlaneseq
      %v3796 = vshrl.u32 %v3795, 7
      %v3797 = vsub.s32 1, %v3796
      %v3798 = vrot.slane %v3789, %v3797
      %v3801 = vadd.f32 %v3773, %v3794
      %v3802 = vadd.f32 %v3774, %v3798
      %v3803 = vadd.f32 %v3775, %v3794
      %v3804 = vadd.f32 %v3776, %v3798
      %v3805 = vadd.f32 %v3777, %v3794
      %v3806 = vadd.f32 %v3778, %v3798
      %v3807 = vadd.f32 %v3779, %v3794
      %v3808 = vadd.f32 %v3780, %v3798
      %v3809 = vadd.f32 %v3781, %v3794
      %v3810 = vadd.f32 %v3782, %v3798
      %v3811 = vadd.f32 %v3783, %v3794
      %v3812 = vadd.f32 %v3784, %v3798
      %v3813 = vadd.f32 %v3785, %v3794
      %v3814 = vadd.f32 %v3786, %v3798
      %v3815 = vadd.f32 %v3787, %v3794
      %v3816 = vadd.f32 %v3788, %v3798
      %p3817 = scmp.lt.s32.totalorder %s19, 4
      // Predicated region
      $region37: #{subnet_forward.1} parent=31 // pred_check
        %p3818 = pneg %p3817
      $region38: #{subnet_forward.1} parent=31 // pred_check_branch
        %3820 = sbr.rel (%p3818) target = $region40
      $region39: #{subnet_forward.1} parent=31 // pred_region
        %v3821 = vmax.f32 %v3801, 0.0
        %v3822 = vmax.f32 %v3802, 0.0
        %v3823 = vmax.f32 %v3803, 0.0
        %v3824 = vmax.f32 %v3804, 0.0
        %v3825 = vmax.f32 %v3805, 0.0
        %v3826 = vmax.f32 %v3806, 0.0
        %v3827 = vmax.f32 %v3807, 0.0
        %v3828 = vmax.f32 %v3808, 0.0
        %v3829 = vmax.f32 %v3809, 0.0
        %v3830 = vmax.f32 %v3810, 0.0
        %v3831 = vmax.f32 %v3811, 0.0
        %v3832 = vmax.f32 %v3812, 0.0
        %v3833 = vmax.f32 %v3813, 0.0
        %v3834 = vmax.f32 %v3814, 0.0
        %v3835 = vmax.f32 %v3815, 0.0
        %v3836 = vmax.f32 %v3816, 0.0
        %v3837 = vpack.c.bf16 %v3823, %v3821
        %v3838 = vpack.c.bf16 %v3824, %v3822
        %v3839 = vpack.c.bf16 %v3827, %v3825
        %v3840 = vpack.c.bf16 %v3828, %v3826
        %v3841 = vpack.c.bf16 %v3831, %v3829
        %v3842 = vpack.c.bf16 %v3832, %v3830
        %v3843 = vpack.c.bf16 %v3835, %v3833
        %v3844 = vpack.c.bf16 %v3836, %v3834
        %v3853 = vunpack.c.l.b16 %v3837
        %v3854 = vunpack.c.l.b16 %v3838
        %v3855 = vunpack.c.h.b16 %v3837
        %v3856 = vunpack.c.h.b16 %v3838
        %v3857 = vunpack.c.l.b16 %v3839
        %v3858 = vunpack.c.l.b16 %v3840
        %v3859 = vunpack.c.h.b16 %v3839
        %v3860 = vunpack.c.h.b16 %v3840
        %v3861 = vunpack.c.l.b16 %v3841
        %v3862 = vunpack.c.l.b16 %v3842
        %v3863 = vunpack.c.h.b16 %v3841
        %v3864 = vunpack.c.h.b16 %v3842
        %v3865 = vunpack.c.l.b16 %v3843
        %v3866 = vunpack.c.l.b16 %v3844
        %v3867 = vunpack.c.h.b16 %v3843
        %v3868 = vunpack.c.h.b16 %v3844
        %v3869 = vpack.c.b16 %v3854, %v3853
        %v3870 = vpack.c.b16 %v3856, %v3855
        %v3871 = vpack.c.b16 %v3858, %v3857
        %v3872 = vpack.c.b16 %v3860, %v3859
        %v3873 = vpack.c.b16 %v3862, %v3861
        %v3874 = vpack.c.b16 %v3864, %v3863
        %v3875 = vpack.c.b16 %v3866, %v3865
        %v3876 = vpack.c.b16 %v3868, %v3867
        %v3878 = vshrl.u32 %v3869, 16
        %v3880 = vrot.slane %v3878, 7
        %v3881 = vshll.u32 %v3869, 16
        %v3883 = vor.u32 %v3880, %v3881
        %v3884 = vrot.slane %v3880, 4
        %v3886 = vshrl.u32 %v3870, 16
        %v3888 = vrot.slane %v3886, 7
        %v3889 = vshll.u32 %v3870, 16
        %v3891 = vor.u32 %v3888, %v3889
        %v3892 = vrot.slane %v3888, 4
        %v3894 = vshrl.u32 %v3871, 16
        %v3896 = vrot.slane %v3894, 7
        %v3897 = vshll.u32 %v3871, 16
        %v3899 = vor.u32 %v3896, %v3897
        %v3900 = vrot.slane %v3896, 4
        %v3902 = vshrl.u32 %v3872, 16
        %v3904 = vrot.slane %v3902, 7
        %v3905 = vshll.u32 %v3872, 16
        %v3907 = vor.u32 %v3904, %v3905
        %v3908 = vrot.slane %v3904, 4
        %v3910 = vshrl.u32 %v3873, 16
        %v3912 = vrot.slane %v3910, 7
        %v3913 = vshll.u32 %v3873, 16
        %v3915 = vor.u32 %v3912, %v3913
        %v3916 = vrot.slane %v3912, 4
        %v3918 = vshrl.u32 %v3874, 16
        %v3920 = vrot.slane %v3918, 7
        %v3921 = vshll.u32 %v3874, 16
        %v3923 = vor.u32 %v3920, %v3921
        %v3924 = vrot.slane %v3920, 4
        %v3926 = vshrl.u32 %v3875, 16
        %v3928 = vrot.slane %v3926, 7
        %v3929 = vshll.u32 %v3875, 16
        %v3931 = vor.u32 %v3928, %v3929
        %v3932 = vrot.slane %v3928, 4
        %v3934 = vshrl.u32 %v3876, 16
        %v3936 = vrot.slane %v3934, 7
        %v3937 = vshll.u32 %v3876, 16
        %v3939 = vor.u32 %v3936, %v3937
        %v3940 = vrot.slane %v3936, 4
        %vm3957 = vcmask 1043456
        %vm3958 = vsmask.f32 7938
        %vm3959 = vmand %vm3957, %vm3958
        %vm3960 = vcmask 1047556
        %vm3961 = vsmask.f32 7954
        %vm3962 = vmand %vm3960, %vm3961
        %vm3963 = vmor %vm3962, %vm3959
        %v3964 = vld [vmem:[%s1503] sm:$0xff]
        %v3965 = vsel %vm3963, %v3883, %v3964
        %3966 = vst [vmem:[%s1503] sm:$0xff] %v3965
        %vm3967 = vcmask 1040384
        %vm3968 = vsmask.f32 256
        %vm3969 = vmand %vm3967, %vm3968
        %vm3970 = vcmask 1044484
        %vm3971 = vsmask.f32 4352
        %vm3972 = vmand %vm3970, %vm3971
        %vm3973 = vmor %vm3972, %vm3969
        %v3974 = vld [vmem:[%s1503 + $0x8] sm:$0x11]
        %v3975 = vsel %vm3973, %v3884, %v3974
        %3976 = vst [vmem:[%s1503 + $0x8] sm:$0x11] %v3975
        %v3977 = vld [vmem:[%s1503 + $0x10] sm:$0xff]
        %v3978 = vsel %vm3963, %v3891, %v3977
        %3979 = vst [vmem:[%s1503 + $0x10] sm:$0xff] %v3978
        %v3980 = vld [vmem:[%s1503 + $0x18] sm:$0x11]
        %v3981 = vsel %vm3973, %v3892, %v3980
        %3982 = vst [vmem:[%s1503 + $0x18] sm:$0x11] %v3981
        %v3983 = vld [vmem:[%s1503 + $0x20] sm:$0xff]
        %v3984 = vsel %vm3963, %v3899, %v3983
        %3985 = vst [vmem:[%s1503 + $0x20] sm:$0xff] %v3984
        %v3986 = vld [vmem:[%s1503 + $0x28] sm:$0x11]
        %v3987 = vsel %vm3973, %v3900, %v3986
        %3988 = vst [vmem:[%s1503 + $0x28] sm:$0x11] %v3987
        %v3989 = vld [vmem:[%s1503 + $0x30] sm:$0xff]
        %v3990 = vsel %vm3963, %v3907, %v3989
        %3991 = vst [vmem:[%s1503 + $0x30] sm:$0xff] %v3990
        %v3992 = vld [vmem:[%s1503 + $0x38] sm:$0x11]
        %v3993 = vsel %vm3973, %v3908, %v3992
        %3994 = vst [vmem:[%s1503 + $0x38] sm:$0x11] %v3993
        %v3995 = vld [vmem:[%s1503 + $0x40] sm:$0xff]
        %v3996 = vsel %vm3963, %v3915, %v3995
        %3997 = vst [vmem:[%s1503 + $0x40] sm:$0xff] %v3996
        %v3998 = vld [vmem:[%s1503 + $0x48] sm:$0x11]
        %v3999 = vsel %vm3973, %v3916, %v3998
        %4000 = vst [vmem:[%s1503 + $0x48] sm:$0x11] %v3999
        %v4001 = vld [vmem:[%s1503 + $0x50] sm:$0xff]
        %v4002 = vsel %vm3963, %v3923, %v4001
        %4003 = vst [vmem:[%s1503 + $0x50] sm:$0xff] %v4002
        %v4004 = vld [vmem:[%s1503 + $0x58] sm:$0x11]
        %v4005 = vsel %vm3973, %v3924, %v4004
        %4006 = vst [vmem:[%s1503 + $0x58] sm:$0x11] %v4005
        %v4007 = vld [vmem:[%s1503 + $0x60] sm:$0xff]
        %v4008 = vsel %vm3963, %v3931, %v4007
        %4009 = vst [vmem:[%s1503 + $0x60] sm:$0xff] %v4008
        %v4010 = vld [vmem:[%s1503 + $0x68] sm:$0x11]
        %v4011 = vsel %vm3973, %v3932, %v4010
        %4012 = vst [vmem:[%s1503 + $0x68] sm:$0x11] %v4011
        %v4013 = vld [vmem:[%s1503 + $0x70] sm:$0xff]
        %v4014 = vsel %vm3963, %v3939, %v4013
        %4015 = vst [vmem:[%s1503 + $0x70] sm:$0xff] %v4014
        %v4016 = vld [vmem:[%s1503 + $0x78] sm:$0x11]
        %v4017 = vsel %vm3973, %v3940, %v4016
        %4018 = vst [vmem:[%s1503 + $0x78] sm:$0x11] %v4017
      $region40: #{subnet_forward.1} parent=31 // pred_fallthru
        _
      %p4019 = scmp.eq.s32.totalorder %s19, 4
      // Predicated region
      $region41: #{subnet_forward.1} parent=31 // pred_check
        %p4020 = pneg %p4019
      $region42: #{subnet_forward.1} parent=31 // pred_check_branch
        %4022 = sbr.rel (%p4020) target = $region44
      $region43: #{subnet_forward.1} parent=31 // pred_region
        %4023 = vst [vmem:[%s219] sm:$0xff] %v3801
        %4024 = vst [vmem:[%s219 + $0x8] sm:$0xff] %v3803
        %4025 = vst [vmem:[%s219 + $0x10] sm:$0xff] %v3805
        %4026 = vst [vmem:[%s219 + $0x18] sm:$0xff] %v3807
        %4027 = vst [vmem:[%s219 + $0x20] sm:$0xff] %v3809
        %4028 = vst [vmem:[%s219 + $0x28] sm:$0xff] %v3811
        %4029 = vst [vmem:[%s219 + $0x30] sm:$0xff] %v3813
        %4030 = vst [vmem:[%s219 + $0x38] sm:$0xff] %v3815
      $region44: #{subnet_forward.1} parent=31 // pred_fallthru
        _
      %p4031 = scmp.lt.s32.totalorder %s18, 1
      %s4032 = scalar_select %p4031, %s18, 1
      %s4033 = smul.addr %s4032, 8
      %s4034 = smul.addr %s4033, 8
      %s4035 = scalar_lea.vmem %s3, %s4034
      // Predicated region
      $region45: #{subnet_forward.1} parent=31 // pred_check
        %p4036 = pneg %p122
      $region46: #{subnet_forward.1} parent=31 // pred_check_branch
        %4038 = sbr.rel (%p4036) target = $region48
      $region47: #{subnet_forward.1} parent=31 // pred_region
        _
      $region48: #{subnet_forward.1} parent=31 // pred_fallthru
        _
    $region32: #{subnet_forward.1} parent=5 // pred_fallthru
      _
    %p4039 = scmp.le.s32.totalorder 2, %s9
    // Predicated region
    $region49: #{subnet_forward.1} parent=5 // pred_check
      %p4040 = pneg %p4039
    $region50: #{subnet_forward.1} parent=5 // pred_check_branch
      %4042 = sbr.rel (%p4040) target = $region52
    $region51: #{subnet_forward.1} parent=5 // pred_region
      %s4043 = ssub.s32 %s9, 2
      // Predicated region
      $region53: #{subnet_forward.1} parent=51 // pred_check
        %p4044 = pneg %p128
      $region54: #{subnet_forward.1} parent=51 // pred_check_branch
        %4046 = sbr.rel (%p4044) target = $region56
      $region55: #{subnet_forward.1} parent=51 // pred_region
        %p4047 = scmp.lt.s32.totalorder %s20, 1
        %s4048 = scalar_select %p4047, %s20, 1
        %s4049 = smul.addr %s4048, 8
        %s4050 = smul.addr %s4049, 8
        %s4051 = scalar_lea.vmem %s3, %s4050
      $region56: #{subnet_forward.1} parent=51 // pred_fallthru
        _
    $region52: #{subnet_forward.1} parent=5 // pred_fallthru
      _
  $region6: #{subnet_forward.1} parent=0 // loop_footer
    %s13 = sadd.s32 1, %s9
  $region7: #{subnet_forward.1} parent=0 // loop_footer_branch
    %8 = sbr.rel target = $region3
  $region8: #{subnet_forward.1} parent=0 // loop_exit
    _

</llo_original>
